<compile_context>
chip_gen: v6e
topology: v6e:2x2x1
jax: 0.10.0
libtpu: 0.0.40
codegen_flags: <defaults>
</compile_context>

<pallas_src>
import math
from collections import deque

import numpy as np
import jax
import jax.numpy as jnp
from jax.experimental import pallas as pl
from jax.experimental.pallas import tpu as pltpu

H = 128        # hidden size (lane-aligned)
C_MAX = 8      # max padded children per node (sublane-aligned)
INV_SQRT_H = 1.0 / math.sqrt(H)


# ---------------------------------------------------------------------------
# Bottom-up fused kernel: one grid step per tree level (deepest level first).
# Parent state <- attention over its children (leaves: ctx = 0).
# ---------------------------------------------------------------------------
def bu_fused_kernel(lvl_nodes, child_idx,                 # SMEM prefetch refs
                    states_in_ref, mask_ref,
                    wq_ref, wk_ref, wv_ref, wo_ref, bo_ref,
                    states_ref,                           # resident output
                    p_buf, ch_buf):                       # VMEM scratch
    lvl = pl.program_id(0)
    _, lmax, c_max = mask_ref.shape
    hh = states_in_ref.shape[2]

    @pl.when(lvl == 0)
    def _init():
        states_ref[...] = states_in_ref[...]

    # ---- gather this level's parents and their (padded) children ----------
    for j in range(lmax):                                 # static unroll
        node = lvl_nodes[lvl, j]
        p_buf[pl.ds(j, 1), :] = states_ref[node]
        for c in range(c_max):
            ci = child_idx[node, c]
            ch_buf[pl.ds(j * c_max + c, 1), :] = states_ref[ci]

    parents = p_buf[...]                                  # [LMAX, H]   f32
    children = ch_buf[...]                                # [LMAX*C, H] f32
    mask = mask_ref[...].reshape(lmax, c_max)             # [LMAX, C]   f32

    # ---- batched attention (bf16 MXU matmuls, f32 accumulate) --------------
    q = jnp.dot(parents.astype(jnp.bfloat16), wq_ref[...],
                preferred_element_type=jnp.float32)       # [LMAX, H]
    k = jnp.dot(children.astype(jnp.bfloat16), wk_ref[...],
                preferred_element_type=jnp.float32)       # [LMAX*C, H]
    v = jnp.dot(children.astype(jnp.bfloat16), wv_ref[...],
                preferred_element_type=jnp.float32)       # [LMAX*C, H]
    k3 = k.reshape(lmax, c_max, hh)
    v3 = v.reshape(lmax, c_max, hh)

    scores = jnp.sum(k3 * q[:, None, :], axis=-1) * INV_SQRT_H    # [LMAX, C]
    scores = jnp.where(mask > 0.0, scores, -1e30)
    m = jnp.max(scores, axis=-1, keepdims=True)
    e = jnp.exp(scores - m) * mask          # *mask keeps leaves at ctx == 0
    denom = jnp.maximum(jnp.sum(e, axis=-1, keepdims=True), 1e-9)
    alpha = e / denom                                              # [LMAX, C]

    ctx = jnp.sum(alpha[:, :, None] * v3, axis=1)                  # [LMAX, H]
    out = jnp.tanh(
        jnp.dot((ctx + parents).astype(jnp.bfloat16), wo_ref[...],
                preferred_element_type=jnp.float32)
        + bo_ref[...])                                             # [LMAX, H]

    # ---- scatter new parent states (padded slots land in the trash row) ----
    for j in range(lmax):
        node = lvl_nodes[lvl, j]
        states_ref[node] = out[j:j + 1, :]


# ---------------------------------------------------------------------------
# Top-down fused kernel: one grid step per tree level (root level first).
# Children states <- dynamic-routing update from their parent.
# ---------------------------------------------------------------------------
def td_fused_kernel(lvl_nodes, child_idx,                 # SMEM prefetch refs
                    states_in_ref, mask_ref,
                    wr_ref, wa_ref, wu_ref, bias_ref,
                    states_ref,                           # resident output
                    p_buf, ch_buf):                       # VMEM scratch
    lvl = pl.program_id(0)
    _, lmax, c_max = mask_ref.shape
    hh = states_in_ref.shape[2]

    @pl.when(lvl == 0)
    def _init():
        states_ref[...] = states_in_ref[...]

    for j in range(lmax):                                 # static unroll
        node = lvl_nodes[lvl, j]
        p_buf[pl.ds(j, 1), :] = states_ref[node]
        for c in range(c_max):
            ci = child_idx[node, c]
            ch_buf[pl.ds(j * c_max + c, 1), :] = states_ref[ci]

    parents = p_buf[...]                                  # [LMAX, H]
    children = ch_buf[...]                                # [LMAX*C, H]
    mask = mask_ref[...].reshape(lmax, c_max)             # [LMAX, C]

    u = jnp.dot(parents.astype(jnp.bfloat16), wr_ref[...],
                preferred_element_type=jnp.float32)       # [LMAX, H]
    a = jnp.dot(children.astype(jnp.bfloat16), wa_ref[...],
                preferred_element_type=jnp.float32)       # [LMAX*C, H]
    a3 = a.reshape(lmax, c_max, hh)

    logits = jnp.sum(a3 * u[:, None, :], axis=-1) * INV_SQRT_H     # [LMAX, C]
    logits = jnp.where(mask > 0.0, logits, -1e30)
    m = jnp.max(logits, axis=-1, keepdims=True)
    e = jnp.exp(logits - m) * mask
    denom = jnp.maximum(jnp.sum(e, axis=-1, keepdims=True), 1e-9)
    coeff = e / denom                                              # [LMAX, C]

    chu = jnp.dot(children.astype(jnp.bfloat16), wu_ref[...],
                  preferred_element_type=jnp.float32)
    chu3 = chu.reshape(lmax, c_max, hh)
    routed = jnp.tanh(chu3 + coeff[:, :, None] * u[:, None, :] + bias_ref[...])
    routed2 = routed.reshape(lmax * c_max, hh)            # [LMAX*C, H]

    # only real children get written to real rows; padded ones hit the trash row
    for j in range(lmax):
        node = lvl_nodes[lvl, j]
        for c in range(c_max):
            ci = child_idx[node, c]
            row = j * c_max + c
            states_ref[ci] = routed2[row:row + 1, :]


# ---------------------------------------------------------------------------
# Fused-pass wrappers (one pallas_call each, jitted once per table shape)
# ---------------------------------------------------------------------------
def _weight_spec(h):
    return pl.BlockSpec((h, h), lambda l, *_: (0, 0))


@jax.jit
def bottom_up_pass(lvl_nodes, child_idx, states, child_mask, wq, wk, wv, wo, bo):
    num_levels, lmax = lvl_nodes.shape
    np1, _, h = states.shape
    c = child_idx.shape[1]
    grid_spec = pltpu.PrefetchScalarGridSpec(
        num_scalar_prefetch=2,
        grid=(num_levels,),
        in_specs=[
            pl.BlockSpec((np1, 1, h), lambda l, *_: (0, 0, 0)),   # states_in
            pl.BlockSpec((1, lmax, c), lambda l, *_: (l, 0, 0)),  # per-level mask
            _weight_spec(h), _weight_spec(h), _weight_spec(h), _weight_spec(h),
            pl.BlockSpec((1, h), lambda l, *_: (0, 0)),           # bias
        ],
        out_specs=pl.BlockSpec((np1, 1, h), lambda l, *_: (0, 0, 0)),
        scratch_shapes=[
            pltpu.VMEM((lmax, h), jnp.float32),
            pltpu.VMEM((lmax * c, h), jnp.float32),
        ],
    )
    return pl.pallas_call(
        bu_fused_kernel,
        out_shape=jax.ShapeDtypeStruct((np1, 1, h), jnp.float32),
        grid_spec=grid_spec,
        compiler_params=pltpu.CompilerParams(
            dimension_semantics=("arbitrary",)),    # levels are sequential
    )(lvl_nodes, child_idx, states, child_mask, wq, wk, wv, wo, bo)


@jax.jit
def top_down_pass(lvl_nodes, child_idx, states, child_mask, wr, wa, wu, bias):
    num_levels, lmax = lvl_nodes.shape
    np1, _, h = states.shape
    c = child_idx.shape[1]
    grid_spec = pltpu.PrefetchScalarGridSpec(
        num_scalar_prefetch=2,
        grid=(num_levels,),
        in_specs=[
            pl.BlockSpec((np1, 1, h), lambda l, *_: (0, 0, 0)),
            pl.BlockSpec((1, lmax, c), lambda l, *_: (l, 0, 0)),
            _weight_spec(h), _weight_spec(h), _weight_spec(h),
            pl.BlockSpec((1, h), lambda l, *_: (0, 0)),
        ],
        out_specs=pl.BlockSpec((np1, 1, h), lambda l, *_: (0, 0, 0)),
        scratch_shapes=[
            pltpu.VMEM((lmax, h), jnp.float32),
            pltpu.VMEM((lmax * c, h), jnp.float32),
        ],
    )
    return pl.pallas_call(
        td_fused_kernel,
        out_shape=jax.ShapeDtypeStruct((np1, 1, h), jnp.float32),
        grid_spec=grid_spec,
        compiler_params=pltpu.CompilerParams(
            dimension_semantics=("arbitrary",)),
    )(lvl_nodes, child_idx, states, child_mask, wr, wa, wu, bias)


# ---------------------------------------------------------------------------
# Host-side tree tables (built once per tree; pure Python / numpy)
# ---------------------------------------------------------------------------
def build_tree_tables(children, root, num_nodes, c_max):
    assert all(len(v) <= c_max for v in children.values()), "increase C_MAX"
    # BFS to assign depths + BFS order within each level
    depth = {root: 0}
    levels = []
    q = deque([root])
    while q:
        n = q.popleft()
        d = depth[n]
        while len(levels) <= d:
            levels.append([])
        levels[d].append(n)
        for ch in children.get(n, []):
            depth[ch] = d + 1
            q.append(ch)

    width = max(len(lv) for lv in levels)
    lmax = max(8, -(-width // 8) * 8)          # pad level width to sublane mult.
    trash = num_nodes                          # extra "trash" state row

    n_levels = len(levels)
    lvl_td = np.full((n_levels, lmax), trash, dtype=np.int32)
    mask_td = np.zeros((n_levels, lmax, c_max), dtype=np.float32)
    for d, lv in enumerate(levels):
        for j, n in enumerate(lv):
            lvl_td[d, j] = n
            nc = len(children.get(n, []))
            mask_td[d, j, :nc] = 1.0

    lvl_bu = lvl_td[::-1].copy()               # deepest level first
    mask_bu = mask_td[::-1].copy()

    child_idx = np.full((num_nodes + 1, c_max), trash, dtype=np.int32)
    for n in range(num_nodes):
        for ci, ch in enumerate(children.get(n, [])):
            child_idx[n, ci] = ch

    return (jnp.asarray(lvl_td), jnp.asarray(mask_td),
            jnp.asarray(lvl_bu), jnp.asarray(mask_bu),
            jnp.asarray(child_idx))


# ---------------------------------------------------------------------------
# Module wrapper (same traversal semantics as the original DRNet)
# ---------------------------------------------------------------------------
class DynamicRecursiveNetwork:
    def __init__(self, params, direction="B2T"):
        self.params = params
        self.direction = direction
        self.trans = {"B2T": self.b2t, "T2B": self.t2b,
                      "T": self.just_t, "B": self.just_b}

    def _bu(self, s, t):
        p = self.params
        return bottom_up_pass(t["lvl_bu"], t["child_idx"], s, t["mask_bu"],
                              p["Wq"], p["Wk"], p["Wv"], p["Wo"], p["bo"])

    def _td(self, s, t):
        p = self.params
        return top_down_pass(t["lvl_td"], t["child_idx"], s, t["mask_td"],
                             p["Wr"], p["Wa"], p["Wu"], p["bu"])

    def b2t(self, s, t):
        return self._td(self._bu(s, t), t)

    def t2b(self, s, t):
        return self._bu(self._td(s, t), t)

    def just_t(self, s, t):
        return self._td(s, t)

    def just_b(self, s, t):
        return self._bu(s, t)

    def forward(self, graph):
        assert graph is not None, "[Error] Tree model's input graph is None type!"
        emb = graph["embeddings"].astype(jnp.float32)
        n, h = emb.shape
        lvl_td, mask_td, lvl_bu, mask_bu, child_idx = build_tree_tables(
            graph["children"], graph["root"], n, C_MAX)
        tables = dict(lvl_td=lvl_td, mask_td=mask_td,
                      lvl_bu=lvl_bu, mask_bu=mask_bu, child_idx=child_idx)
        # node states + one trailing "trash" row, layout [N+1, 1, H] so dynamic
        # indexing stays on the (untiled) leading dimension inside the kernels
        states = jnp.concatenate([emb, jnp.zeros((1, h), jnp.float32)], axis=0)
        states = states.reshape(n + 1, 1, h)
        states = self.trans[self.direction](states, tables)
        return states.reshape(n + 1, h)[:n]


# ---------------------------------------------------------------------------
# Deterministic parameter init + example run
# ---------------------------------------------------------------------------
def init_params(key):
    keys = jax.random.split(key, 7)
    scale = 1.0 / math.sqrt(H)

    def w(k):  # bf16 weights for the MXU; biases stay f32
        return (jax.random.normal(k, (H, H), jnp.float32) * scale).astype(jnp.bfloat16)

    return dict(
        # AttentionModule (bottom-up)
        Wq=w(keys[0]), Wk=w(keys[1]), Wv=w(keys[2]), Wo=w(keys[3]),
        bo=jnp.zeros((1, H), jnp.float32),
        # DynamicRoutingModule (top-down)
        Wr=w(keys[4]), Wa=w(keys[5]), Wu=w(keys[6]),
        bu=jnp.zeros((1, H), jnp.float32),
    )


if __name__ == "__main__":
    key = jax.random.PRNGKey(0)
    k_param, k_emb = jax.random.split(key)

    params = init_params(k_param)

    # small binary parse tree: 7 nodes, root=0
    #        0
    #      /   \
    #     1     2
    #    / \   / \
    #   3   4 5   6
    num_nodes = 7
    children = {0: [1, 2], 1: [3, 4], 2: [5, 6], 3: [], 4: [], 5: [], 6: []}
    embeddings = jax.random.normal(k_emb, (num_nodes, H), jnp.float32) * 0.1

    graph = {"root": 0, "children": children, "embeddings": embeddings}

    model = DynamicRecursiveNetwork(params, direction="B2T")
    out = model.forward(graph)
    out = jax.block_until_ready(out)

    assert out.shape == (num_nodes, H)
    assert bool(jnp.all(jnp.isfinite(out)))
    print("KERNEL_OK")
</pallas_src>

<mosaic_0001>
module attributes {stable_mosaic.version = 11 : i64} {
  func.func @bu_fused_kernel(%arg0: i32, %arg1: memref<3x8xi32, #tpu.memory_space<smem>>, %arg2: memref<8x8xi32, #tpu.memory_space<smem>>, %arg3: memref<8x1x128xf32, #tpu.memory_space<vmem>>, %arg4: memref<1x8x8xf32, #tpu.memory_space<vmem>>, %arg5: memref<128x128xbf16, #tpu.memory_space<vmem>>, %arg6: memref<128x128xbf16, #tpu.memory_space<vmem>>, %arg7: memref<128x128xbf16, #tpu.memory_space<vmem>>, %arg8: memref<128x128xbf16, #tpu.memory_space<vmem>>, %arg9: memref<1x128xf32, #tpu.memory_space<vmem>>, %arg10: memref<8x1x128xf32, #tpu.memory_space<vmem>>, %arg11: memref<8x128xf32, #tpu.memory_space<vmem>>, %arg12: memref<64x128xf32, #tpu.memory_space<vmem>>) attributes {dimension_semantics = [#tpu.dimension_semantics<arbitrary>], iteration_bounds = array<i64: 3>, scalar_prefetch = 2 : i64, scratch_operands = 2 : i64, tpu.core_type = #tpu.core_type<tc>, window_params = [{pipeline_mode = #tpu.pipeline_mode<synchronous>, transform_indices = @transform_0, window_bounds = array<i64: 8, 1, 128>}, {transform_indices = @transform_1, window_bounds = array<i64: 1, 8, 8>}, {pipeline_mode = #tpu.pipeline_mode<synchronous>, transform_indices = @transform_2, window_bounds = array<i64: 128, 128>}, {pipeline_mode = #tpu.pipeline_mode<synchronous>, transform_indices = @transform_3, window_bounds = array<i64: 128, 128>}, {pipeline_mode = #tpu.pipeline_mode<synchronous>, transform_indices = @transform_4, window_bounds = array<i64: 128, 128>}, {pipeline_mode = #tpu.pipeline_mode<synchronous>, transform_indices = @transform_5, window_bounds = array<i64: 128, 128>}, {pipeline_mode = #tpu.pipeline_mode<synchronous>, transform_indices = @transform_6, window_bounds = array<i64: 1, 128>}, {pipeline_mode = #tpu.pipeline_mode<synchronous>, transform_indices = @transform_7, window_bounds = array<i64: 8, 1, 128>}]} {
    %c0_i32 = arith.constant 0 : i32
    %0 = arith.cmpi eq, %arg0, %c0_i32 : i32
    %1 = arith.extui %0 : i1 to i32
    %c0_i32_0 = arith.constant 0 : i32
    %2 = arith.cmpi ne, %1, %c0_i32_0 : i32
    scf.if %2 {
      %c0_349 = arith.constant 0 : index
      %c0_350 = arith.constant 0 : index
      %c0_351 = arith.constant 0 : index
      %540 = vector.load %arg3[%c0_349, %c0_350, %c0_351] : memref<8x1x128xf32, #tpu.memory_space<vmem>>, vector<8x1x128xf32>
      %c0_352 = arith.constant 0 : index
      %c0_353 = arith.constant 0 : index
      %c0_354 = arith.constant 0 : index
      %541 = vector.load %arg10[%c0_352, %c0_353, %c0_354] : memref<8x1x128xf32, #tpu.memory_space<vmem>>, vector<8x1x128xf32>
      tpu.vector_store %arg10[%c0_352, %c0_353, %c0_354], %540 {strides = array<i32>} : memref<8x1x128xf32, #tpu.memory_space<vmem>>, vector<8x1x128xf32>,
    } else {
    }
    %3 = arith.index_cast %arg0 : i32 to index
    %c0 = arith.constant 0 : index
    %4 = memref.load %arg1[%3, %c0] : memref<3x8xi32, #tpu.memory_space<smem>>
    %5 = arith.index_cast %4 : i32 to index
    %c0_1 = arith.constant 0 : index
    %c0_2 = arith.constant 0 : index
    %6 = vector.load %arg10[%5, %c0_1, %c0_2] : memref<8x1x128xf32, #tpu.memory_space<vmem>>, vector<1x1x128xf32>
    %7 = vector.shape_cast %6 : vector<1x1x128xf32> to vector<1x128xf32>
    %c0_3 = arith.constant 0 : index
    %c0_4 = arith.constant 0 : index
    %8 = vector.load %arg11[%c0_3, %c0_4] : memref<8x128xf32, #tpu.memory_space<vmem>>, vector<1x128xf32>
    tpu.vector_store %arg11[%c0_3, %c0_4], %7 {strides = array<i32>} : memref<8x128xf32, #tpu.memory_space<vmem>>, vector<1x128xf32>,
    %9 = arith.index_cast %4 : i32 to index
    %c0_5 = arith.constant 0 : index
    %10 = memref.load %arg2[%9, %c0_5] : memref<8x8xi32, #tpu.memory_space<smem>>
    %11 = arith.index_cast %10 : i32 to index
    %c0_6 = arith.constant 0 : index
    %c0_7 = arith.constant 0 : index
    %12 = vector.load %arg10[%11, %c0_6, %c0_7] : memref<8x1x128xf32, #tpu.memory_space<vmem>>, vector<1x1x128xf32>
    %13 = vector.shape_cast %12 : vector<1x1x128xf32> to vector<1x128xf32>
    %c0_8 = arith.constant 0 : index
    %c0_9 = arith.constant 0 : index
    %14 = vector.load %arg12[%c0_8, %c0_9] : memref<64x128xf32, #tpu.memory_space<vmem>>, vector<1x128xf32>
    tpu.vector_store %arg12[%c0_8, %c0_9], %13 {strides = array<i32>} : memref<64x128xf32, #tpu.memory_space<vmem>>, vector<1x128xf32>,
    %15 = arith.index_cast %4 : i32 to index
    %c1 = arith.constant 1 : index
    %16 = memref.load %arg2[%15, %c1] : memref<8x8xi32, #tpu.memory_space<smem>>
    %17 = arith.index_cast %16 : i32 to index
    %c0_10 = arith.constant 0 : index
    %c0_11 = arith.constant 0 : index
    %18 = vector.load %arg10[%17, %c0_10, %c0_11] : memref<8x1x128xf32, #tpu.memory_space<vmem>>, vector<1x1x128xf32>
    %19 = vector.shape_cast %18 : vector<1x1x128xf32> to vector<1x128xf32>
    %c1_12 = arith.constant 1 : index
    %c0_13 = arith.constant 0 : index
    %20 = vector.load %arg12[%c1_12, %c0_13] : memref<64x128xf32, #tpu.memory_space<vmem>>, vector<1x128xf32>
    tpu.vector_store %arg12[%c1_12, %c0_13], %19 {strides = array<i32>} : memref<64x128xf32, #tpu.memory_space<vmem>>, vector<1x128xf32>,
    %21 = arith.index_cast %4 : i32 to index
    %c2 = arith.constant 2 : index
    %22 = memref.load %arg2[%21, %c2] : memref<8x8xi32, #tpu.memory_space<smem>>
    %23 = arith.index_cast %22 : i32 to index
    %c0_14 = arith.constant 0 : index
    %c0_15 = arith.constant 0 : index
    %24 = vector.load %arg10[%23, %c0_14, %c0_15] : memref<8x1x128xf32, #tpu.memory_space<vmem>>, vector<1x1x128xf32>
    %25 = vector.shape_cast %24 : vector<1x1x128xf32> to vector<1x128xf32>
    %c2_16 = arith.constant 2 : index
    %c0_17 = arith.constant 0 : index
    %26 = vector.load %arg12[%c2_16, %c0_17] : memref<64x128xf32, #tpu.memory_space<vmem>>, vector<1x128xf32>
    tpu.vector_store %arg12[%c2_16, %c0_17], %25 {strides = array<i32>} : memref<64x128xf32, #tpu.memory_space<vmem>>, vector<1x128xf32>,
    %27 = arith.index_cast %4 : i32 to index
    %c3 = arith.constant 3 : index
    %28 = memref.load %arg2[%27, %c3] : memref<8x8xi32, #tpu.memory_space<smem>>
    %29 = arith.index_cast %28 : i32 to index
    %c0_18 = arith.constant 0 : index
    %c0_19 = arith.constant 0 : index
    %30 = vector.load %arg10[%29, %c0_18, %c0_19] : memref<8x1x128xf32, #tpu.memory_space<vmem>>, vector<1x1x128xf32>
    %31 = vector.shape_cast %30 : vector<1x1x128xf32> to vector<1x128xf32>
    %c3_20 = arith.constant 3 : index
    %c0_21 = arith.constant 0 : index
    %32 = vector.load %arg12[%c3_20, %c0_21] : memref<64x128xf32, #tpu.memory_space<vmem>>, vector<1x128xf32>
    tpu.vector_store %arg12[%c3_20, %c0_21], %31 {strides = array<i32>} : memref<64x128xf32, #tpu.memory_space<vmem>>, vector<1x128xf32>,
    %33 = arith.index_cast %4 : i32 to index
    %c4 = arith.constant 4 : index
    %34 = memref.load %arg2[%33, %c4] : memref<8x8xi32, #tpu.memory_space<smem>>
    %35 = arith.index_cast %34 : i32 to index
    %c0_22 = arith.constant 0 : index
    %c0_23 = arith.constant 0 : index
    %36 = vector.load %arg10[%35, %c0_22, %c0_23] : memref<8x1x128xf32, #tpu.memory_space<vmem>>, vector<1x1x128xf32>
    %37 = vector.shape_cast %36 : vector<1x1x128xf32> to vector<1x128xf32>
    %c4_24 = arith.constant 4 : index
    %c0_25 = arith.constant 0 : index
    %38 = vector.load %arg12[%c4_24, %c0_25] : memref<64x128xf32, #tpu.memory_space<vmem>>, vector<1x128xf32>
    tpu.vector_store %arg12[%c4_24, %c0_25], %37 {strides = array<i32>} : memref<64x128xf32, #tpu.memory_space<vmem>>, vector<1x128xf32>,
    %39 = arith.index_cast %4 : i32 to index
    %c5 = arith.constant 5 : index
    %40 = memref.load %arg2[%39, %c5] : memref<8x8xi32, #tpu.memory_space<smem>>
    %41 = arith.index_cast %40 : i32 to index
    %c0_26 = arith.constant 0 : index
    %c0_27 = arith.constant 0 : index
    %42 = vector.load %arg10[%41, %c0_26, %c0_27] : memref<8x1x128xf32, #tpu.memory_space<vmem>>, vector<1x1x128xf32>
    %43 = vector.shape_cast %42 : vector<1x1x128xf32> to vector<1x128xf32>
    %c5_28 = arith.constant 5 : index
    %c0_29 = arith.constant 0 : index
    %44 = vector.load %arg12[%c5_28, %c0_29] : memref<64x128xf32, #tpu.memory_space<vmem>>, vector<1x128xf32>
    tpu.vector_store %arg12[%c5_28, %c0_29], %43 {strides = array<i32>} : memref<64x128xf32, #tpu.memory_space<vmem>>, vector<1x128xf32>,
    %45 = arith.index_cast %4 : i32 to index
    %c6 = arith.constant 6 : index
    %46 = memref.load %arg2[%45, %c6] : memref<8x8xi32, #tpu.memory_space<smem>>
    %47 = arith.index_cast %46 : i32 to index
    %c0_30 = arith.constant 0 : index
    %c0_31 = arith.constant 0 : index
    %48 = vector.load %arg10[%47, %c0_30, %c0_31] : memref<8x1x128xf32, #tpu.memory_space<vmem>>, vector<1x1x128xf32>
    %49 = vector.shape_cast %48 : vector<1x1x128xf32> to vector<1x128xf32>
    %c6_32 = arith.constant 6 : index
    %c0_33 = arith.constant 0 : index
    %50 = vector.load %arg12[%c6_32, %c0_33] : memref<64x128xf32, #tpu.memory_space<vmem>>, vector<1x128xf32>
    tpu.vector_store %arg12[%c6_32, %c0_33], %49 {strides = array<i32>} : memref<64x128xf32, #tpu.memory_space<vmem>>, vector<1x128xf32>,
    %51 = arith.index_cast %4 : i32 to index
    %c7 = arith.constant 7 : index
    %52 = memref.load %arg2[%51, %c7] : memref<8x8xi32, #tpu.memory_space<smem>>
    %53 = arith.index_cast %52 : i32 to index
    %c0_34 = arith.constant 0 : index
    %c0_35 = arith.constant 0 : index
    %54 = vector.load %arg10[%53, %c0_34, %c0_35] : memref<8x1x128xf32, #tpu.memory_space<vmem>>, vector<1x1x128xf32>
    %55 = vector.shape_cast %54 : vector<1x1x128xf32> to vector<1x128xf32>
    %c7_36 = arith.constant 7 : index
    %c0_37 = arith.constant 0 : index
    %56 = vector.load %arg12[%c7_36, %c0_37] : memref<64x128xf32, #tpu.memory_space<vmem>>, vector<1x128xf32>
    tpu.vector_store %arg12[%c7_36, %c0_37], %55 {strides = array<i32>} : memref<64x128xf32, #tpu.memory_space<vmem>>, vector<1x128xf32>,
    %57 = arith.index_cast %arg0 : i32 to index
    %c1_38 = arith.constant 1 : index
    %58 = memref.load %arg1[%57, %c1_38] : memref<3x8xi32, #tpu.memory_space<smem>>
    %59 = arith.index_cast %58 : i32 to index
    %c0_39 = arith.constant 0 : index
    %c0_40 = arith.constant 0 : index
    %60 = vector.load %arg10[%59, %c0_39, %c0_40] : memref<8x1x128xf32, #tpu.memory_space<vmem>>, vector<1x1x128xf32>
    %61 = vector.shape_cast %60 : vector<1x1x128xf32> to vector<1x128xf32>
    %c1_41 = arith.constant 1 : index
    %c0_42 = arith.constant 0 : index
    %62 = vector.load %arg11[%c1_41, %c0_42] : memref<8x128xf32, #tpu.memory_space<vmem>>, vector<1x128xf32>
    tpu.vector_store %arg11[%c1_41, %c0_42], %61 {strides = array<i32>} : memref<8x128xf32, #tpu.memory_space<vmem>>, vector<1x128xf32>,
    %63 = arith.index_cast %58 : i32 to index
    %c0_43 = arith.constant 0 : index
    %64 = memref.load %arg2[%63, %c0_43] : memref<8x8xi32, #tpu.memory_space<smem>>
    %65 = arith.index_cast %64 : i32 to index
    %c0_44 = arith.constant 0 : index
    %c0_45 = arith.constant 0 : index
    %66 = vector.load %arg10[%65, %c0_44, %c0_45] : memref<8x1x128xf32, #tpu.memory_space<vmem>>, vector<1x1x128xf32>
    %67 = vector.shape_cast %66 : vector<1x1x128xf32> to vector<1x128xf32>
    %c8 = arith.constant 8 : index
    %c0_46 = arith.constant 0 : index
    %68 = vector.load %arg12[%c8, %c0_46] : memref<64x128xf32, #tpu.memory_space<vmem>>, vector<1x128xf32>
    tpu.vector_store %arg12[%c8, %c0_46], %67 {strides = array<i32>} : memref<64x128xf32, #tpu.memory_space<vmem>>, vector<1x128xf32>,
    %69 = arith.index_cast %58 : i32 to index
    %c1_47 = arith.constant 1 : index
    %70 = memref.load %arg2[%69, %c1_47] : memref<8x8xi32, #tpu.memory_space<smem>>
    %71 = arith.index_cast %70 : i32 to index
    %c0_48 = arith.constant 0 : index
    %c0_49 = arith.constant 0 : index
    %72 = vector.load %arg10[%71, %c0_48, %c0_49] : memref<8x1x128xf32, #tpu.memory_space<vmem>>, vector<1x1x128xf32>
    %73 = vector.shape_cast %72 : vector<1x1x128xf32> to vector<1x128xf32>
    %c9 = arith.constant 9 : index
    %c0_50 = arith.constant 0 : index
    %74 = vector.load %arg12[%c9, %c0_50] : memref<64x128xf32, #tpu.memory_space<vmem>>, vector<1x128xf32>
    tpu.vector_store %arg12[%c9, %c0_50], %73 {strides = array<i32>} : memref<64x128xf32, #tpu.memory_space<vmem>>, vector<1x128xf32>,
    %75 = arith.index_cast %58 : i32 to index
    %c2_51 = arith.constant 2 : index
    %76 = memref.load %arg2[%75, %c2_51] : memref<8x8xi32, #tpu.memory_space<smem>>
    %77 = arith.index_cast %76 : i32 to index
    %c0_52 = arith.constant 0 : index
    %c0_53 = arith.constant 0 : index
    %78 = vector.load %arg10[%77, %c0_52, %c0_53] : memref<8x1x128xf32, #tpu.memory_space<vmem>>, vector<1x1x128xf32>
    %79 = vector.shape_cast %78 : vector<1x1x128xf32> to vector<1x128xf32>
    %c10 = arith.constant 10 : index
    %c0_54 = arith.constant 0 : index
    %80 = vector.load %arg12[%c10, %c0_54] : memref<64x128xf32, #tpu.memory_space<vmem>>, vector<1x128xf32>
    tpu.vector_store %arg12[%c10, %c0_54], %79 {strides = array<i32>} : memref<64x128xf32, #tpu.memory_space<vmem>>, vector<1x128xf32>,
    %81 = arith.index_cast %58 : i32 to index
    %c3_55 = arith.constant 3 : index
    %82 = memref.load %arg2[%81, %c3_55] : memref<8x8xi32, #tpu.memory_space<smem>>
    %83 = arith.index_cast %82 : i32 to index
    %c0_56 = arith.constant 0 : index
    %c0_57 = arith.constant 0 : index
    %84 = vector.load %arg10[%83, %c0_56, %c0_57] : memref<8x1x128xf32, #tpu.memory_space<vmem>>, vector<1x1x128xf32>
    %85 = vector.shape_cast %84 : vector<1x1x128xf32> to vector<1x128xf32>
    %c11 = arith.constant 11 : index
    %c0_58 = arith.constant 0 : index
    %86 = vector.load %arg12[%c11, %c0_58] : memref<64x128xf32, #tpu.memory_space<vmem>>, vector<1x128xf32>
    tpu.vector_store %arg12[%c11, %c0_58], %85 {strides = array<i32>} : memref<64x128xf32, #tpu.memory_space<vmem>>, vector<1x128xf32>,
    %87 = arith.index_cast %58 : i32 to index
    %c4_59 = arith.constant 4 : index
    %88 = memref.load %arg2[%87, %c4_59] : memref<8x8xi32, #tpu.memory_space<smem>>
    %89 = arith.index_cast %88 : i32 to index
    %c0_60 = arith.constant 0 : index
    %c0_61 = arith.constant 0 : index
    %90 = vector.load %arg10[%89, %c0_60, %c0_61] : memref<8x1x128xf32, #tpu.memory_space<vmem>>, vector<1x1x128xf32>
    %91 = vector.shape_cast %90 : vector<1x1x128xf32> to vector<1x128xf32>
    %c12 = arith.constant 12 : index
    %c0_62 = arith.constant 0 : index
    %92 = vector.load %arg12[%c12, %c0_62] : memref<64x128xf32, #tpu.memory_space<vmem>>, vector<1x128xf32>
    tpu.vector_store %arg12[%c12, %c0_62], %91 {strides = array<i32>} : memref<64x128xf32, #tpu.memory_space<vmem>>, vector<1x128xf32>,
    %93 = arith.index_cast %58 : i32 to index
    %c5_63 = arith.constant 5 : index
    %94 = memref.load %arg2[%93, %c5_63] : memref<8x8xi32, #tpu.memory_space<smem>>
    %95 = arith.index_cast %94 : i32 to index
    %c0_64 = arith.constant 0 : index
    %c0_65 = arith.constant 0 : index
    %96 = vector.load %arg10[%95, %c0_64, %c0_65] : memref<8x1x128xf32, #tpu.memory_space<vmem>>, vector<1x1x128xf32>
    %97 = vector.shape_cast %96 : vector<1x1x128xf32> to vector<1x128xf32>
    %c13 = arith.constant 13 : index
    %c0_66 = arith.constant 0 : index
    %98 = vector.load %arg12[%c13, %c0_66] : memref<64x128xf32, #tpu.memory_space<vmem>>, vector<1x128xf32>
    tpu.vector_store %arg12[%c13, %c0_66], %97 {strides = array<i32>} : memref<64x128xf32, #tpu.memory_space<vmem>>, vector<1x128xf32>,
    %99 = arith.index_cast %58 : i32 to index
    %c6_67 = arith.constant 6 : index
    %100 = memref.load %arg2[%99, %c6_67] : memref<8x8xi32, #tpu.memory_space<smem>>
    %101 = arith.index_cast %100 : i32 to index
    %c0_68 = arith.constant 0 : index
    %c0_69 = arith.constant 0 : index
    %102 = vector.load %arg10[%101, %c0_68, %c0_69] : memref<8x1x128xf32, #tpu.memory_space<vmem>>, vector<1x1x128xf32>
    %103 = vector.shape_cast %102 : vector<1x1x128xf32> to vector<1x128xf32>
    %c14 = arith.constant 14 : index
    %c0_70 = arith.constant 0 : index
    %104 = vector.load %arg12[%c14, %c0_70] : memref<64x128xf32, #tpu.memory_space<vmem>>, vector<1x128xf32>
    tpu.vector_store %arg12[%c14, %c0_70], %103 {strides = array<i32>} : memref<64x128xf32, #tpu.memory_space<vmem>>, vector<1x128xf32>,
    %105 = arith.index_cast %58 : i32 to index
    %c7_71 = arith.constant 7 : index
    %106 = memref.load %arg2[%105, %c7_71] : memref<8x8xi32, #tpu.memory_space<smem>>
    %107 = arith.index_cast %106 : i32 to index
    %c0_72 = arith.constant 0 : index
    %c0_73 = arith.constant 0 : index
    %108 = vector.load %arg10[%107, %c0_72, %c0_73] : memref<8x1x128xf32, #tpu.memory_space<vmem>>, vector<1x1x128xf32>
    %109 = vector.shape_cast %108 : vector<1x1x128xf32> to vector<1x128xf32>
    %c15 = arith.constant 15 : index
    %c0_74 = arith.constant 0 : index
    %110 = vector.load %arg12[%c15, %c0_74] : memref<64x128xf32, #tpu.memory_space<vmem>>, vector<1x128xf32>
    tpu.vector_store %arg12[%c15, %c0_74], %109 {strides = array<i32>} : memref<64x128xf32, #tpu.memory_space<vmem>>, vector<1x128xf32>,
    %111 = arith.index_cast %arg0 : i32 to index
    %c2_75 = arith.constant 2 : index
    %112 = memref.load %arg1[%111, %c2_75] : memref<3x8xi32, #tpu.memory_space<smem>>
    %113 = arith.index_cast %112 : i32 to index
    %c0_76 = arith.constant 0 : index
    %c0_77 = arith.constant 0 : index
    %114 = vector.load %arg10[%113, %c0_76, %c0_77] : memref<8x1x128xf32, #tpu.memory_space<vmem>>, vector<1x1x128xf32>
    %115 = vector.shape_cast %114 : vector<1x1x128xf32> to vector<1x128xf32>
    %c2_78 = arith.constant 2 : index
    %c0_79 = arith.constant 0 : index
    %116 = vector.load %arg11[%c2_78, %c0_79] : memref<8x128xf32, #tpu.memory_space<vmem>>, vector<1x128xf32>
    tpu.vector_store %arg11[%c2_78, %c0_79], %115 {strides = array<i32>} : memref<8x128xf32, #tpu.memory_space<vmem>>, vector<1x128xf32>,
    %117 = arith.index_cast %112 : i32 to index
    %c0_80 = arith.constant 0 : index
    %118 = memref.load %arg2[%117, %c0_80] : memref<8x8xi32, #tpu.memory_space<smem>>
    %119 = arith.index_cast %118 : i32 to index
    %c0_81 = arith.constant 0 : index
    %c0_82 = arith.constant 0 : index
    %120 = vector.load %arg10[%119, %c0_81, %c0_82] : memref<8x1x128xf32, #tpu.memory_space<vmem>>, vector<1x1x128xf32>
    %121 = vector.shape_cast %120 : vector<1x1x128xf32> to vector<1x128xf32>
    %c16 = arith.constant 16 : index
    %c0_83 = arith.constant 0 : index
    %122 = vector.load %arg12[%c16, %c0_83] : memref<64x128xf32, #tpu.memory_space<vmem>>, vector<1x128xf32>
    tpu.vector_store %arg12[%c16, %c0_83], %121 {strides = array<i32>} : memref<64x128xf32, #tpu.memory_space<vmem>>, vector<1x128xf32>,
    %123 = arith.index_cast %112 : i32 to index
    %c1_84 = arith.constant 1 : index
    %124 = memref.load %arg2[%123, %c1_84] : memref<8x8xi32, #tpu.memory_space<smem>>
    %125 = arith.index_cast %124 : i32 to index
    %c0_85 = arith.constant 0 : index
    %c0_86 = arith.constant 0 : index
    %126 = vector.load %arg10[%125, %c0_85, %c0_86] : memref<8x1x128xf32, #tpu.memory_space<vmem>>, vector<1x1x128xf32>
    %127 = vector.shape_cast %126 : vector<1x1x128xf32> to vector<1x128xf32>
    %c17 = arith.constant 17 : index
    %c0_87 = arith.constant 0 : index
    %128 = vector.load %arg12[%c17, %c0_87] : memref<64x128xf32, #tpu.memory_space<vmem>>, vector<1x128xf32>
    tpu.vector_store %arg12[%c17, %c0_87], %127 {strides = array<i32>} : memref<64x128xf32, #tpu.memory_space<vmem>>, vector<1x128xf32>,
    %129 = arith.index_cast %112 : i32 to index
    %c2_88 = arith.constant 2 : index
    %130 = memref.load %arg2[%129, %c2_88] : memref<8x8xi32, #tpu.memory_space<smem>>
    %131 = arith.index_cast %130 : i32 to index
    %c0_89 = arith.constant 0 : index
    %c0_90 = arith.constant 0 : index
    %132 = vector.load %arg10[%131, %c0_89, %c0_90] : memref<8x1x128xf32, #tpu.memory_space<vmem>>, vector<1x1x128xf32>
    %133 = vector.shape_cast %132 : vector<1x1x128xf32> to vector<1x128xf32>
    %c18 = arith.constant 18 : index
    %c0_91 = arith.constant 0 : index
    %134 = vector.load %arg12[%c18, %c0_91] : memref<64x128xf32, #tpu.memory_space<vmem>>, vector<1x128xf32>
    tpu.vector_store %arg12[%c18, %c0_91], %133 {strides = array<i32>} : memref<64x128xf32, #tpu.memory_space<vmem>>, vector<1x128xf32>,
    %135 = arith.index_cast %112 : i32 to index
    %c3_92 = arith.constant 3 : index
    %136 = memref.load %arg2[%135, %c3_92] : memref<8x8xi32, #tpu.memory_space<smem>>
    %137 = arith.index_cast %136 : i32 to index
    %c0_93 = arith.constant 0 : index
    %c0_94 = arith.constant 0 : index
    %138 = vector.load %arg10[%137, %c0_93, %c0_94] : memref<8x1x128xf32, #tpu.memory_space<vmem>>, vector<1x1x128xf32>
    %139 = vector.shape_cast %138 : vector<1x1x128xf32> to vector<1x128xf32>
    %c19 = arith.constant 19 : index
    %c0_95 = arith.constant 0 : index
    %140 = vector.load %arg12[%c19, %c0_95] : memref<64x128xf32, #tpu.memory_space<vmem>>, vector<1x128xf32>
    tpu.vector_store %arg12[%c19, %c0_95], %139 {strides = array<i32>} : memref<64x128xf32, #tpu.memory_space<vmem>>, vector<1x128xf32>,
    %141 = arith.index_cast %112 : i32 to index
    %c4_96 = arith.constant 4 : index
    %142 = memref.load %arg2[%141, %c4_96] : memref<8x8xi32, #tpu.memory_space<smem>>
    %143 = arith.index_cast %142 : i32 to index
    %c0_97 = arith.constant 0 : index
    %c0_98 = arith.constant 0 : index
    %144 = vector.load %arg10[%143, %c0_97, %c0_98] : memref<8x1x128xf32, #tpu.memory_space<vmem>>, vector<1x1x128xf32>
    %145 = vector.shape_cast %144 : vector<1x1x128xf32> to vector<1x128xf32>
    %c20 = arith.constant 20 : index
    %c0_99 = arith.constant 0 : index
    %146 = vector.load %arg12[%c20, %c0_99] : memref<64x128xf32, #tpu.memory_space<vmem>>, vector<1x128xf32>
    tpu.vector_store %arg12[%c20, %c0_99], %145 {strides = array<i32>} : memref<64x128xf32, #tpu.memory_space<vmem>>, vector<1x128xf32>,
    %147 = arith.index_cast %112 : i32 to index
    %c5_100 = arith.constant 5 : index
    %148 = memref.load %arg2[%147, %c5_100] : memref<8x8xi32, #tpu.memory_space<smem>>
    %149 = arith.index_cast %148 : i32 to index
    %c0_101 = arith.constant 0 : index
    %c0_102 = arith.constant 0 : index
    %150 = vector.load %arg10[%149, %c0_101, %c0_102] : memref<8x1x128xf32, #tpu.memory_space<vmem>>, vector<1x1x128xf32>
    %151 = vector.shape_cast %150 : vector<1x1x128xf32> to vector<1x128xf32>
    %c21 = arith.constant 21 : index
    %c0_103 = arith.constant 0 : index
    %152 = vector.load %arg12[%c21, %c0_103] : memref<64x128xf32, #tpu.memory_space<vmem>>, vector<1x128xf32>
    tpu.vector_store %arg12[%c21, %c0_103], %151 {strides = array<i32>} : memref<64x128xf32, #tpu.memory_space<vmem>>, vector<1x128xf32>,
    %153 = arith.index_cast %112 : i32 to index
    %c6_104 = arith.constant 6 : index
    %154 = memref.load %arg2[%153, %c6_104] : memref<8x8xi32, #tpu.memory_space<smem>>
    %155 = arith.index_cast %154 : i32 to index
    %c0_105 = arith.constant 0 : index
    %c0_106 = arith.constant 0 : index
    %156 = vector.load %arg10[%155, %c0_105, %c0_106] : memref<8x1x128xf32, #tpu.memory_space<vmem>>, vector<1x1x128xf32>
    %157 = vector.shape_cast %156 : vector<1x1x128xf32> to vector<1x128xf32>
    %c22 = arith.constant 22 : index
    %c0_107 = arith.constant 0 : index
    %158 = vector.load %arg12[%c22, %c0_107] : memref<64x128xf32, #tpu.memory_space<vmem>>, vector<1x128xf32>
    tpu.vector_store %arg12[%c22, %c0_107], %157 {strides = array<i32>} : memref<64x128xf32, #tpu.memory_space<vmem>>, vector<1x128xf32>,
    %159 = arith.index_cast %112 : i32 to index
    %c7_108 = arith.constant 7 : index
    %160 = memref.load %arg2[%159, %c7_108] : memref<8x8xi32, #tpu.memory_space<smem>>
    %161 = arith.index_cast %160 : i32 to index
    %c0_109 = arith.constant 0 : index
    %c0_110 = arith.constant 0 : index
    %162 = vector.load %arg10[%161, %c0_109, %c0_110] : memref<8x1x128xf32, #tpu.memory_space<vmem>>, vector<1x1x128xf32>
    %163 = vector.shape_cast %162 : vector<1x1x128xf32> to vector<1x128xf32>
    %c23 = arith.constant 23 : index
    %c0_111 = arith.constant 0 : index
    %164 = vector.load %arg12[%c23, %c0_111] : memref<64x128xf32, #tpu.memory_space<vmem>>, vector<1x128xf32>
    tpu.vector_store %arg12[%c23, %c0_111], %163 {strides = array<i32>} : memref<64x128xf32, #tpu.memory_space<vmem>>, vector<1x128xf32>,
    %165 = arith.index_cast %arg0 : i32 to index
    %c3_112 = arith.constant 3 : index
    %166 = memref.load %arg1[%165, %c3_112] : memref<3x8xi32, #tpu.memory_space<smem>>
    %167 = arith.index_cast %166 : i32 to index
    %c0_113 = arith.constant 0 : index
    %c0_114 = arith.constant 0 : index
    %168 = vector.load %arg10[%167, %c0_113, %c0_114] : memref<8x1x128xf32, #tpu.memory_space<vmem>>, vector<1x1x128xf32>
    %169 = vector.shape_cast %168 : vector<1x1x128xf32> to vector<1x128xf32>
    %c3_115 = arith.constant 3 : index
    %c0_116 = arith.constant 0 : index
    %170 = vector.load %arg11[%c3_115, %c0_116] : memref<8x128xf32, #tpu.memory_space<vmem>>, vector<1x128xf32>
    tpu.vector_store %arg11[%c3_115, %c0_116], %169 {strides = array<i32>} : memref<8x128xf32, #tpu.memory_space<vmem>>, vector<1x128xf32>,
    %171 = arith.index_cast %166 : i32 to index
    %c0_117 = arith.constant 0 : index
    %172 = memref.load %arg2[%171, %c0_117] : memref<8x8xi32, #tpu.memory_space<smem>>
    %173 = arith.index_cast %172 : i32 to index
    %c0_118 = arith.constant 0 : index
    %c0_119 = arith.constant 0 : index
    %174 = vector.load %arg10[%173, %c0_118, %c0_119] : memref<8x1x128xf32, #tpu.memory_space<vmem>>, vector<1x1x128xf32>
    %175 = vector.shape_cast %174 : vector<1x1x128xf32> to vector<1x128xf32>
    %c24 = arith.constant 24 : index
    %c0_120 = arith.constant 0 : index
    %176 = vector.load %arg12[%c24, %c0_120] : memref<64x128xf32, #tpu.memory_space<vmem>>, vector<1x128xf32>
    tpu.vector_store %arg12[%c24, %c0_120], %175 {strides = array<i32>} : memref<64x128xf32, #tpu.memory_space<vmem>>, vector<1x128xf32>,
    %177 = arith.index_cast %166 : i32 to index
    %c1_121 = arith.constant 1 : index
    %178 = memref.load %arg2[%177, %c1_121] : memref<8x8xi32, #tpu.memory_space<smem>>
    %179 = arith.index_cast %178 : i32 to index
    %c0_122 = arith.constant 0 : index
    %c0_123 = arith.constant 0 : index
    %180 = vector.load %arg10[%179, %c0_122, %c0_123] : memref<8x1x128xf32, #tpu.memory_space<vmem>>, vector<1x1x128xf32>
    %181 = vector.shape_cast %180 : vector<1x1x128xf32> to vector<1x128xf32>
    %c25 = arith.constant 25 : index
    %c0_124 = arith.constant 0 : index
    %182 = vector.load %arg12[%c25, %c0_124] : memref<64x128xf32, #tpu.memory_space<vmem>>, vector<1x128xf32>
    tpu.vector_store %arg12[%c25, %c0_124], %181 {strides = array<i32>} : memref<64x128xf32, #tpu.memory_space<vmem>>, vector<1x128xf32>,
    %183 = arith.index_cast %166 : i32 to index
    %c2_125 = arith.constant 2 : index
    %184 = memref.load %arg2[%183, %c2_125] : memref<8x8xi32, #tpu.memory_space<smem>>
    %185 = arith.index_cast %184 : i32 to index
    %c0_126 = arith.constant 0 : index
    %c0_127 = arith.constant 0 : index
    %186 = vector.load %arg10[%185, %c0_126, %c0_127] : memref<8x1x128xf32, #tpu.memory_space<vmem>>, vector<1x1x128xf32>
    %187 = vector.shape_cast %186 : vector<1x1x128xf32> to vector<1x128xf32>
    %c26 = arith.constant 26 : index
    %c0_128 = arith.constant 0 : index
    %188 = vector.load %arg12[%c26, %c0_128] : memref<64x128xf32, #tpu.memory_space<vmem>>, vector<1x128xf32>
    tpu.vector_store %arg12[%c26, %c0_128], %187 {strides = array<i32>} : memref<64x128xf32, #tpu.memory_space<vmem>>, vector<1x128xf32>,
    %189 = arith.index_cast %166 : i32 to index
    %c3_129 = arith.constant 3 : index
    %190 = memref.load %arg2[%189, %c3_129] : memref<8x8xi32, #tpu.memory_space<smem>>
    %191 = arith.index_cast %190 : i32 to index
    %c0_130 = arith.constant 0 : index
    %c0_131 = arith.constant 0 : index
    %192 = vector.load %arg10[%191, %c0_130, %c0_131] : memref<8x1x128xf32, #tpu.memory_space<vmem>>, vector<1x1x128xf32>
    %193 = vector.shape_cast %192 : vector<1x1x128xf32> to vector<1x128xf32>
    %c27 = arith.constant 27 : index
    %c0_132 = arith.constant 0 : index
    %194 = vector.load %arg12[%c27, %c0_132] : memref<64x128xf32, #tpu.memory_space<vmem>>, vector<1x128xf32>
    tpu.vector_store %arg12[%c27, %c0_132], %193 {strides = array<i32>} : memref<64x128xf32, #tpu.memory_space<vmem>>, vector<1x128xf32>,
    %195 = arith.index_cast %166 : i32 to index
    %c4_133 = arith.constant 4 : index
    %196 = memref.load %arg2[%195, %c4_133] : memref<8x8xi32, #tpu.memory_space<smem>>
    %197 = arith.index_cast %196 : i32 to index
    %c0_134 = arith.constant 0 : index
    %c0_135 = arith.constant 0 : index
    %198 = vector.load %arg10[%197, %c0_134, %c0_135] : memref<8x1x128xf32, #tpu.memory_space<vmem>>, vector<1x1x128xf32>
    %199 = vector.shape_cast %198 : vector<1x1x128xf32> to vector<1x128xf32>
    %c28 = arith.constant 28 : index
    %c0_136 = arith.constant 0 : index
    %200 = vector.load %arg12[%c28, %c0_136] : memref<64x128xf32, #tpu.memory_space<vmem>>, vector<1x128xf32>
    tpu.vector_store %arg12[%c28, %c0_136], %199 {strides = array<i32>} : memref<64x128xf32, #tpu.memory_space<vmem>>, vector<1x128xf32>,
    %201 = arith.index_cast %166 : i32 to index
    %c5_137 = arith.constant 5 : index
    %202 = memref.load %arg2[%201, %c5_137] : memref<8x8xi32, #tpu.memory_space<smem>>
    %203 = arith.index_cast %202 : i32 to index
    %c0_138 = arith.constant 0 : index
    %c0_139 = arith.constant 0 : index
    %204 = vector.load %arg10[%203, %c0_138, %c0_139] : memref<8x1x128xf32, #tpu.memory_space<vmem>>, vector<1x1x128xf32>
    %205 = vector.shape_cast %204 : vector<1x1x128xf32> to vector<1x128xf32>
    %c29 = arith.constant 29 : index
    %c0_140 = arith.constant 0 : index
    %206 = vector.load %arg12[%c29, %c0_140] : memref<64x128xf32, #tpu.memory_space<vmem>>, vector<1x128xf32>
    tpu.vector_store %arg12[%c29, %c0_140], %205 {strides = array<i32>} : memref<64x128xf32, #tpu.memory_space<vmem>>, vector<1x128xf32>,
    %207 = arith.index_cast %166 : i32 to index
    %c6_141 = arith.constant 6 : index
    %208 = memref.load %arg2[%207, %c6_141] : memref<8x8xi32, #tpu.memory_space<smem>>
    %209 = arith.index_cast %208 : i32 to index
    %c0_142 = arith.constant 0 : index
    %c0_143 = arith.constant 0 : index
    %210 = vector.load %arg10[%209, %c0_142, %c0_143] : memref<8x1x128xf32, #tpu.memory_space<vmem>>, vector<1x1x128xf32>
    %211 = vector.shape_cast %210 : vector<1x1x128xf32> to vector<1x128xf32>
    %c30 = arith.constant 30 : index
    %c0_144 = arith.constant 0 : index
    %212 = vector.load %arg12[%c30, %c0_144] : memref<64x128xf32, #tpu.memory_space<vmem>>, vector<1x128xf32>
    tpu.vector_store %arg12[%c30, %c0_144], %211 {strides = array<i32>} : memref<64x128xf32, #tpu.memory_space<vmem>>, vector<1x128xf32>,
    %213 = arith.index_cast %166 : i32 to index
    %c7_145 = arith.constant 7 : index
    %214 = memref.load %arg2[%213, %c7_145] : memref<8x8xi32, #tpu.memory_space<smem>>
    %215 = arith.index_cast %214 : i32 to index
    %c0_146 = arith.constant 0 : index
    %c0_147 = arith.constant 0 : index
    %216 = vector.load %arg10[%215, %c0_146, %c0_147] : memref<8x1x128xf32, #tpu.memory_space<vmem>>, vector<1x1x128xf32>
    %217 = vector.shape_cast %216 : vector<1x1x128xf32> to vector<1x128xf32>
    %c31 = arith.constant 31 : index
    %c0_148 = arith.constant 0 : index
    %218 = vector.load %arg12[%c31, %c0_148] : memref<64x128xf32, #tpu.memory_space<vmem>>, vector<1x128xf32>
    tpu.vector_store %arg12[%c31, %c0_148], %217 {strides = array<i32>} : memref<64x128xf32, #tpu.memory_space<vmem>>, vector<1x128xf32>,
    %219 = arith.index_cast %arg0 : i32 to index
    %c4_149 = arith.constant 4 : index
    %220 = memref.load %arg1[%219, %c4_149] : memref<3x8xi32, #tpu.memory_space<smem>>
    %221 = arith.index_cast %220 : i32 to index
    %c0_150 = arith.constant 0 : index
    %c0_151 = arith.constant 0 : index
    %222 = vector.load %arg10[%221, %c0_150, %c0_151] : memref<8x1x128xf32, #tpu.memory_space<vmem>>, vector<1x1x128xf32>
    %223 = vector.shape_cast %222 : vector<1x1x128xf32> to vector<1x128xf32>
    %c4_152 = arith.constant 4 : index
    %c0_153 = arith.constant 0 : index
    %224 = vector.load %arg11[%c4_152, %c0_153] : memref<8x128xf32, #tpu.memory_space<vmem>>, vector<1x128xf32>
    tpu.vector_store %arg11[%c4_152, %c0_153], %223 {strides = array<i32>} : memref<8x128xf32, #tpu.memory_space<vmem>>, vector<1x128xf32>,
    %225 = arith.index_cast %220 : i32 to index
    %c0_154 = arith.constant 0 : index
    %226 = memref.load %arg2[%225, %c0_154] : memref<8x8xi32, #tpu.memory_space<smem>>
    %227 = arith.index_cast %226 : i32 to index
    %c0_155 = arith.constant 0 : index
    %c0_156 = arith.constant 0 : index
    %228 = vector.load %arg10[%227, %c0_155, %c0_156] : memref<8x1x128xf32, #tpu.memory_space<vmem>>, vector<1x1x128xf32>
    %229 = vector.shape_cast %228 : vector<1x1x128xf32> to vector<1x128xf32>
    %c32 = arith.constant 32 : index
    %c0_157 = arith.constant 0 : index
    %230 = vector.load %arg12[%c32, %c0_157] : memref<64x128xf32, #tpu.memory_space<vmem>>, vector<1x128xf32>
    tpu.vector_store %arg12[%c32, %c0_157], %229 {strides = array<i32>} : memref<64x128xf32, #tpu.memory_space<vmem>>, vector<1x128xf32>,
    %231 = arith.index_cast %220 : i32 to index
    %c1_158 = arith.constant 1 : index
    %232 = memref.load %arg2[%231, %c1_158] : memref<8x8xi32, #tpu.memory_space<smem>>
    %233 = arith.index_cast %232 : i32 to index
    %c0_159 = arith.constant 0 : index
    %c0_160 = arith.constant 0 : index
    %234 = vector.load %arg10[%233, %c0_159, %c0_160] : memref<8x1x128xf32, #tpu.memory_space<vmem>>, vector<1x1x128xf32>
    %235 = vector.shape_cast %234 : vector<1x1x128xf32> to vector<1x128xf32>
    %c33 = arith.constant 33 : index
    %c0_161 = arith.constant 0 : index
    %236 = vector.load %arg12[%c33, %c0_161] : memref<64x128xf32, #tpu.memory_space<vmem>>, vector<1x128xf32>
    tpu.vector_store %arg12[%c33, %c0_161], %235 {strides = array<i32>} : memref<64x128xf32, #tpu.memory_space<vmem>>, vector<1x128xf32>,
    %237 = arith.index_cast %220 : i32 to index
    %c2_162 = arith.constant 2 : index
    %238 = memref.load %arg2[%237, %c2_162] : memref<8x8xi32, #tpu.memory_space<smem>>
    %239 = arith.index_cast %238 : i32 to index
    %c0_163 = arith.constant 0 : index
    %c0_164 = arith.constant 0 : index
    %240 = vector.load %arg10[%239, %c0_163, %c0_164] : memref<8x1x128xf32, #tpu.memory_space<vmem>>, vector<1x1x128xf32>
    %241 = vector.shape_cast %240 : vector<1x1x128xf32> to vector<1x128xf32>
    %c34 = arith.constant 34 : index
    %c0_165 = arith.constant 0 : index
    %242 = vector.load %arg12[%c34, %c0_165] : memref<64x128xf32, #tpu.memory_space<vmem>>, vector<1x128xf32>
    tpu.vector_store %arg12[%c34, %c0_165], %241 {strides = array<i32>} : memref<64x128xf32, #tpu.memory_space<vmem>>, vector<1x128xf32>,
    %243 = arith.index_cast %220 : i32 to index
    %c3_166 = arith.constant 3 : index
    %244 = memref.load %arg2[%243, %c3_166] : memref<8x8xi32, #tpu.memory_space<smem>>
    %245 = arith.index_cast %244 : i32 to index
    %c0_167 = arith.constant 0 : index
    %c0_168 = arith.constant 0 : index
    %246 = vector.load %arg10[%245, %c0_167, %c0_168] : memref<8x1x128xf32, #tpu.memory_space<vmem>>, vector<1x1x128xf32>
    %247 = vector.shape_cast %246 : vector<1x1x128xf32> to vector<1x128xf32>
    %c35 = arith.constant 35 : index
    %c0_169 = arith.constant 0 : index
    %248 = vector.load %arg12[%c35, %c0_169] : memref<64x128xf32, #tpu.memory_space<vmem>>, vector<1x128xf32>
    tpu.vector_store %arg12[%c35, %c0_169], %247 {strides = array<i32>} : memref<64x128xf32, #tpu.memory_space<vmem>>, vector<1x128xf32>,
    %249 = arith.index_cast %220 : i32 to index
    %c4_170 = arith.constant 4 : index
    %250 = memref.load %arg2[%249, %c4_170] : memref<8x8xi32, #tpu.memory_space<smem>>
    %251 = arith.index_cast %250 : i32 to index
    %c0_171 = arith.constant 0 : index
    %c0_172 = arith.constant 0 : index
    %252 = vector.load %arg10[%251, %c0_171, %c0_172] : memref<8x1x128xf32, #tpu.memory_space<vmem>>, vector<1x1x128xf32>
    %253 = vector.shape_cast %252 : vector<1x1x128xf32> to vector<1x128xf32>
    %c36 = arith.constant 36 : index
    %c0_173 = arith.constant 0 : index
    %254 = vector.load %arg12[%c36, %c0_173] : memref<64x128xf32, #tpu.memory_space<vmem>>, vector<1x128xf32>
    tpu.vector_store %arg12[%c36, %c0_173], %253 {strides = array<i32>} : memref<64x128xf32, #tpu.memory_space<vmem>>, vector<1x128xf32>,
    %255 = arith.index_cast %220 : i32 to index
    %c5_174 = arith.constant 5 : index
    %256 = memref.load %arg2[%255, %c5_174] : memref<8x8xi32, #tpu.memory_space<smem>>
    %257 = arith.index_cast %256 : i32 to index
    %c0_175 = arith.constant 0 : index
    %c0_176 = arith.constant 0 : index
    %258 = vector.load %arg10[%257, %c0_175, %c0_176] : memref<8x1x128xf32, #tpu.memory_space<vmem>>, vector<1x1x128xf32>
    %259 = vector.shape_cast %258 : vector<1x1x128xf32> to vector<1x128xf32>
    %c37 = arith.constant 37 : index
    %c0_177 = arith.constant 0 : index
    %260 = vector.load %arg12[%c37, %c0_177] : memref<64x128xf32, #tpu.memory_space<vmem>>, vector<1x128xf32>
    tpu.vector_store %arg12[%c37, %c0_177], %259 {strides = array<i32>} : memref<64x128xf32, #tpu.memory_space<vmem>>, vector<1x128xf32>,
    %261 = arith.index_cast %220 : i32 to index
    %c6_178 = arith.constant 6 : index
    %262 = memref.load %arg2[%261, %c6_178] : memref<8x8xi32, #tpu.memory_space<smem>>
    %263 = arith.index_cast %262 : i32 to index
    %c0_179 = arith.constant 0 : index
    %c0_180 = arith.constant 0 : index
    %264 = vector.load %arg10[%263, %c0_179, %c0_180] : memref<8x1x128xf32, #tpu.memory_space<vmem>>, vector<1x1x128xf32>
    %265 = vector.shape_cast %264 : vector<1x1x128xf32> to vector<1x128xf32>
    %c38 = arith.constant 38 : index
    %c0_181 = arith.constant 0 : index
    %266 = vector.load %arg12[%c38, %c0_181] : memref<64x128xf32, #tpu.memory_space<vmem>>, vector<1x128xf32>
    tpu.vector_store %arg12[%c38, %c0_181], %265 {strides = array<i32>} : memref<64x128xf32, #tpu.memory_space<vmem>>, vector<1x128xf32>,
    %267 = arith.index_cast %220 : i32 to index
    %c7_182 = arith.constant 7 : index
    %268 = memref.load %arg2[%267, %c7_182] : memref<8x8xi32, #tpu.memory_space<smem>>
    %269 = arith.index_cast %268 : i32 to index
    %c0_183 = arith.constant 0 : index
    %c0_184 = arith.constant 0 : index
    %270 = vector.load %arg10[%269, %c0_183, %c0_184] : memref<8x1x128xf32, #tpu.memory_space<vmem>>, vector<1x1x128xf32>
    %271 = vector.shape_cast %270 : vector<1x1x128xf32> to vector<1x128xf32>
    %c39 = arith.constant 39 : index
    %c0_185 = arith.constant 0 : index
    %272 = vector.load %arg12[%c39, %c0_185] : memref<64x128xf32, #tpu.memory_space<vmem>>, vector<1x128xf32>
    tpu.vector_store %arg12[%c39, %c0_185], %271 {strides = array<i32>} : memref<64x128xf32, #tpu.memory_space<vmem>>, vector<1x128xf32>,
    %273 = arith.index_cast %arg0 : i32 to index
    %c5_186 = arith.constant 5 : index
    %274 = memref.load %arg1[%273, %c5_186] : memref<3x8xi32, #tpu.memory_space<smem>>
    %275 = arith.index_cast %274 : i32 to index
    %c0_187 = arith.constant 0 : index
    %c0_188 = arith.constant 0 : index
    %276 = vector.load %arg10[%275, %c0_187, %c0_188] : memref<8x1x128xf32, #tpu.memory_space<vmem>>, vector<1x1x128xf32>
    %277 = vector.shape_cast %276 : vector<1x1x128xf32> to vector<1x128xf32>
    %c5_189 = arith.constant 5 : index
    %c0_190 = arith.constant 0 : index
    %278 = vector.load %arg11[%c5_189, %c0_190] : memref<8x128xf32, #tpu.memory_space<vmem>>, vector<1x128xf32>
    tpu.vector_store %arg11[%c5_189, %c0_190], %277 {strides = array<i32>} : memref<8x128xf32, #tpu.memory_space<vmem>>, vector<1x128xf32>,
    %279 = arith.index_cast %274 : i32 to index
    %c0_191 = arith.constant 0 : index
    %280 = memref.load %arg2[%279, %c0_191] : memref<8x8xi32, #tpu.memory_space<smem>>
    %281 = arith.index_cast %280 : i32 to index
    %c0_192 = arith.constant 0 : index
    %c0_193 = arith.constant 0 : index
    %282 = vector.load %arg10[%281, %c0_192, %c0_193] : memref<8x1x128xf32, #tpu.memory_space<vmem>>, vector<1x1x128xf32>
    %283 = vector.shape_cast %282 : vector<1x1x128xf32> to vector<1x128xf32>
    %c40 = arith.constant 40 : index
    %c0_194 = arith.constant 0 : index
    %284 = vector.load %arg12[%c40, %c0_194] : memref<64x128xf32, #tpu.memory_space<vmem>>, vector<1x128xf32>
    tpu.vector_store %arg12[%c40, %c0_194], %283 {strides = array<i32>} : memref<64x128xf32, #tpu.memory_space<vmem>>, vector<1x128xf32>,
    %285 = arith.index_cast %274 : i32 to index
    %c1_195 = arith.constant 1 : index
    %286 = memref.load %arg2[%285, %c1_195] : memref<8x8xi32, #tpu.memory_space<smem>>
    %287 = arith.index_cast %286 : i32 to index
    %c0_196 = arith.constant 0 : index
    %c0_197 = arith.constant 0 : index
    %288 = vector.load %arg10[%287, %c0_196, %c0_197] : memref<8x1x128xf32, #tpu.memory_space<vmem>>, vector<1x1x128xf32>
    %289 = vector.shape_cast %288 : vector<1x1x128xf32> to vector<1x128xf32>
    %c41 = arith.constant 41 : index
    %c0_198 = arith.constant 0 : index
    %290 = vector.load %arg12[%c41, %c0_198] : memref<64x128xf32, #tpu.memory_space<vmem>>, vector<1x128xf32>
    tpu.vector_store %arg12[%c41, %c0_198], %289 {strides = array<i32>} : memref<64x128xf32, #tpu.memory_space<vmem>>, vector<1x128xf32>,
    %291 = arith.index_cast %274 : i32 to index
    %c2_199 = arith.constant 2 : index
    %292 = memref.load %arg2[%291, %c2_199] : memref<8x8xi32, #tpu.memory_space<smem>>
    %293 = arith.index_cast %292 : i32 to index
    %c0_200 = arith.constant 0 : index
    %c0_201 = arith.constant 0 : index
    %294 = vector.load %arg10[%293, %c0_200, %c0_201] : memref<8x1x128xf32, #tpu.memory_space<vmem>>, vector<1x1x128xf32>
    %295 = vector.shape_cast %294 : vector<1x1x128xf32> to vector<1x128xf32>
    %c42 = arith.constant 42 : index
    %c0_202 = arith.constant 0 : index
    %296 = vector.load %arg12[%c42, %c0_202] : memref<64x128xf32, #tpu.memory_space<vmem>>, vector<1x128xf32>
    tpu.vector_store %arg12[%c42, %c0_202], %295 {strides = array<i32>} : memref<64x128xf32, #tpu.memory_space<vmem>>, vector<1x128xf32>,
    %297 = arith.index_cast %274 : i32 to index
    %c3_203 = arith.constant 3 : index
    %298 = memref.load %arg2[%297, %c3_203] : memref<8x8xi32, #tpu.memory_space<smem>>
    %299 = arith.index_cast %298 : i32 to index
    %c0_204 = arith.constant 0 : index
    %c0_205 = arith.constant 0 : index
    %300 = vector.load %arg10[%299, %c0_204, %c0_205] : memref<8x1x128xf32, #tpu.memory_space<vmem>>, vector<1x1x128xf32>
    %301 = vector.shape_cast %300 : vector<1x1x128xf32> to vector<1x128xf32>
    %c43 = arith.constant 43 : index
    %c0_206 = arith.constant 0 : index
    %302 = vector.load %arg12[%c43, %c0_206] : memref<64x128xf32, #tpu.memory_space<vmem>>, vector<1x128xf32>
    tpu.vector_store %arg12[%c43, %c0_206], %301 {strides = array<i32>} : memref<64x128xf32, #tpu.memory_space<vmem>>, vector<1x128xf32>,
    %303 = arith.index_cast %274 : i32 to index
    %c4_207 = arith.constant 4 : index
    %304 = memref.load %arg2[%303, %c4_207] : memref<8x8xi32, #tpu.memory_space<smem>>
    %305 = arith.index_cast %304 : i32 to index
    %c0_208 = arith.constant 0 : index
    %c0_209 = arith.constant 0 : index
    %306 = vector.load %arg10[%305, %c0_208, %c0_209] : memref<8x1x128xf32, #tpu.memory_space<vmem>>, vector<1x1x128xf32>
    %307 = vector.shape_cast %306 : vector<1x1x128xf32> to vector<1x128xf32>
    %c44 = arith.constant 44 : index
    %c0_210 = arith.constant 0 : index
    %308 = vector.load %arg12[%c44, %c0_210] : memref<64x128xf32, #tpu.memory_space<vmem>>, vector<1x128xf32>
    tpu.vector_store %arg12[%c44, %c0_210], %307 {strides = array<i32>} : memref<64x128xf32, #tpu.memory_space<vmem>>, vector<1x128xf32>,
    %309 = arith.index_cast %274 : i32 to index
    %c5_211 = arith.constant 5 : index
    %310 = memref.load %arg2[%309, %c5_211] : memref<8x8xi32, #tpu.memory_space<smem>>
    %311 = arith.index_cast %310 : i32 to index
    %c0_212 = arith.constant 0 : index
    %c0_213 = arith.constant 0 : index
    %312 = vector.load %arg10[%311, %c0_212, %c0_213] : memref<8x1x128xf32, #tpu.memory_space<vmem>>, vector<1x1x128xf32>
    %313 = vector.shape_cast %312 : vector<1x1x128xf32> to vector<1x128xf32>
    %c45 = arith.constant 45 : index
    %c0_214 = arith.constant 0 : index
    %314 = vector.load %arg12[%c45, %c0_214] : memref<64x128xf32, #tpu.memory_space<vmem>>, vector<1x128xf32>
    tpu.vector_store %arg12[%c45, %c0_214], %313 {strides = array<i32>} : memref<64x128xf32, #tpu.memory_space<vmem>>, vector<1x128xf32>,
    %315 = arith.index_cast %274 : i32 to index
    %c6_215 = arith.constant 6 : index
    %316 = memref.load %arg2[%315, %c6_215] : memref<8x8xi32, #tpu.memory_space<smem>>
    %317 = arith.index_cast %316 : i32 to index
    %c0_216 = arith.constant 0 : index
    %c0_217 = arith.constant 0 : index
    %318 = vector.load %arg10[%317, %c0_216, %c0_217] : memref<8x1x128xf32, #tpu.memory_space<vmem>>, vector<1x1x128xf32>
    %319 = vector.shape_cast %318 : vector<1x1x128xf32> to vector<1x128xf32>
    %c46 = arith.constant 46 : index
    %c0_218 = arith.constant 0 : index
    %320 = vector.load %arg12[%c46, %c0_218] : memref<64x128xf32, #tpu.memory_space<vmem>>, vector<1x128xf32>
    tpu.vector_store %arg12[%c46, %c0_218], %319 {strides = array<i32>} : memref<64x128xf32, #tpu.memory_space<vmem>>, vector<1x128xf32>,
    %321 = arith.index_cast %274 : i32 to index
    %c7_219 = arith.constant 7 : index
    %322 = memref.load %arg2[%321, %c7_219] : memref<8x8xi32, #tpu.memory_space<smem>>
    %323 = arith.index_cast %322 : i32 to index
    %c0_220 = arith.constant 0 : index
    %c0_221 = arith.constant 0 : index
    %324 = vector.load %arg10[%323, %c0_220, %c0_221] : memref<8x1x128xf32, #tpu.memory_space<vmem>>, vector<1x1x128xf32>
    %325 = vector.shape_cast %324 : vector<1x1x128xf32> to vector<1x128xf32>
    %c47 = arith.constant 47 : index
    %c0_222 = arith.constant 0 : index
    %326 = vector.load %arg12[%c47, %c0_222] : memref<64x128xf32, #tpu.memory_space<vmem>>, vector<1x128xf32>
    tpu.vector_store %arg12[%c47, %c0_222], %325 {strides = array<i32>} : memref<64x128xf32, #tpu.memory_space<vmem>>, vector<1x128xf32>,
    %327 = arith.index_cast %arg0 : i32 to index
    %c6_223 = arith.constant 6 : index
    %328 = memref.load %arg1[%327, %c6_223] : memref<3x8xi32, #tpu.memory_space<smem>>
    %329 = arith.index_cast %328 : i32 to index
    %c0_224 = arith.constant 0 : index
    %c0_225 = arith.constant 0 : index
    %330 = vector.load %arg10[%329, %c0_224, %c0_225] : memref<8x1x128xf32, #tpu.memory_space<vmem>>, vector<1x1x128xf32>
    %331 = vector.shape_cast %330 : vector<1x1x128xf32> to vector<1x128xf32>
    %c6_226 = arith.constant 6 : index
    %c0_227 = arith.constant 0 : index
    %332 = vector.load %arg11[%c6_226, %c0_227] : memref<8x128xf32, #tpu.memory_space<vmem>>, vector<1x128xf32>
    tpu.vector_store %arg11[%c6_226, %c0_227], %331 {strides = array<i32>} : memref<8x128xf32, #tpu.memory_space<vmem>>, vector<1x128xf32>,
    %333 = arith.index_cast %328 : i32 to index
    %c0_228 = arith.constant 0 : index
    %334 = memref.load %arg2[%333, %c0_228] : memref<8x8xi32, #tpu.memory_space<smem>>
    %335 = arith.index_cast %334 : i32 to index
    %c0_229 = arith.constant 0 : index
    %c0_230 = arith.constant 0 : index
    %336 = vector.load %arg10[%335, %c0_229, %c0_230] : memref<8x1x128xf32, #tpu.memory_space<vmem>>, vector<1x1x128xf32>
    %337 = vector.shape_cast %336 : vector<1x1x128xf32> to vector<1x128xf32>
    %c48 = arith.constant 48 : index
    %c0_231 = arith.constant 0 : index
    %338 = vector.load %arg12[%c48, %c0_231] : memref<64x128xf32, #tpu.memory_space<vmem>>, vector<1x128xf32>
    tpu.vector_store %arg12[%c48, %c0_231], %337 {strides = array<i32>} : memref<64x128xf32, #tpu.memory_space<vmem>>, vector<1x128xf32>,
    %339 = arith.index_cast %328 : i32 to index
    %c1_232 = arith.constant 1 : index
    %340 = memref.load %arg2[%339, %c1_232] : memref<8x8xi32, #tpu.memory_space<smem>>
    %341 = arith.index_cast %340 : i32 to index
    %c0_233 = arith.constant 0 : index
    %c0_234 = arith.constant 0 : index
    %342 = vector.load %arg10[%341, %c0_233, %c0_234] : memref<8x1x128xf32, #tpu.memory_space<vmem>>, vector<1x1x128xf32>
    %343 = vector.shape_cast %342 : vector<1x1x128xf32> to vector<1x128xf32>
    %c49 = arith.constant 49 : index
    %c0_235 = arith.constant 0 : index
    %344 = vector.load %arg12[%c49, %c0_235] : memref<64x128xf32, #tpu.memory_space<vmem>>, vector<1x128xf32>
    tpu.vector_store %arg12[%c49, %c0_235], %343 {strides = array<i32>} : memref<64x128xf32, #tpu.memory_space<vmem>>, vector<1x128xf32>,
    %345 = arith.index_cast %328 : i32 to index
    %c2_236 = arith.constant 2 : index
    %346 = memref.load %arg2[%345, %c2_236] : memref<8x8xi32, #tpu.memory_space<smem>>
    %347 = arith.index_cast %346 : i32 to index
    %c0_237 = arith.constant 0 : index
    %c0_238 = arith.constant 0 : index
    %348 = vector.load %arg10[%347, %c0_237, %c0_238] : memref<8x1x128xf32, #tpu.memory_space<vmem>>, vector<1x1x128xf32>
    %349 = vector.shape_cast %348 : vector<1x1x128xf32> to vector<1x128xf32>
    %c50 = arith.constant 50 : index
    %c0_239 = arith.constant 0 : index
    %350 = vector.load %arg12[%c50, %c0_239] : memref<64x128xf32, #tpu.memory_space<vmem>>, vector<1x128xf32>
    tpu.vector_store %arg12[%c50, %c0_239], %349 {strides = array<i32>} : memref<64x128xf32, #tpu.memory_space<vmem>>, vector<1x128xf32>,
    %351 = arith.index_cast %328 : i32 to index
    %c3_240 = arith.constant 3 : index
    %352 = memref.load %arg2[%351, %c3_240] : memref<8x8xi32, #tpu.memory_space<smem>>
    %353 = arith.index_cast %352 : i32 to index
    %c0_241 = arith.constant 0 : index
    %c0_242 = arith.constant 0 : index
    %354 = vector.load %arg10[%353, %c0_241, %c0_242] : memref<8x1x128xf32, #tpu.memory_space<vmem>>, vector<1x1x128xf32>
    %355 = vector.shape_cast %354 : vector<1x1x128xf32> to vector<1x128xf32>
    %c51 = arith.constant 51 : index
    %c0_243 = arith.constant 0 : index
    %356 = vector.load %arg12[%c51, %c0_243] : memref<64x128xf32, #tpu.memory_space<vmem>>, vector<1x128xf32>
    tpu.vector_store %arg12[%c51, %c0_243], %355 {strides = array<i32>} : memref<64x128xf32, #tpu.memory_space<vmem>>, vector<1x128xf32>,
    %357 = arith.index_cast %328 : i32 to index
    %c4_244 = arith.constant 4 : index
    %358 = memref.load %arg2[%357, %c4_244] : memref<8x8xi32, #tpu.memory_space<smem>>
    %359 = arith.index_cast %358 : i32 to index
    %c0_245 = arith.constant 0 : index
    %c0_246 = arith.constant 0 : index
    %360 = vector.load %arg10[%359, %c0_245, %c0_246] : memref<8x1x128xf32, #tpu.memory_space<vmem>>, vector<1x1x128xf32>
    %361 = vector.shape_cast %360 : vector<1x1x128xf32> to vector<1x128xf32>
    %c52 = arith.constant 52 : index
    %c0_247 = arith.constant 0 : index
    %362 = vector.load %arg12[%c52, %c0_247] : memref<64x128xf32, #tpu.memory_space<vmem>>, vector<1x128xf32>
    tpu.vector_store %arg12[%c52, %c0_247], %361 {strides = array<i32>} : memref<64x128xf32, #tpu.memory_space<vmem>>, vector<1x128xf32>,
    %363 = arith.index_cast %328 : i32 to index
    %c5_248 = arith.constant 5 : index
    %364 = memref.load %arg2[%363, %c5_248] : memref<8x8xi32, #tpu.memory_space<smem>>
    %365 = arith.index_cast %364 : i32 to index
    %c0_249 = arith.constant 0 : index
    %c0_250 = arith.constant 0 : index
    %366 = vector.load %arg10[%365, %c0_249, %c0_250] : memref<8x1x128xf32, #tpu.memory_space<vmem>>, vector<1x1x128xf32>
    %367 = vector.shape_cast %366 : vector<1x1x128xf32> to vector<1x128xf32>
    %c53 = arith.constant 53 : index
    %c0_251 = arith.constant 0 : index
    %368 = vector.load %arg12[%c53, %c0_251] : memref<64x128xf32, #tpu.memory_space<vmem>>, vector<1x128xf32>
    tpu.vector_store %arg12[%c53, %c0_251], %367 {strides = array<i32>} : memref<64x128xf32, #tpu.memory_space<vmem>>, vector<1x128xf32>,
    %369 = arith.index_cast %328 : i32 to index
    %c6_252 = arith.constant 6 : index
    %370 = memref.load %arg2[%369, %c6_252] : memref<8x8xi32, #tpu.memory_space<smem>>
    %371 = arith.index_cast %370 : i32 to index
    %c0_253 = arith.constant 0 : index
    %c0_254 = arith.constant 0 : index
    %372 = vector.load %arg10[%371, %c0_253, %c0_254] : memref<8x1x128xf32, #tpu.memory_space<vmem>>, vector<1x1x128xf32>
    %373 = vector.shape_cast %372 : vector<1x1x128xf32> to vector<1x128xf32>
    %c54 = arith.constant 54 : index
    %c0_255 = arith.constant 0 : index
    %374 = vector.load %arg12[%c54, %c0_255] : memref<64x128xf32, #tpu.memory_space<vmem>>, vector<1x128xf32>
    tpu.vector_store %arg12[%c54, %c0_255], %373 {strides = array<i32>} : memref<64x128xf32, #tpu.memory_space<vmem>>, vector<1x128xf32>,
    %375 = arith.index_cast %328 : i32 to index
    %c7_256 = arith.constant 7 : index
    %376 = memref.load %arg2[%375, %c7_256] : memref<8x8xi32, #tpu.memory_space<smem>>
    %377 = arith.index_cast %376 : i32 to index
    %c0_257 = arith.constant 0 : index
    %c0_258 = arith.constant 0 : index
    %378 = vector.load %arg10[%377, %c0_257, %c0_258] : memref<8x1x128xf32, #tpu.memory_space<vmem>>, vector<1x1x128xf32>
    %379 = vector.shape_cast %378 : vector<1x1x128xf32> to vector<1x128xf32>
    %c55 = arith.constant 55 : index
    %c0_259 = arith.constant 0 : index
    %380 = vector.load %arg12[%c55, %c0_259] : memref<64x128xf32, #tpu.memory_space<vmem>>, vector<1x128xf32>
    tpu.vector_store %arg12[%c55, %c0_259], %379 {strides = array<i32>} : memref<64x128xf32, #tpu.memory_space<vmem>>, vector<1x128xf32>,
    %381 = arith.index_cast %arg0 : i32 to index
    %c7_260 = arith.constant 7 : index
    %382 = memref.load %arg1[%381, %c7_260] : memref<3x8xi32, #tpu.memory_space<smem>>
    %383 = arith.index_cast %382 : i32 to index
    %c0_261 = arith.constant 0 : index
    %c0_262 = arith.constant 0 : index
    %384 = vector.load %arg10[%383, %c0_261, %c0_262] : memref<8x1x128xf32, #tpu.memory_space<vmem>>, vector<1x1x128xf32>
    %385 = vector.shape_cast %384 : vector<1x1x128xf32> to vector<1x128xf32>
    %c7_263 = arith.constant 7 : index
    %c0_264 = arith.constant 0 : index
    %386 = vector.load %arg11[%c7_263, %c0_264] : memref<8x128xf32, #tpu.memory_space<vmem>>, vector<1x128xf32>
    tpu.vector_store %arg11[%c7_263, %c0_264], %385 {strides = array<i32>} : memref<8x128xf32, #tpu.memory_space<vmem>>, vector<1x128xf32>,
    %387 = arith.index_cast %382 : i32 to index
    %c0_265 = arith.constant 0 : index
    %388 = memref.load %arg2[%387, %c0_265] : memref<8x8xi32, #tpu.memory_space<smem>>
    %389 = arith.index_cast %388 : i32 to index
    %c0_266 = arith.constant 0 : index
    %c0_267 = arith.constant 0 : index
    %390 = vector.load %arg10[%389, %c0_266, %c0_267] : memref<8x1x128xf32, #tpu.memory_space<vmem>>, vector<1x1x128xf32>
    %391 = vector.shape_cast %390 : vector<1x1x128xf32> to vector<1x128xf32>
    %c56 = arith.constant 56 : index
    %c0_268 = arith.constant 0 : index
    %392 = vector.load %arg12[%c56, %c0_268] : memref<64x128xf32, #tpu.memory_space<vmem>>, vector<1x128xf32>
    tpu.vector_store %arg12[%c56, %c0_268], %391 {strides = array<i32>} : memref<64x128xf32, #tpu.memory_space<vmem>>, vector<1x128xf32>,
    %393 = arith.index_cast %382 : i32 to index
    %c1_269 = arith.constant 1 : index
    %394 = memref.load %arg2[%393, %c1_269] : memref<8x8xi32, #tpu.memory_space<smem>>
    %395 = arith.index_cast %394 : i32 to index
    %c0_270 = arith.constant 0 : index
    %c0_271 = arith.constant 0 : index
    %396 = vector.load %arg10[%395, %c0_270, %c0_271] : memref<8x1x128xf32, #tpu.memory_space<vmem>>, vector<1x1x128xf32>
    %397 = vector.shape_cast %396 : vector<1x1x128xf32> to vector<1x128xf32>
    %c57 = arith.constant 57 : index
    %c0_272 = arith.constant 0 : index
    %398 = vector.load %arg12[%c57, %c0_272] : memref<64x128xf32, #tpu.memory_space<vmem>>, vector<1x128xf32>
    tpu.vector_store %arg12[%c57, %c0_272], %397 {strides = array<i32>} : memref<64x128xf32, #tpu.memory_space<vmem>>, vector<1x128xf32>,
    %399 = arith.index_cast %382 : i32 to index
    %c2_273 = arith.constant 2 : index
    %400 = memref.load %arg2[%399, %c2_273] : memref<8x8xi32, #tpu.memory_space<smem>>
    %401 = arith.index_cast %400 : i32 to index
    %c0_274 = arith.constant 0 : index
    %c0_275 = arith.constant 0 : index
    %402 = vector.load %arg10[%401, %c0_274, %c0_275] : memref<8x1x128xf32, #tpu.memory_space<vmem>>, vector<1x1x128xf32>
    %403 = vector.shape_cast %402 : vector<1x1x128xf32> to vector<1x128xf32>
    %c58 = arith.constant 58 : index
    %c0_276 = arith.constant 0 : index
    %404 = vector.load %arg12[%c58, %c0_276] : memref<64x128xf32, #tpu.memory_space<vmem>>, vector<1x128xf32>
    tpu.vector_store %arg12[%c58, %c0_276], %403 {strides = array<i32>} : memref<64x128xf32, #tpu.memory_space<vmem>>, vector<1x128xf32>,
    %405 = arith.index_cast %382 : i32 to index
    %c3_277 = arith.constant 3 : index
    %406 = memref.load %arg2[%405, %c3_277] : memref<8x8xi32, #tpu.memory_space<smem>>
    %407 = arith.index_cast %406 : i32 to index
    %c0_278 = arith.constant 0 : index
    %c0_279 = arith.constant 0 : index
    %408 = vector.load %arg10[%407, %c0_278, %c0_279] : memref<8x1x128xf32, #tpu.memory_space<vmem>>, vector<1x1x128xf32>
    %409 = vector.shape_cast %408 : vector<1x1x128xf32> to vector<1x128xf32>
    %c59 = arith.constant 59 : index
    %c0_280 = arith.constant 0 : index
    %410 = vector.load %arg12[%c59, %c0_280] : memref<64x128xf32, #tpu.memory_space<vmem>>, vector<1x128xf32>
    tpu.vector_store %arg12[%c59, %c0_280], %409 {strides = array<i32>} : memref<64x128xf32, #tpu.memory_space<vmem>>, vector<1x128xf32>,
    %411 = arith.index_cast %382 : i32 to index
    %c4_281 = arith.constant 4 : index
    %412 = memref.load %arg2[%411, %c4_281] : memref<8x8xi32, #tpu.memory_space<smem>>
    %413 = arith.index_cast %412 : i32 to index
    %c0_282 = arith.constant 0 : index
    %c0_283 = arith.constant 0 : index
    %414 = vector.load %arg10[%413, %c0_282, %c0_283] : memref<8x1x128xf32, #tpu.memory_space<vmem>>, vector<1x1x128xf32>
    %415 = vector.shape_cast %414 : vector<1x1x128xf32> to vector<1x128xf32>
    %c60 = arith.constant 60 : index
    %c0_284 = arith.constant 0 : index
    %416 = vector.load %arg12[%c60, %c0_284] : memref<64x128xf32, #tpu.memory_space<vmem>>, vector<1x128xf32>
    tpu.vector_store %arg12[%c60, %c0_284], %415 {strides = array<i32>} : memref<64x128xf32, #tpu.memory_space<vmem>>, vector<1x128xf32>,
    %417 = arith.index_cast %382 : i32 to index
    %c5_285 = arith.constant 5 : index
    %418 = memref.load %arg2[%417, %c5_285] : memref<8x8xi32, #tpu.memory_space<smem>>
    %419 = arith.index_cast %418 : i32 to index
    %c0_286 = arith.constant 0 : index
    %c0_287 = arith.constant 0 : index
    %420 = vector.load %arg10[%419, %c0_286, %c0_287] : memref<8x1x128xf32, #tpu.memory_space<vmem>>, vector<1x1x128xf32>
    %421 = vector.shape_cast %420 : vector<1x1x128xf32> to vector<1x128xf32>
    %c61 = arith.constant 61 : index
    %c0_288 = arith.constant 0 : index
    %422 = vector.load %arg12[%c61, %c0_288] : memref<64x128xf32, #tpu.memory_space<vmem>>, vector<1x128xf32>
    tpu.vector_store %arg12[%c61, %c0_288], %421 {strides = array<i32>} : memref<64x128xf32, #tpu.memory_space<vmem>>, vector<1x128xf32>,
    %423 = arith.index_cast %382 : i32 to index
    %c6_289 = arith.constant 6 : index
    %424 = memref.load %arg2[%423, %c6_289] : memref<8x8xi32, #tpu.memory_space<smem>>
    %425 = arith.index_cast %424 : i32 to index
    %c0_290 = arith.constant 0 : index
    %c0_291 = arith.constant 0 : index
    %426 = vector.load %arg10[%425, %c0_290, %c0_291] : memref<8x1x128xf32, #tpu.memory_space<vmem>>, vector<1x1x128xf32>
    %427 = vector.shape_cast %426 : vector<1x1x128xf32> to vector<1x128xf32>
    %c62 = arith.constant 62 : index
    %c0_292 = arith.constant 0 : index
    %428 = vector.load %arg12[%c62, %c0_292] : memref<64x128xf32, #tpu.memory_space<vmem>>, vector<1x128xf32>
    tpu.vector_store %arg12[%c62, %c0_292], %427 {strides = array<i32>} : memref<64x128xf32, #tpu.memory_space<vmem>>, vector<1x128xf32>,
    %429 = arith.index_cast %382 : i32 to index
    %c7_293 = arith.constant 7 : index
    %430 = memref.load %arg2[%429, %c7_293] : memref<8x8xi32, #tpu.memory_space<smem>>
    %431 = arith.index_cast %430 : i32 to index
    %c0_294 = arith.constant 0 : index
    %c0_295 = arith.constant 0 : index
    %432 = vector.load %arg10[%431, %c0_294, %c0_295] : memref<8x1x128xf32, #tpu.memory_space<vmem>>, vector<1x1x128xf32>
    %433 = vector.shape_cast %432 : vector<1x1x128xf32> to vector<1x128xf32>
    %c63 = arith.constant 63 : index
    %c0_296 = arith.constant 0 : index
    %434 = vector.load %arg12[%c63, %c0_296] : memref<64x128xf32, #tpu.memory_space<vmem>>, vector<1x128xf32>
    tpu.vector_store %arg12[%c63, %c0_296], %433 {strides = array<i32>} : memref<64x128xf32, #tpu.memory_space<vmem>>, vector<1x128xf32>,
    %c0_297 = arith.constant 0 : index
    %c0_298 = arith.constant 0 : index
    %435 = vector.load %arg11[%c0_297, %c0_298] : memref<8x128xf32, #tpu.memory_space<vmem>>, vector<8x128xf32>
    %c0_299 = arith.constant 0 : index
    %c0_300 = arith.constant 0 : index
    %436 = vector.load %arg12[%c0_299, %c0_300] : memref<64x128xf32, #tpu.memory_space<vmem>>, vector<64x128xf32>
    %c0_301 = arith.constant 0 : index
    %c0_302 = arith.constant 0 : index
    %c0_303 = arith.constant 0 : index
    %437 = vector.load %arg4[%c0_301, %c0_302, %c0_303] : memref<1x8x8xf32, #tpu.memory_space<vmem>>, vector<1x8x8xf32>
    %438 = vector.shape_cast %437 : vector<1x8x8xf32> to vector<8x8xf32>
    %439 = arith.truncf %435 : vector<8x128xf32> to vector<8x128xbf16>
    %c0_304 = arith.constant 0 : index
    %c0_305 = arith.constant 0 : index
    %440 = vector.load %arg5[%c0_304, %c0_305] : memref<128x128xbf16, #tpu.memory_space<vmem>>, vector<128x128xbf16>
    %cst = arith.constant dense<0.000000e+00> : vector<8x128xf32>
    %441 = tpu.matmul %439, %440, %cst {dimension_numbers = #tpu.dot_dimension_numbers<[1], [0], [0], [1], [0, 0, 1, 1], [], []>} : vector<8x128xbf16>, vector<128x128xbf16>, vector<8x128xf32> -> vector<8x128xf32>
    %442 = arith.truncf %436 : vector<64x128xf32> to vector<64x128xbf16>
    %c0_306 = arith.constant 0 : index
    %c0_307 = arith.constant 0 : index
    %443 = vector.load %arg6[%c0_306, %c0_307] : memref<128x128xbf16, #tpu.memory_space<vmem>>, vector<128x128xbf16>
    %cst_308 = arith.constant dense<0.000000e+00> : vector<64x128xf32>
    %444 = tpu.matmul %442, %443, %cst_308 {dimension_numbers = #tpu.dot_dimension_numbers<[1], [0], [0], [1], [0, 0, 1, 1], [], []>} : vector<64x128xbf16>, vector<128x128xbf16>, vector<64x128xf32> -> vector<64x128xf32>
    %445 = arith.truncf %436 : vector<64x128xf32> to vector<64x128xbf16>
    %c0_309 = arith.constant 0 : index
    %c0_310 = arith.constant 0 : index
    %446 = vector.load %arg7[%c0_309, %c0_310] : memref<128x128xbf16, #tpu.memory_space<vmem>>, vector<128x128xbf16>
    %cst_311 = arith.constant dense<0.000000e+00> : vector<64x128xf32>
    %447 = tpu.matmul %445, %446, %cst_311 {dimension_numbers = #tpu.dot_dimension_numbers<[1], [0], [0], [1], [0, 0, 1, 1], [], []>} : vector<64x128xbf16>, vector<128x128xbf16>, vector<64x128xf32> -> vector<64x128xf32>
    %448 = vector.shape_cast %444 : vector<64x128xf32> to vector<8x8x128xf32>
    %449 = vector.shape_cast %447 : vector<64x128xf32> to vector<8x8x128xf32>
    %450 = vector.shape_cast %441 : vector<8x128xf32> to vector<8x1x128xf32>
    %451 = vector.broadcast %450 : vector<8x1x128xf32> to vector<8x8x128xf32>
    %452 = arith.mulf %448, %451 : vector<8x8x128xf32>
    %cst_312 = arith.constant dense<0.000000e+00> : vector<8x8xf32>
    %453 = vector.multi_reduction <add>, %452, %cst_312 [2] : vector<8x8x128xf32> to vector<8x8xf32>
    %cst_313 = arith.constant 0.0883883461 : f32
    %454 = vector.broadcast %cst_313 : f32 to vector<8x8xf32>
    %455 = arith.mulf %453, %454 : vector<8x8xf32>
    %cst_314 = arith.constant 0.000000e+00 : f32
    %456 = vector.broadcast %cst_314 : f32 to vector<8x8xf32>
    %457 = arith.cmpf ogt, %438, %456 : vector<8x8xf32>
    %cst_315 = arith.constant -1.000000e+30 : f32
    %458 = vector.broadcast %cst_315 : f32 to vector<8x8xf32>
    %459 = arith.select %457, %455, %458 : vector<8x8xi1>, vector<8x8xf32>
    %cst_316 = arith.constant dense<0xFF800000> : vector<8xf32>
    %460 = vector.multi_reduction <maximumf>, %459, %cst_316 [1] : vector<8x8xf32> to vector<8xf32>
    %461 = vector.shape_cast %460 : vector<8xf32> to vector<8x1xf32>
    %462 = vector.broadcast %461 : vector<8x1xf32> to vector<8x8xf32>
    %463 = arith.subf %459, %462 : vector<8x8xf32>
    %464 = math.exp %463 : vector<8x8xf32>
    %465 = arith.mulf %464, %438 : vector<8x8xf32>
    %cst_317 = arith.constant dense<0.000000e+00> : vector<8xf32>
    %466 = vector.multi_reduction <add>, %465, %cst_317 [1] : vector<8x8xf32> to vector<8xf32>
    %467 = vector.shape_cast %466 : vector<8xf32> to vector<8x1xf32>
    %cst_318 = arith.constant 9.99999971E-10 : f32
    %468 = vector.broadcast %cst_318 : f32 to vector<8x1xf32>
    %469 = arith.maximumf %467, %468 : vector<8x1xf32>
    %470 = vector.broadcast %469 : vector<8x1xf32> to vector<8x8xf32>
    %471 = arith.divf %465, %470 : vector<8x8xf32>
    %472 = vector.shape_cast %471 : vector<8x8xf32> to vector<8x8x1xf32>
    %473 = vector.broadcast %472 : vector<8x8x1xf32> to vector<8x8x128xf32>
    %474 = arith.mulf %473, %449 : vector<8x8x128xf32>
    %cst_319 = arith.constant dense<0.000000e+00> : vector<8x128xf32>
    %475 = vector.multi_reduction <add>, %474, %cst_319 [1] : vector<8x8x128xf32> to vector<8x128xf32>
    %476 = arith.addf %475, %435 : vector<8x128xf32>
    %477 = arith.truncf %476 : vector<8x128xf32> to vector<8x128xbf16>
    %c0_320 = arith.constant 0 : index
    %c0_321 = arith.constant 0 : index
    %478 = vector.load %arg8[%c0_320, %c0_321] : memref<128x128xbf16, #tpu.memory_space<vmem>>, vector<128x128xbf16>
    %cst_322 = arith.constant dense<0.000000e+00> : vector<8x128xf32>
    %479 = tpu.matmul %477, %478, %cst_322 {dimension_numbers = #tpu.dot_dimension_numbers<[1], [0], [0], [1], [0, 0, 1, 1], [], []>} : vector<8x128xbf16>, vector<128x128xbf16>, vector<8x128xf32> -> vector<8x128xf32>
    %c0_323 = arith.constant 0 : index
    %c0_324 = arith.constant 0 : index
    %480 = vector.load %arg9[%c0_323, %c0_324] : memref<1x128xf32, #tpu.memory_space<vmem>>, vector<1x128xf32>
    %481 = vector.broadcast %480 : vector<1x128xf32> to vector<8x128xf32>
    %482 = arith.addf %479, %481 : vector<8x128xf32>
    %483 = math.tanh %482 : vector<8x128xf32>
    %484 = arith.index_cast %arg0 : i32 to index
    %c0_325 = arith.constant 0 : index
    %485 = memref.load %arg1[%484, %c0_325] : memref<3x8xi32, #tpu.memory_space<smem>>
    %486 = vector.extract_strided_slice %483 {offsets = [0, 0], sizes = [1, 128], strides = [1, 1]} : vector<8x128xf32> to vector<1x128xf32>
    %487 = arith.index_cast %485 : i32 to index
    %c0_326 = arith.constant 0 : index
    %c0_327 = arith.constant 0 : index
    %488 = vector.load %arg10[%487, %c0_326, %c0_327] : memref<8x1x128xf32, #tpu.memory_space<vmem>>, vector<1x1x128xf32>
    %489 = vector.shape_cast %488 : vector<1x1x128xf32> to vector<1x128xf32>
    %490 = vector.shape_cast %486 : vector<1x128xf32> to vector<1x1x128xf32>
    tpu.vector_store %arg10[%487, %c0_326, %c0_327], %490 {strides = array<i32>} : memref<8x1x128xf32, #tpu.memory_space<vmem>>, vector<1x1x128xf32>,
    %491 = arith.index_cast %arg0 : i32 to index
    %c1_328 = arith.constant 1 : index
    %492 = memref.load %arg1[%491, %c1_328] : memref<3x8xi32, #tpu.memory_space<smem>>
    %493 = vector.extract_strided_slice %483 {offsets = [1, 0], sizes = [1, 128], strides = [1, 1]} : vector<8x128xf32> to vector<1x128xf32>
    %494 = arith.index_cast %492 : i32 to index
    %c0_329 = arith.constant 0 : index
    %c0_330 = arith.constant 0 : index
    %495 = vector.load %arg10[%494, %c0_329, %c0_330] : memref<8x1x128xf32, #tpu.memory_space<vmem>>, vector<1x1x128xf32>
    %496 = vector.shape_cast %495 : vector<1x1x128xf32> to vector<1x128xf32>
    %497 = vector.shape_cast %493 : vector<1x128xf32> to vector<1x1x128xf32>
    tpu.vector_store %arg10[%494, %c0_329, %c0_330], %497 {strides = array<i32>} : memref<8x1x128xf32, #tpu.memory_space<vmem>>, vector<1x1x128xf32>,
    %498 = arith.index_cast %arg0 : i32 to index
    %c2_331 = arith.constant 2 : index
    %499 = memref.load %arg1[%498, %c2_331] : memref<3x8xi32, #tpu.memory_space<smem>>
    %500 = vector.extract_strided_slice %483 {offsets = [2, 0], sizes = [1, 128], strides = [1, 1]} : vector<8x128xf32> to vector<1x128xf32>
    %501 = arith.index_cast %499 : i32 to index
    %c0_332 = arith.constant 0 : index
    %c0_333 = arith.constant 0 : index
    %502 = vector.load %arg10[%501, %c0_332, %c0_333] : memref<8x1x128xf32, #tpu.memory_space<vmem>>, vector<1x1x128xf32>
    %503 = vector.shape_cast %502 : vector<1x1x128xf32> to vector<1x128xf32>
    %504 = vector.shape_cast %500 : vector<1x128xf32> to vector<1x1x128xf32>
    tpu.vector_store %arg10[%501, %c0_332, %c0_333], %504 {strides = array<i32>} : memref<8x1x128xf32, #tpu.memory_space<vmem>>, vector<1x1x128xf32>,
    %505 = arith.index_cast %arg0 : i32 to index
    %c3_334 = arith.constant 3 : index
    %506 = memref.load %arg1[%505, %c3_334] : memref<3x8xi32, #tpu.memory_space<smem>>
    %507 = vector.extract_strided_slice %483 {offsets = [3, 0], sizes = [1, 128], strides = [1, 1]} : vector<8x128xf32> to vector<1x128xf32>
    %508 = arith.index_cast %506 : i32 to index
    %c0_335 = arith.constant 0 : index
    %c0_336 = arith.constant 0 : index
    %509 = vector.load %arg10[%508, %c0_335, %c0_336] : memref<8x1x128xf32, #tpu.memory_space<vmem>>, vector<1x1x128xf32>
    %510 = vector.shape_cast %509 : vector<1x1x128xf32> to vector<1x128xf32>
    %511 = vector.shape_cast %507 : vector<1x128xf32> to vector<1x1x128xf32>
    tpu.vector_store %arg10[%508, %c0_335, %c0_336], %511 {strides = array<i32>} : memref<8x1x128xf32, #tpu.memory_space<vmem>>, vector<1x1x128xf32>,
    %512 = arith.index_cast %arg0 : i32 to index
    %c4_337 = arith.constant 4 : index
    %513 = memref.load %arg1[%512, %c4_337] : memref<3x8xi32, #tpu.memory_space<smem>>
    %514 = vector.extract_strided_slice %483 {offsets = [4, 0], sizes = [1, 128], strides = [1, 1]} : vector<8x128xf32> to vector<1x128xf32>
    %515 = arith.index_cast %513 : i32 to index
    %c0_338 = arith.constant 0 : index
    %c0_339 = arith.constant 0 : index
    %516 = vector.load %arg10[%515, %c0_338, %c0_339] : memref<8x1x128xf32, #tpu.memory_space<vmem>>, vector<1x1x128xf32>
    %517 = vector.shape_cast %516 : vector<1x1x128xf32> to vector<1x128xf32>
    %518 = vector.shape_cast %514 : vector<1x128xf32> to vector<1x1x128xf32>
    tpu.vector_store %arg10[%515, %c0_338, %c0_339], %518 {strides = array<i32>} : memref<8x1x128xf32, #tpu.memory_space<vmem>>, vector<1x1x128xf32>,
    %519 = arith.index_cast %arg0 : i32 to index
    %c5_340 = arith.constant 5 : index
    %520 = memref.load %arg1[%519, %c5_340] : memref<3x8xi32, #tpu.memory_space<smem>>
    %521 = vector.extract_strided_slice %483 {offsets = [5, 0], sizes = [1, 128], strides = [1, 1]} : vector<8x128xf32> to vector<1x128xf32>
    %522 = arith.index_cast %520 : i32 to index
    %c0_341 = arith.constant 0 : index
    %c0_342 = arith.constant 0 : index
    %523 = vector.load %arg10[%522, %c0_341, %c0_342] : memref<8x1x128xf32, #tpu.memory_space<vmem>>, vector<1x1x128xf32>
    %524 = vector.shape_cast %523 : vector<1x1x128xf32> to vector<1x128xf32>
    %525 = vector.shape_cast %521 : vector<1x128xf32> to vector<1x1x128xf32>
    tpu.vector_store %arg10[%522, %c0_341, %c0_342], %525 {strides = array<i32>} : memref<8x1x128xf32, #tpu.memory_space<vmem>>, vector<1x1x128xf32>,
    %526 = arith.index_cast %arg0 : i32 to index
    %c6_343 = arith.constant 6 : index
    %527 = memref.load %arg1[%526, %c6_343] : memref<3x8xi32, #tpu.memory_space<smem>>
    %528 = vector.extract_strided_slice %483 {offsets = [6, 0], sizes = [1, 128], strides = [1, 1]} : vector<8x128xf32> to vector<1x128xf32>
    %529 = arith.index_cast %527 : i32 to index
    %c0_344 = arith.constant 0 : index
    %c0_345 = arith.constant 0 : index
    %530 = vector.load %arg10[%529, %c0_344, %c0_345] : memref<8x1x128xf32, #tpu.memory_space<vmem>>, vector<1x1x128xf32>
    %531 = vector.shape_cast %530 : vector<1x1x128xf32> to vector<1x128xf32>
    %532 = vector.shape_cast %528 : vector<1x128xf32> to vector<1x1x128xf32>
    tpu.vector_store %arg10[%529, %c0_344, %c0_345], %532 {strides = array<i32>} : memref<8x1x128xf32, #tpu.memory_space<vmem>>, vector<1x1x128xf32>,
    %533 = arith.index_cast %arg0 : i32 to index
    %c7_346 = arith.constant 7 : index
    %534 = memref.load %arg1[%533, %c7_346] : memref<3x8xi32, #tpu.memory_space<smem>>
    %535 = vector.extract_strided_slice %483 {offsets = [7, 0], sizes = [1, 128], strides = [1, 1]} : vector<8x128xf32> to vector<1x128xf32>
    %536 = arith.index_cast %534 : i32 to index
    %c0_347 = arith.constant 0 : index
    %c0_348 = arith.constant 0 : index
    %537 = vector.load %arg10[%536, %c0_347, %c0_348] : memref<8x1x128xf32, #tpu.memory_space<vmem>>, vector<1x1x128xf32>
    %538 = vector.shape_cast %537 : vector<1x1x128xf32> to vector<1x128xf32>
    %539 = vector.shape_cast %535 : vector<1x128xf32> to vector<1x1x128xf32>
    tpu.vector_store %arg10[%536, %c0_347, %c0_348], %539 {strides = array<i32>} : memref<8x1x128xf32, #tpu.memory_space<vmem>>, vector<1x1x128xf32>,
    return
  }
  func.func @transform_0(%arg0: i32, %arg1: memref<3x8xi32, #tpu.memory_space<smem>>, %arg2: memref<8x8xi32, #tpu.memory_space<smem>>) -> (i32, i32, i32) {
    %c0_i32 = arith.constant 0 : i32
    %c0_i32_0 = arith.constant 0 : i32
    %c0_i32_1 = arith.constant 0 : i32
    %c0_i32_2 = arith.constant 0 : i32
    return %c0_i32, %c0_i32_0, %c0_i32_1 : i32, i32, i32
  }
  func.func @transform_1(%arg0: i32, %arg1: memref<3x8xi32, #tpu.memory_space<smem>>, %arg2: memref<8x8xi32, #tpu.memory_space<smem>>) -> (i32, i32, i32) {
    %c0_i32 = arith.constant 0 : i32
    %c0_i32_0 = arith.constant 0 : i32
    %c0_i32_1 = arith.constant 0 : i32
    return %arg0, %c0_i32, %c0_i32_0 : i32, i32, i32
  }
  func.func @transform_2(%arg0: i32, %arg1: memref<3x8xi32, #tpu.memory_space<smem>>, %arg2: memref<8x8xi32, #tpu.memory_space<smem>>) -> (i32, i32) {
    %c0_i32 = arith.constant 0 : i32
    %c0_i32_0 = arith.constant 0 : i32
    %c0_i32_1 = arith.constant 0 : i32
    return %c0_i32, %c0_i32_0 : i32, i32
  }
  func.func @transform_3(%arg0: i32, %arg1: memref<3x8xi32, #tpu.memory_space<smem>>, %arg2: memref<8x8xi32, #tpu.memory_space<smem>>) -> (i32, i32) {
    %c0_i32 = arith.constant 0 : i32
    %c0_i32_0 = arith.constant 0 : i32
    %c0_i32_1 = arith.constant 0 : i32
    return %c0_i32, %c0_i32_0 : i32, i32
  }
  func.func @transform_4(%arg0: i32, %arg1: memref<3x8xi32, #tpu.memory_space<smem>>, %arg2: memref<8x8xi32, #tpu.memory_space<smem>>) -> (i32, i32) {
    %c0_i32 = arith.constant 0 : i32
    %c0_i32_0 = arith.constant 0 : i32
    %c0_i32_1 = arith.constant 0 : i32
    return %c0_i32, %c0_i32_0 : i32, i32
  }
  func.func @transform_5(%arg0: i32, %arg1: memref<3x8xi32, #tpu.memory_space<smem>>, %arg2: memref<8x8xi32, #tpu.memory_space<smem>>) -> (i32, i32) {
    %c0_i32 = arith.constant 0 : i32
    %c0_i32_0 = arith.constant 0 : i32
    %c0_i32_1 = arith.constant 0 : i32
    return %c0_i32, %c0_i32_0 : i32, i32
  }
  func.func @transform_6(%arg0: i32, %arg1: memref<3x8xi32, #tpu.memory_space<smem>>, %arg2: memref<8x8xi32, #tpu.memory_space<smem>>) -> (i32, i32) {
    %c0_i32 = arith.constant 0 : i32
    %c0_i32_0 = arith.constant 0 : i32
    %c0_i32_1 = arith.constant 0 : i32
    return %c0_i32, %c0_i32_0 : i32, i32
  }
  func.func @transform_7(%arg0: i32, %arg1: memref<3x8xi32, #tpu.memory_space<smem>>, %arg2: memref<8x8xi32, #tpu.memory_space<smem>>) -> (i32, i32, i32) {
    %c0_i32 = arith.constant 0 : i32
    %c0_i32_0 = arith.constant 0 : i32
    %c0_i32_1 = arith.constant 0 : i32
    %c0_i32_2 = arith.constant 0 : i32
    return %c0_i32, %c0_i32_0, %c0_i32_1 : i32, i32, i32
  }
}

</mosaic_0001>

<llo_original>
// kernel: bottom_up_pass.1
$region0: #{bottom_up_pass.1}
  #allocation0 [shape = 'u32[]', space=smem, size = 0x4, offset = 0x4, fixed_abs, tag = 'smem constant byte address 0x4 - core index']
  #allocation1 [shape = 'u32[144,128]{1,0:T(1,128)}', space=vmem, size = 0x12000, scoped, tag = 'internal scratch']
  #allocation2 [shape = 'f32[8,128]{1,0:T(8,128)}', space=vmem, size = 0x1000, scoped, tag = 'scratch operand']
  #allocation3 [shape = 'f32[64,128]{1,0:T(8,128)}', space=vmem, size = 0x8000, scoped, tag = 'scratch operand']
  #allocation4 [shape = 's32[1]{0}', space=sflag, size = 0x4, scoped, tag = 'scoped memory for bottom_up_pass.1']
  #allocation5 [shape = 'u8[2048]{0}', space=smem, size = 0x800, scoped, tag = 'prefetched SMEM operand 0']
  #allocation6 [shape = 'u8[4096]{0}', space=smem, size = 0x1000, scoped, tag = 'prefetched SMEM operand 1']
  %s0 = inlined_call_operand.hbm [shape: s32[3,8], index: 0, kind: input, shape index: {}]
  %s1 = inlined_call_operand.hbm [shape: s32[8,8], index: 1, kind: input, shape index: {}]
  %s2 = inlined_call_operand.hbm [shape: f32[8,1,128], index: 2, kind: input, shape index: {}]
  %s3 = inlined_call_operand.hbm [shape: f32[3,8,8], index: 3, kind: input, shape index: {}]
  %s4 = inlined_call_operand.hbm [shape: bf16[128,128], index: 4, kind: input, shape index: {}]
  %s5 = inlined_call_operand.hbm [shape: bf16[128,128], index: 5, kind: input, shape index: {}]
  %s6 = inlined_call_operand.hbm [shape: bf16[128,128], index: 6, kind: input, shape index: {}]
  %s7 = inlined_call_operand.hbm [shape: bf16[128,128], index: 7, kind: input, shape index: {}]
  %s8 = inlined_call_operand.vmem [shape: f32[1,128], index: 8, kind: input, shape index: {}]
  %s9 = inlined_call_operand.hbm [shape: f32[8,1,128], index: 9, kind: output, shape index: {}]
  %s10 = sld [smem:[#allocation0]]
  $region89: #{bottom_up_pass.1} parent=0
    _
  %s12 = ssub.s32 1, %s10
  %s13 = scalar_select 0, %s12, %s10
  %15 = dma.hbm_to_smem %s0, 64, [#allocation5], [#allocation4]
  %17 = dma.hbm_to_smem %s1, 128, [#allocation6], [#allocation4]
  %18 = dma.done [#allocation4], 192
  %19 = sfence
  $region1: #{bottom_up_pass.1} parent=0
    #allocation7 [shape = 'u8[4096]{0}', space=vmem, size = 0x1000, scoped, tag = 'input window, operand 2, single buffered']
    #allocation8 [shape = 's32[2]{0}', space=sflag, size = 0x8, scoped, tag = 'scoped memory for bottom_up_pass.1']
    #allocation9 [shape = 's32[2]{0}', space=sflag, size = 0x8, scoped, tag = 'scoped memory for bottom_up_pass.1']
    #allocation10 [shape = 'u8[8192]{0}', space=vmem, size = 0x2000, scoped, tag = 'input window, operand 3']
    #allocation11 [shape = 's32[2]{0}', space=sflag, size = 0x8, scoped, tag = 'scoped memory for bottom_up_pass.1']
    #allocation12 [shape = 'u8[32768]{0}', space=vmem, size = 0x8000, scoped, tag = 'input window, operand 4, single buffered']
    #allocation13 [shape = 'u8[32768]{0}', space=vmem, size = 0x8000, scoped, tag = 'input window, operand 5, single buffered']
    #allocation14 [shape = 's32[1]{0}', space=sflag, size = 0x4, scoped, tag = 'scoped memory for bottom_up_pass.1']
    #allocation15 [shape = 'u8[32768]{0}', space=vmem, size = 0x8000, scoped, tag = 'input window, operand 6, single buffered']
    #allocation16 [shape = 'u8[32768]{0}', space=vmem, size = 0x8000, scoped, tag = 'input window, operand 7, single buffered']
    #allocation17 [shape = 's32[1]{0}', space=sflag, size = 0x4, scoped, tag = 'scoped memory for bottom_up_pass.1']
    #allocation18 [shape = 'u8[4096]{0}', space=vmem, size = 0x1000, scoped, tag = 'output window, operand 0, single buffered']
    %20 = vsyncpa [#allocation8], 0
    %21 = vsyncpa [#allocation11], 0
    %s22 = scalar_lea.sflag [#allocation11], 1
    %23 = vsyncpa %s22, 0
    %24 = vsyncpa [#allocation14], 0
    %25 = vsyncpa [#allocation17], 0
    %26 = vsyncpa [#allocation9], 0
    loop: start=0, step=1, limit=5
    $region2: #{bottom_up_pass.1} parent=1 // loop_pre_header
      _
    $region3: #{bottom_up_pass.1} parent=1 // loop_header
      %s28 = sphi 0, %s32
      %p29 = scmp.ge.s32.totalorder %s28, 5
      %s36 = sphi 0, %s36
      %s38 = sphi 0, %s36
      %s39 = sphi 0, %s38
      %s53 = sphi 0, %s39
      %s59 = sphi 0, %s61
      %s62 = sphi 0, %s59
      %s63 = sphi 0, %s62
      %s79 = sphi 0, %s63
      %s83 = sphi 0, %s83
      %s85 = sphi 0, %s83
      %s86 = sphi 0, %s85
      %s100 = sphi 0, %s86
      %s104 = sphi 0, %s104
      %s106 = sphi 0, %s104
      %s107 = sphi 0, %s106
      %s121 = sphi 0, %s107
      %s125 = sphi 0, %s125
      %s127 = sphi 0, %s125
      %s128 = sphi 0, %s127
      %s142 = sphi 0, %s128
      %s146 = sphi 0, %s146
      %s148 = sphi 0, %s146
      %s149 = sphi 0, %s148
      %s163 = sphi 0, %s149
      %s167 = sphi 0, %s167
      %s169 = sphi 0, %s167
      %s170 = sphi 0, %s169
      %s184 = sphi 0, %s170
      %s188 = sphi 0, %s188
      %s190 = sphi 0, %s188
      %s191 = sphi 0, %s190
      %s205 = sphi 0, %s191
    $region4: #{bottom_up_pass.1} parent=1 // loop_header_branch
      %31 = sbr.rel (%p29) target = $region8
    $region5: #{bottom_up_pass.1} parent=1 // loop_body
      %s33 = ssub.s32 %s28, 1
      %s34 = ssub.s32 %s28, 2
      %s35 = sadd.s32 %s28, 1
      %s37 = sadd.s32 %s36, 1
      %p40 = scmp.eq.s32.totalorder %s28, 2
      %p41 = scmp.ne.s32.totalorder %s36, %s38
      %p42 = scmp.eq.s32.totalorder %s28, 0
      %p43 = por %p41, %p42
      %p44 = scmp.ne.s32.totalorder %s36, %s38
      %p45 = scmp.eq.s32.totalorder %s33, 2
      %p46 = por %p44, %p45
      %p47 = scmp.ne.s32.totalorder %s38, %s39
      %p48 = scmp.eq.s32.totalorder %s33, 0
      %p49 = por %p47, %p48
      %p50 = scmp.ne.s32.totalorder %s38, %s39
      %p51 = scmp.eq.s32.totalorder %s34, 2
      %p52 = por %p50, %p51
      %p54 = scmp.ne.s32.totalorder %s39, %s53
      %p55 = scmp.eq.s32.totalorder %s34, 0
      %p56 = por %p54, %p55
      %s57 = ssub.s32 %s28, %s35
      %p58 = scmp.eq.s32.totalorder %s57, 0
      %s60 = sadd.s32 %s59, 1
      %s61 = scalar_select %p58, %s59, %s60
      %p64 = pneg %p58
      %p65 = scmp.eq.s32.totalorder %s28, 2
      %p66 = por %p64, %p65
      %p67 = scmp.ne.s32.totalorder %s59, %s62
      %p68 = scmp.eq.s32.totalorder %s28, 0
      %p69 = por %p67, %p68
      %p70 = scmp.ne.s32.totalorder %s59, %s62
      %p71 = scmp.eq.s32.totalorder %s33, 2
      %p72 = por %p70, %p71
      %p73 = scmp.ne.s32.totalorder %s62, %s63
      %p74 = scmp.eq.s32.totalorder %s33, 0
      %p75 = por %p73, %p74
      %p76 = scmp.ne.s32.totalorder %s62, %s63
      %p77 = scmp.eq.s32.totalorder %s34, 2
      %p78 = por %p76, %p77
      %p80 = scmp.ne.s32.totalorder %s63, %s79
      %p81 = scmp.eq.s32.totalorder %s34, 0
      %p82 = por %p80, %p81
      %s84 = sadd.s32 %s83, 1
      %p87 = scmp.eq.s32.totalorder %s28, 2
      %p88 = scmp.ne.s32.totalorder %s83, %s85
      %p89 = scmp.eq.s32.totalorder %s28, 0
      %p90 = por %p88, %p89
      %p91 = scmp.ne.s32.totalorder %s83, %s85
      %p92 = scmp.eq.s32.totalorder %s33, 2
      %p93 = por %p91, %p92
      %p94 = scmp.ne.s32.totalorder %s85, %s86
      %p95 = scmp.eq.s32.totalorder %s33, 0
      %p96 = por %p94, %p95
      %p97 = scmp.ne.s32.totalorder %s85, %s86
      %p98 = scmp.eq.s32.totalorder %s34, 2
      %p99 = por %p97, %p98
      %p101 = scmp.ne.s32.totalorder %s86, %s100
      %p102 = scmp.eq.s32.totalorder %s34, 0
      %p103 = por %p101, %p102
      %s105 = sadd.s32 %s104, 1
      %p108 = scmp.eq.s32.totalorder %s28, 2
      %p109 = scmp.ne.s32.totalorder %s104, %s106
      %p110 = scmp.eq.s32.totalorder %s28, 0
      %p111 = por %p109, %p110
      %p112 = scmp.ne.s32.totalorder %s104, %s106
      %p113 = scmp.eq.s32.totalorder %s33, 2
      %p114 = por %p112, %p113
      %p115 = scmp.ne.s32.totalorder %s106, %s107
      %p116 = scmp.eq.s32.totalorder %s33, 0
      %p117 = por %p115, %p116
      %p118 = scmp.ne.s32.totalorder %s106, %s107
      %p119 = scmp.eq.s32.totalorder %s34, 2
      %p120 = por %p118, %p119
      %p122 = scmp.ne.s32.totalorder %s107, %s121
      %p123 = scmp.eq.s32.totalorder %s34, 0
      %p124 = por %p122, %p123
      %s126 = sadd.s32 %s125, 1
      %p129 = scmp.eq.s32.totalorder %s28, 2
      %p130 = scmp.ne.s32.totalorder %s125, %s127
      %p131 = scmp.eq.s32.totalorder %s28, 0
      %p132 = por %p130, %p131
      %p133 = scmp.ne.s32.totalorder %s125, %s127
      %p134 = scmp.eq.s32.totalorder %s33, 2
      %p135 = por %p133, %p134
      %p136 = scmp.ne.s32.totalorder %s127, %s128
      %p137 = scmp.eq.s32.totalorder %s33, 0
      %p138 = por %p136, %p137
      %p139 = scmp.ne.s32.totalorder %s127, %s128
      %p140 = scmp.eq.s32.totalorder %s34, 2
      %p141 = por %p139, %p140
      %p143 = scmp.ne.s32.totalorder %s128, %s142
      %p144 = scmp.eq.s32.totalorder %s34, 0
      %p145 = por %p143, %p144
      %s147 = sadd.s32 %s146, 1
      %p150 = scmp.eq.s32.totalorder %s28, 2
      %p151 = scmp.ne.s32.totalorder %s146, %s148
      %p152 = scmp.eq.s32.totalorder %s28, 0
      %p153 = por %p151, %p152
      %p154 = scmp.ne.s32.totalorder %s146, %s148
      %p155 = scmp.eq.s32.totalorder %s33, 2
      %p156 = por %p154, %p155
      %p157 = scmp.ne.s32.totalorder %s148, %s149
      %p158 = scmp.eq.s32.totalorder %s33, 0
      %p159 = por %p157, %p158
      %p160 = scmp.ne.s32.totalorder %s148, %s149
      %p161 = scmp.eq.s32.totalorder %s34, 2
      %p162 = por %p160, %p161
      %p164 = scmp.ne.s32.totalorder %s149, %s163
      %p165 = scmp.eq.s32.totalorder %s34, 0
      %p166 = por %p164, %p165
      %s168 = sadd.s32 %s167, 1
      %p171 = scmp.eq.s32.totalorder %s28, 2
      %p172 = scmp.ne.s32.totalorder %s167, %s169
      %p173 = scmp.eq.s32.totalorder %s28, 0
      %p174 = por %p172, %p173
      %p175 = scmp.ne.s32.totalorder %s167, %s169
      %p176 = scmp.eq.s32.totalorder %s33, 2
      %p177 = por %p175, %p176
      %p178 = scmp.ne.s32.totalorder %s169, %s170
      %p179 = scmp.eq.s32.totalorder %s33, 0
      %p180 = por %p178, %p179
      %p181 = scmp.ne.s32.totalorder %s169, %s170
      %p182 = scmp.eq.s32.totalorder %s34, 2
      %p183 = por %p181, %p182
      %p185 = scmp.ne.s32.totalorder %s170, %s184
      %p186 = scmp.eq.s32.totalorder %s34, 0
      %p187 = por %p185, %p186
      %s189 = sadd.s32 %s188, 1
      %p192 = scmp.eq.s32.totalorder %s28, 2
      %p193 = scmp.ne.s32.totalorder %s188, %s190
      %p194 = scmp.eq.s32.totalorder %s28, 0
      %p195 = por %p193, %p194
      %p196 = scmp.ne.s32.totalorder %s188, %s190
      %p197 = scmp.eq.s32.totalorder %s33, 2
      %p198 = por %p196, %p197
      %p199 = scmp.ne.s32.totalorder %s190, %s191
      %p200 = scmp.eq.s32.totalorder %s33, 0
      %p201 = por %p199, %p200
      %p202 = scmp.ne.s32.totalorder %s190, %s191
      %p203 = scmp.eq.s32.totalorder %s34, 2
      %p204 = por %p202, %p203
      %p206 = scmp.ne.s32.totalorder %s191, %s205
      %p207 = scmp.eq.s32.totalorder %s34, 0
      %p208 = por %p206, %p207
      %p209 = scmp.le.s32.totalorder 1, %s28
      %p210 = scmp.lt.s32.totalorder %s28, 4
      %p211 = pnand %p209, %p210
      %p212 = pneg %p211
      // Predicated region
      $region9: #{bottom_up_pass.1} parent=5 // pred_check
        _
      $region10: #{bottom_up_pass.1} parent=5 // pred_check_branch
        %214 = sbr.rel (%p211) target = $region12
      $region11: #{bottom_up_pass.1} parent=5 // pred_region
        %s215 = ssub.s32 %s28, 1
        // Predicated region
        $region13: #{bottom_up_pass.1} parent=11 // pred_check
          %p216 = pneg %p49
        $region14: #{bottom_up_pass.1} parent=11 // pred_check_branch
          %218 = sbr.rel (%p216) target = $region16
        $region15: #{bottom_up_pass.1} parent=11 // pred_region
          %s220 = ssub.s32 128, 128
          %221 = vsyncadd [#allocation8], %s220
          %s222 = sshll.u32 [#allocation7], 4
          %s223 = int_to_ptr.vmem [resolvable:$true] %s222
          %228 = dma.hbm_to_vmem [thread:$0]  %s2, 128, %s223, [#allocation8], 16, 16, 1
        $region16: #{bottom_up_pass.1} parent=11 // pred_fallthru
          _
        // Predicated region
        $region17: #{bottom_up_pass.1} parent=11 // pred_check
          %p229 = pneg %p96
        $region18: #{bottom_up_pass.1} parent=11 // pred_check_branch
          %231 = sbr.rel (%p229) target = $region20
        $region19: #{bottom_up_pass.1} parent=11 // pred_region
          %s233 = ssub.s32 1024, 1024
          %234 = vsyncadd [#allocation11], %s233
          %s235 = sshll.u32 [#allocation12], 4
          %s236 = int_to_ptr.vmem [resolvable:$true] %s235
          %241 = dma.hbm_to_vmem [thread:$0]  %s4, 1024, %s236, [#allocation11], 64, 64, 4
        $region20: #{bottom_up_pass.1} parent=11 // pred_fallthru
          _
        // Predicated region
        $region21: #{bottom_up_pass.1} parent=11 // pred_check
          %p242 = pneg %p117
        $region22: #{bottom_up_pass.1} parent=11 // pred_check_branch
          %244 = sbr.rel (%p242) target = $region24
        $region23: #{bottom_up_pass.1} parent=11 // pred_region
          %s246 = ssub.s32 1024, 1024
          %247 = vsyncadd [#allocation14], %s246
          %s248 = sshll.u32 [#allocation13], 4
          %s249 = int_to_ptr.vmem [resolvable:$true] %s248
          %254 = dma.hbm_to_vmem [thread:$0]  %s5, 1024, %s249, [#allocation14], 64, 64, 4
        $region24: #{bottom_up_pass.1} parent=11 // pred_fallthru
          _
        // Predicated region
        $region25: #{bottom_up_pass.1} parent=11 // pred_check
          %p255 = pneg %p138
        $region26: #{bottom_up_pass.1} parent=11 // pred_check_branch
          %257 = sbr.rel (%p255) target = $region28
        $region27: #{bottom_up_pass.1} parent=11 // pred_region
          %s259 = ssub.s32 1024, 1024
          %260 = vsyncadd [#allocation14], %s259
          %s261 = sshll.u32 [#allocation15], 4
          %s262 = int_to_ptr.vmem [resolvable:$true] %s261
          %267 = dma.hbm_to_vmem [thread:$0]  %s6, 1024, %s262, [#allocation14], 64, 64, 4
        $region28: #{bottom_up_pass.1} parent=11 // pred_fallthru
          _
        // Predicated region
        $region29: #{bottom_up_pass.1} parent=11 // pred_check
          %p268 = pneg %p159
        $region30: #{bottom_up_pass.1} parent=11 // pred_check_branch
          %270 = sbr.rel (%p268) target = $region32
        $region31: #{bottom_up_pass.1} parent=11 // pred_region
          %s272 = ssub.s32 1024, 1024
          %273 = vsyncadd [#allocation17], %s272
          %s274 = sshll.u32 [#allocation16], 4
          %s275 = int_to_ptr.vmem [resolvable:$true] %s274
          %280 = dma.hbm_to_vmem [thread:$0]  %s7, 1024, %s275, [#allocation17], 64, 64, 4
        $region32: #{bottom_up_pass.1} parent=11 // pred_fallthru
          _
        // Predicated region
        $region33: #{bottom_up_pass.1} parent=11 // pred_check
          %p281 = pneg %p180
        $region34: #{bottom_up_pass.1} parent=11 // pred_check_branch
          %283 = sbr.rel (%p281) target = $region36
        $region35: #{bottom_up_pass.1} parent=11 // pred_region
          _
        $region36: #{bottom_up_pass.1} parent=11 // pred_fallthru
          _
      $region12: #{bottom_up_pass.1} parent=5 // pred_fallthru
        _
      %p284 = scmp.lt.s32.totalorder %s28, 3
      // Predicated region
      $region37: #{bottom_up_pass.1} parent=5 // pred_check
        %p285 = pneg %p284
      $region38: #{bottom_up_pass.1} parent=5 // pred_check_branch
        %287 = sbr.rel (%p285) target = $region40
      $region39: #{bottom_up_pass.1} parent=5 // pred_region
        // Predicated region
        $region41: #{bottom_up_pass.1} parent=39 // pred_check
          %p288 = pneg %p69
        $region42: #{bottom_up_pass.1} parent=39 // pred_check_branch
          %290 = sbr.rel (%p288) target = $region44
        $region43: #{bottom_up_pass.1} parent=39 // pred_region
          %s291 = sand.u32 %s28, 1
          %s292 = scalar_lea.sflag [#allocation11], %s291
          %s293 = sand.u32 %s59, 1
          %s294 = smul.addr %s293, 8
          %s295 = scalar_lea.vmem [#allocation10], %s294
          %s297 = ssub.s32 128, 128
          %298 = vsyncadd %s292, %s297
          %s299 = smul.addr %s28, 128
          %s300 = scalar_lea.hbm %s3, %s299
          %s302 = sshll.u32 %s295, 4
          %s303 = int_to_ptr.vmem [resolvable:$true] %s302
          %305 = dma.hbm_to_vmem [thread:$0]  %s300, 128, %s303, %s292
        $region44: #{bottom_up_pass.1} parent=39 // pred_fallthru
          _
      $region40: #{bottom_up_pass.1} parent=5 // pred_fallthru
        _
      %p306 = scmp.le.s32.totalorder 1, %s28
      %p307 = scmp.lt.s32.totalorder %s28, 4
      %p308 = pnand %p306, %p307
      %p309 = pneg %p308
      // Predicated region
      $region45: #{bottom_up_pass.1} parent=5 // pred_check
        _
      $region46: #{bottom_up_pass.1} parent=5 // pred_check_branch
        %311 = sbr.rel (%p308) target = $region48
      $region47: #{bottom_up_pass.1} parent=5 // pred_region
        %s312 = ssub.s32 %s28, 1
        // Predicated region
        $region49: #{bottom_up_pass.1} parent=47 // pred_check
          %p313 = pneg %p49
        $region50: #{bottom_up_pass.1} parent=47 // pred_check_branch
          %315 = sbr.rel (%p313) target = $region52
        $region51: #{bottom_up_pass.1} parent=47 // pred_region
          %316 = dma.done [#allocation8], 128
        $region52: #{bottom_up_pass.1} parent=47 // pred_fallthru
          _
        %s317 = sand.u32 %s33, 1
        %s318 = scalar_lea.sflag [#allocation11], %s317
        %s319 = sand.u32 %s62, 1
        %s320 = smul.addr %s319, 8
        %s321 = scalar_lea.vmem [#allocation10], %s320
        // Predicated region
        $region53: #{bottom_up_pass.1} parent=47 // pred_check
          %p322 = pneg %p75
        $region54: #{bottom_up_pass.1} parent=47 // pred_check_branch
          %324 = sbr.rel (%p322) target = $region56
        $region55: #{bottom_up_pass.1} parent=47 // pred_region
          %325 = dma.done %s318, 128
        $region56: #{bottom_up_pass.1} parent=47 // pred_fallthru
          _
        // Predicated region
        $region57: #{bottom_up_pass.1} parent=47 // pred_check
          %p326 = pneg %p96
        $region58: #{bottom_up_pass.1} parent=47 // pred_check_branch
          %328 = sbr.rel (%p326) target = $region60
        $region59: #{bottom_up_pass.1} parent=47 // pred_region
          %329 = dma.done [#allocation11], 1024
        $region60: #{bottom_up_pass.1} parent=47 // pred_fallthru
          _
        // Predicated region
        $region61: #{bottom_up_pass.1} parent=47 // pred_check
          %p330 = pneg %p117
        $region62: #{bottom_up_pass.1} parent=47 // pred_check_branch
          %332 = sbr.rel (%p330) target = $region64
        $region63: #{bottom_up_pass.1} parent=47 // pred_region
          %333 = dma.done [#allocation14], 1024
        $region64: #{bottom_up_pass.1} parent=47 // pred_fallthru
          _
        // Predicated region
        $region65: #{bottom_up_pass.1} parent=47 // pred_check
          %p334 = pneg %p138
        $region66: #{bottom_up_pass.1} parent=47 // pred_check_branch
          %336 = sbr.rel (%p334) target = $region68
        $region67: #{bottom_up_pass.1} parent=47 // pred_region
          %337 = dma.done [#allocation14], 1024
        $region68: #{bottom_up_pass.1} parent=47 // pred_fallthru
          _
        // Predicated region
        $region69: #{bottom_up_pass.1} parent=47 // pred_check
          %p338 = pneg %p159
        $region70: #{bottom_up_pass.1} parent=47 // pred_check_branch
          %340 = sbr.rel (%p338) target = $region72
        $region71: #{bottom_up_pass.1} parent=47 // pred_region
          %341 = dma.done [#allocation17], 1024
        $region72: #{bottom_up_pass.1} parent=47 // pred_fallthru
          _
        %p342 = pneg %p49
        %p343 = pneg %p46
        %s344 = sand.u32 %s33, 1
        %s345 = scalar_lea.sflag [#allocation11], %s344
        %s346 = sand.u32 %s62, 1
        %s347 = smul.addr %s346, 8
        %s348 = scalar_lea.vmem [#allocation10], %s347
        %p349 = pneg %p75
        %p350 = pneg %p72
        %p351 = pneg %p96
        %p352 = pneg %p93
        %p353 = pneg %p117
        %p354 = pneg %p114
        %p355 = pneg %p138
        %p356 = pneg %p135
        %p357 = pneg %p159
        %p358 = pneg %p156
        %p359 = pneg %p180
        %p360 = pneg %p177
        %p361 = pneg %p201
        %p362 = pneg %p198
        %p364 = scmp.eq.s32.totalorder %s33, 0
        // Predicated region
        $region73: #{bottom_up_pass.1} parent=47 // pred_check
          %p365 = pneg %p364
        $region74: #{bottom_up_pass.1} parent=47 // pred_check_branch
          %367 = sbr.rel (%p365) target = $region76
        $region75: #{bottom_up_pass.1} parent=47 // pred_region
          %v368 = vld [vmem:[#allocation7] sm:$0x1]
          %v369 = vld [vmem:[#allocation7 + $0x1] sm:$0x1]
          %v370 = vld [vmem:[#allocation7 + $0x2] sm:$0x1]
          %v371 = vld [vmem:[#allocation7 + $0x3] sm:$0x1]
          %v372 = vld [vmem:[#allocation7 + $0x4] sm:$0x1]
          %v373 = vld [vmem:[#allocation7 + $0x5] sm:$0x1]
          %v374 = vld [vmem:[#allocation7 + $0x6] sm:$0x1]
          %v375 = vld [vmem:[#allocation7 + $0x7] sm:$0x1]
          %376 = vst [vmem:[#allocation18] sm:$0x1] %v368
          %377 = vst [vmem:[#allocation18 + $0x1] sm:$0x1] %v369
          %378 = vst [vmem:[#allocation18 + $0x2] sm:$0x1] %v370
          %379 = vst [vmem:[#allocation18 + $0x3] sm:$0x1] %v371
          %380 = vst [vmem:[#allocation18 + $0x4] sm:$0x1] %v372
          %381 = vst [vmem:[#allocation18 + $0x5] sm:$0x1] %v373
          %382 = vst [vmem:[#allocation18 + $0x6] sm:$0x1] %v374
          %383 = vst [vmem:[#allocation18 + $0x7] sm:$0x1] %v375
        $region76: #{bottom_up_pass.1} parent=47 // pred_fallthru
          _
        %s384 = smul.u32 %s33, 128
        %s385 = sld [smem:[#allocation5 + %s384]]
        %s386 = scalar_lea.vmem [#allocation18], %s385
        %v387 = vld [vmem:[%s386] sm:$0x1]
        %388 = vst [vmem:[#allocation2] sm:$0x1] %v387
        %s389 = smul.u32 %s385, 128
        %s390 = sld [smem:[#allocation6 + %s389]]
        %s391 = scalar_lea.vmem [#allocation18], %s390
        %v392 = vld [vmem:[%s391] sm:$0x1]
        %393 = vst [vmem:[#allocation3] sm:$0x1] %v392
        %s394 = sadd.s32 %s389, 1
        %s395 = sld [smem:[#allocation6 + %s394]]
        %s396 = scalar_lea.vmem [#allocation18], %s395
        %v397 = vld [vmem:[%s396] sm:$0x1]
        %398 = vst [vmem:[#allocation3 + $0x1] sm:$0x1] %v397
        %s399 = sadd.s32 %s389, 2
        %s400 = sld [smem:[#allocation6 + %s399]]
        %s401 = scalar_lea.vmem [#allocation18], %s400
        %v402 = vld [vmem:[%s401] sm:$0x1]
        %403 = vst [vmem:[#allocation3 + $0x2] sm:$0x1] %v402
        %s404 = sadd.s32 %s389, 3
        %s405 = sld [smem:[#allocation6 + %s404]]
        %s406 = scalar_lea.vmem [#allocation18], %s405
        %v407 = vld [vmem:[%s406] sm:$0x1]
        %408 = vst [vmem:[#allocation3 + $0x3] sm:$0x1] %v407
        %s409 = sadd.s32 %s389, 4
        %s410 = sld [smem:[#allocation6 + %s409]]
        %s411 = scalar_lea.vmem [#allocation18], %s410
        %v412 = vld [vmem:[%s411] sm:$0x1]
        %413 = vst [vmem:[#allocation3 + $0x4] sm:$0x1] %v412
        %s414 = sadd.s32 %s389, 5
        %s415 = sld [smem:[#allocation6 + %s414]]
        %s416 = scalar_lea.vmem [#allocation18], %s415
        %v417 = vld [vmem:[%s416] sm:$0x1]
        %418 = vst [vmem:[#allocation3 + $0x5] sm:$0x1] %v417
        %s419 = sadd.s32 %s389, 6
        %s420 = sld [smem:[#allocation6 + %s419]]
        %s421 = scalar_lea.vmem [#allocation18], %s420
        %v422 = vld [vmem:[%s421] sm:$0x1]
        %423 = vst [vmem:[#allocation3 + $0x6] sm:$0x1] %v422
        %s424 = sadd.s32 %s389, 7
        %s425 = sld [smem:[#allocation6 + %s424]]
        %s426 = scalar_lea.vmem [#allocation18], %s425
        %v427 = vld [vmem:[%s426] sm:$0x1]
        %428 = vst [vmem:[#allocation3 + $0x7] sm:$0x1] %v427
        %s429 = sadd.s32 %s384, 1
        %s430 = sld [smem:[#allocation5 + %s429]]
        %s431 = scalar_lea.vmem [#allocation18], %s430
        %v432 = vld [vmem:[%s431] sm:$0x1]
        %433 = vst [vmem:[#allocation2 + $0x1] sm:$0x1] %v432
        %s434 = smul.u32 %s430, 128
        %s435 = sld [smem:[#allocation6 + %s434]]
        %s436 = scalar_lea.vmem [#allocation18], %s435
        %v437 = vld [vmem:[%s436] sm:$0x1]
        %438 = vst [vmem:[#allocation3 + $0x8] sm:$0x1] %v437
        %s439 = sadd.s32 %s434, 1
        %s440 = sld [smem:[#allocation6 + %s439]]
        %s441 = scalar_lea.vmem [#allocation18], %s440
        %v442 = vld [vmem:[%s441] sm:$0x1]
        %443 = vst [vmem:[#allocation3 + $0x9] sm:$0x1] %v442
        %s444 = sadd.s32 %s434, 2
        %s445 = sld [smem:[#allocation6 + %s444]]
        %s446 = scalar_lea.vmem [#allocation18], %s445
        %v447 = vld [vmem:[%s446] sm:$0x1]
        %448 = vst [vmem:[#allocation3 + $0xa] sm:$0x1] %v447
        %s449 = sadd.s32 %s434, 3
        %s450 = sld [smem:[#allocation6 + %s449]]
        %s451 = scalar_lea.vmem [#allocation18], %s450
        %v452 = vld [vmem:[%s451] sm:$0x1]
        %453 = vst [vmem:[#allocation3 + $0xb] sm:$0x1] %v452
        %s454 = sadd.s32 %s434, 4
        %s455 = sld [smem:[#allocation6 + %s454]]
        %s456 = scalar_lea.vmem [#allocation18], %s455
        %v457 = vld [vmem:[%s456] sm:$0x1]
        %458 = vst [vmem:[#allocation3 + $0xc] sm:$0x1] %v457
        %s459 = sadd.s32 %s434, 5
        %s460 = sld [smem:[#allocation6 + %s459]]
        %s461 = scalar_lea.vmem [#allocation18], %s460
        %v462 = vld [vmem:[%s461] sm:$0x1]
        %463 = vst [vmem:[#allocation3 + $0xd] sm:$0x1] %v462
        %s464 = sadd.s32 %s434, 6
        %s465 = sld [smem:[#allocation6 + %s464]]
        %s466 = scalar_lea.vmem [#allocation18], %s465
        %v467 = vld [vmem:[%s466] sm:$0x1]
        %468 = vst [vmem:[#allocation3 + $0xe] sm:$0x1] %v467
        %s469 = sadd.s32 %s434, 7
        %s470 = sld [smem:[#allocation6 + %s469]]
        %s471 = scalar_lea.vmem [#allocation18], %s470
        %v472 = vld [vmem:[%s471] sm:$0x1]
        %473 = vst [vmem:[#allocation3 + $0xf] sm:$0x1] %v472
        %s474 = sadd.s32 %s384, 2
        %s475 = sld [smem:[#allocation5 + %s474]]
        %s476 = scalar_lea.vmem [#allocation18], %s475
        %v477 = vld [vmem:[%s476] sm:$0x1]
        %478 = vst [vmem:[#allocation2 + $0x2] sm:$0x1] %v477
        %s479 = smul.u32 %s475, 128
        %s480 = sld [smem:[#allocation6 + %s479]]
        %s481 = scalar_lea.vmem [#allocation18], %s480
        %v482 = vld [vmem:[%s481] sm:$0x1]
        %483 = vst [vmem:[#allocation3 + $0x10] sm:$0x1] %v482
        %s484 = sadd.s32 %s479, 1
        %s485 = sld [smem:[#allocation6 + %s484]]
        %s486 = scalar_lea.vmem [#allocation18], %s485
        %v487 = vld [vmem:[%s486] sm:$0x1]
        %488 = vst [vmem:[#allocation3 + $0x11] sm:$0x1] %v487
        %s489 = sadd.s32 %s479, 2
        %s490 = sld [smem:[#allocation6 + %s489]]
        %s491 = scalar_lea.vmem [#allocation18], %s490
        %v492 = vld [vmem:[%s491] sm:$0x1]
        %493 = vst [vmem:[#allocation3 + $0x12] sm:$0x1] %v492
        %s494 = sadd.s32 %s479, 3
        %s495 = sld [smem:[#allocation6 + %s494]]
        %s496 = scalar_lea.vmem [#allocation18], %s495
        %v497 = vld [vmem:[%s496] sm:$0x1]
        %498 = vst [vmem:[#allocation3 + $0x13] sm:$0x1] %v497
        %s499 = sadd.s32 %s479, 4
        %s500 = sld [smem:[#allocation6 + %s499]]
        %s501 = scalar_lea.vmem [#allocation18], %s500
        %v502 = vld [vmem:[%s501] sm:$0x1]
        %503 = vst [vmem:[#allocation3 + $0x14] sm:$0x1] %v502
        %s504 = sadd.s32 %s479, 5
        %s505 = sld [smem:[#allocation6 + %s504]]
        %s506 = scalar_lea.vmem [#allocation18], %s505
        %v507 = vld [vmem:[%s506] sm:$0x1]
        %508 = vst [vmem:[#allocation3 + $0x15] sm:$0x1] %v507
        %s509 = sadd.s32 %s479, 6
        %s510 = sld [smem:[#allocation6 + %s509]]
        %s511 = scalar_lea.vmem [#allocation18], %s510
        %v512 = vld [vmem:[%s511] sm:$0x1]
        %513 = vst [vmem:[#allocation3 + $0x16] sm:$0x1] %v512
        %s514 = sadd.s32 %s479, 7
        %s515 = sld [smem:[#allocation6 + %s514]]
        %s516 = scalar_lea.vmem [#allocation18], %s515
        %v517 = vld [vmem:[%s516] sm:$0x1]
        %518 = vst [vmem:[#allocation3 + $0x17] sm:$0x1] %v517
        %s519 = sadd.s32 %s384, 3
        %s520 = sld [smem:[#allocation5 + %s519]]
        %s521 = scalar_lea.vmem [#allocation18], %s520
        %v522 = vld [vmem:[%s521] sm:$0x1]
        %523 = vst [vmem:[#allocation2 + $0x3] sm:$0x1] %v522
        %s524 = smul.u32 %s520, 128
        %s525 = sld [smem:[#allocation6 + %s524]]
        %s526 = scalar_lea.vmem [#allocation18], %s525
        %v527 = vld [vmem:[%s526] sm:$0x1]
        %528 = vst [vmem:[#allocation3 + $0x18] sm:$0x1] %v527
        %s529 = sadd.s32 %s524, 1
        %s530 = sld [smem:[#allocation6 + %s529]]
        %s531 = scalar_lea.vmem [#allocation18], %s530
        %v532 = vld [vmem:[%s531] sm:$0x1]
        %533 = vst [vmem:[#allocation3 + $0x19] sm:$0x1] %v532
        %s534 = sadd.s32 %s524, 2
        %s535 = sld [smem:[#allocation6 + %s534]]
        %s536 = scalar_lea.vmem [#allocation18], %s535
        %v537 = vld [vmem:[%s536] sm:$0x1]
        %538 = vst [vmem:[#allocation3 + $0x1a] sm:$0x1] %v537
        %s539 = sadd.s32 %s524, 3
        %s540 = sld [smem:[#allocation6 + %s539]]
        %s541 = scalar_lea.vmem [#allocation18], %s540
        %v542 = vld [vmem:[%s541] sm:$0x1]
        %543 = vst [vmem:[#allocation3 + $0x1b] sm:$0x1] %v542
        %s544 = sadd.s32 %s524, 4
        %s545 = sld [smem:[#allocation6 + %s544]]
        %s546 = scalar_lea.vmem [#allocation18], %s545
        %v547 = vld [vmem:[%s546] sm:$0x1]
        %548 = vst [vmem:[#allocation3 + $0x1c] sm:$0x1] %v547
        %s549 = sadd.s32 %s524, 5
        %s550 = sld [smem:[#allocation6 + %s549]]
        %s551 = scalar_lea.vmem [#allocation18], %s550
        %v552 = vld [vmem:[%s551] sm:$0x1]
        %553 = vst [vmem:[#allocation3 + $0x1d] sm:$0x1] %v552
        %s554 = sadd.s32 %s524, 6
        %s555 = sld [smem:[#allocation6 + %s554]]
        %s556 = scalar_lea.vmem [#allocation18], %s555
        %v557 = vld [vmem:[%s556] sm:$0x1]
        %558 = vst [vmem:[#allocation3 + $0x1e] sm:$0x1] %v557
        %s559 = sadd.s32 %s524, 7
        %s560 = sld [smem:[#allocation6 + %s559]]
        %s561 = scalar_lea.vmem [#allocation18], %s560
        %v562 = vld [vmem:[%s561] sm:$0x1]
        %563 = vst [vmem:[#allocation3 + $0x1f] sm:$0x1] %v562
        %s564 = sadd.s32 %s384, 4
        %s565 = sld [smem:[#allocation5 + %s564]]
        %s566 = scalar_lea.vmem [#allocation18], %s565
        %v567 = vld [vmem:[%s566] sm:$0x1]
        %568 = vst [vmem:[#allocation2 + $0x4] sm:$0x1] %v567
        %s569 = smul.u32 %s565, 128
        %s570 = sld [smem:[#allocation6 + %s569]]
        %s571 = scalar_lea.vmem [#allocation18], %s570
        %v572 = vld [vmem:[%s571] sm:$0x1]
        %573 = vst [vmem:[#allocation3 + $0x20] sm:$0x1] %v572
        %s574 = sadd.s32 %s569, 1
        %s575 = sld [smem:[#allocation6 + %s574]]
        %s576 = scalar_lea.vmem [#allocation18], %s575
        %v577 = vld [vmem:[%s576] sm:$0x1]
        %578 = vst [vmem:[#allocation3 + $0x21] sm:$0x1] %v577
        %s579 = sadd.s32 %s569, 2
        %s580 = sld [smem:[#allocation6 + %s579]]
        %s581 = scalar_lea.vmem [#allocation18], %s580
        %v582 = vld [vmem:[%s581] sm:$0x1]
        %583 = vst [vmem:[#allocation3 + $0x22] sm:$0x1] %v582
        %s584 = sadd.s32 %s569, 3
        %s585 = sld [smem:[#allocation6 + %s584]]
        %s586 = scalar_lea.vmem [#allocation18], %s585
        %v587 = vld [vmem:[%s586] sm:$0x1]
        %588 = vst [vmem:[#allocation3 + $0x23] sm:$0x1] %v587
        %s589 = sadd.s32 %s569, 4
        %s590 = sld [smem:[#allocation6 + %s589]]
        %s591 = scalar_lea.vmem [#allocation18], %s590
        %v592 = vld [vmem:[%s591] sm:$0x1]
        %593 = vst [vmem:[#allocation3 + $0x24] sm:$0x1] %v592
        %s594 = sadd.s32 %s569, 5
        %s595 = sld [smem:[#allocation6 + %s594]]
        %s596 = scalar_lea.vmem [#allocation18], %s595
        %v597 = vld [vmem:[%s596] sm:$0x1]
        %598 = vst [vmem:[#allocation3 + $0x25] sm:$0x1] %v597
        %s599 = sadd.s32 %s569, 6
        %s600 = sld [smem:[#allocation6 + %s599]]
        %s601 = scalar_lea.vmem [#allocation18], %s600
        %v602 = vld [vmem:[%s601] sm:$0x1]
        %603 = vst [vmem:[#allocation3 + $0x26] sm:$0x1] %v602
        %s604 = sadd.s32 %s569, 7
        %s605 = sld [smem:[#allocation6 + %s604]]
        %s606 = scalar_lea.vmem [#allocation18], %s605
        %v607 = vld [vmem:[%s606] sm:$0x1]
        %608 = vst [vmem:[#allocation3 + $0x27] sm:$0x1] %v607
        %s609 = sadd.s32 %s384, 5
        %s610 = sld [smem:[#allocation5 + %s609]]
        %s611 = scalar_lea.vmem [#allocation18], %s610
        %v612 = vld [vmem:[%s611] sm:$0x1]
        %613 = vst [vmem:[#allocation2 + $0x5] sm:$0x1] %v612
        %s614 = smul.u32 %s610, 128
        %s615 = sld [smem:[#allocation6 + %s614]]
        %s616 = scalar_lea.vmem [#allocation18], %s615
        %v617 = vld [vmem:[%s616] sm:$0x1]
        %618 = vst [vmem:[#allocation3 + $0x28] sm:$0x1] %v617
        %s619 = sadd.s32 %s614, 1
        %s620 = sld [smem:[#allocation6 + %s619]]
        %s621 = scalar_lea.vmem [#allocation18], %s620
        %v622 = vld [vmem:[%s621] sm:$0x1]
        %623 = vst [vmem:[#allocation3 + $0x29] sm:$0x1] %v622
        %s624 = sadd.s32 %s614, 2
        %s625 = sld [smem:[#allocation6 + %s624]]
        %s626 = scalar_lea.vmem [#allocation18], %s625
        %v627 = vld [vmem:[%s626] sm:$0x1]
        %628 = vst [vmem:[#allocation3 + $0x2a] sm:$0x1] %v627
        %s629 = sadd.s32 %s614, 3
        %s630 = sld [smem:[#allocation6 + %s629]]
        %s631 = scalar_lea.vmem [#allocation18], %s630
        %v632 = vld [vmem:[%s631] sm:$0x1]
        %633 = vst [vmem:[#allocation3 + $0x2b] sm:$0x1] %v632
        %s634 = sadd.s32 %s614, 4
        %s635 = sld [smem:[#allocation6 + %s634]]
        %s636 = scalar_lea.vmem [#allocation18], %s635
        %v637 = vld [vmem:[%s636] sm:$0x1]
        %638 = vst [vmem:[#allocation3 + $0x2c] sm:$0x1] %v637
        %s639 = sadd.s32 %s614, 5
        %s640 = sld [smem:[#allocation6 + %s639]]
        %s641 = scalar_lea.vmem [#allocation18], %s640
        %v642 = vld [vmem:[%s641] sm:$0x1]
        %643 = vst [vmem:[#allocation3 + $0x2d] sm:$0x1] %v642
        %s644 = sadd.s32 %s614, 6
        %s645 = sld [smem:[#allocation6 + %s644]]
        %s646 = scalar_lea.vmem [#allocation18], %s645
        %v647 = vld [vmem:[%s646] sm:$0x1]
        %648 = vst [vmem:[#allocation3 + $0x2e] sm:$0x1] %v647
        %s649 = sadd.s32 %s614, 7
        %s650 = sld [smem:[#allocation6 + %s649]]
        %s651 = scalar_lea.vmem [#allocation18], %s650
        %v652 = vld [vmem:[%s651] sm:$0x1]
        %653 = vst [vmem:[#allocation3 + $0x2f] sm:$0x1] %v652
        %s654 = sadd.s32 %s384, 6
        %s655 = sld [smem:[#allocation5 + %s654]]
        %s656 = scalar_lea.vmem [#allocation18], %s655
        %v657 = vld [vmem:[%s656] sm:$0x1]
        %658 = vst [vmem:[#allocation2 + $0x6] sm:$0x1] %v657
        %s659 = smul.u32 %s655, 128
        %s660 = sld [smem:[#allocation6 + %s659]]
        %s661 = scalar_lea.vmem [#allocation18], %s660
        %v662 = vld [vmem:[%s661] sm:$0x1]
        %663 = vst [vmem:[#allocation3 + $0x30] sm:$0x1] %v662
        %s664 = sadd.s32 %s659, 1
        %s665 = sld [smem:[#allocation6 + %s664]]
        %s666 = scalar_lea.vmem [#allocation18], %s665
        %v667 = vld [vmem:[%s666] sm:$0x1]
        %668 = vst [vmem:[#allocation3 + $0x31] sm:$0x1] %v667
        %s669 = sadd.s32 %s659, 2
        %s670 = sld [smem:[#allocation6 + %s669]]
        %s671 = scalar_lea.vmem [#allocation18], %s670
        %v672 = vld [vmem:[%s671] sm:$0x1]
        %673 = vst [vmem:[#allocation3 + $0x32] sm:$0x1] %v672
        %s674 = sadd.s32 %s659, 3
        %s675 = sld [smem:[#allocation6 + %s674]]
        %s676 = scalar_lea.vmem [#allocation18], %s675
        %v677 = vld [vmem:[%s676] sm:$0x1]
        %678 = vst [vmem:[#allocation3 + $0x33] sm:$0x1] %v677
        %s679 = sadd.s32 %s659, 4
        %s680 = sld [smem:[#allocation6 + %s679]]
        %s681 = scalar_lea.vmem [#allocation18], %s680
        %v682 = vld [vmem:[%s681] sm:$0x1]
        %683 = vst [vmem:[#allocation3 + $0x34] sm:$0x1] %v682
        %s684 = sadd.s32 %s659, 5
        %s685 = sld [smem:[#allocation6 + %s684]]
        %s686 = scalar_lea.vmem [#allocation18], %s685
        %v687 = vld [vmem:[%s686] sm:$0x1]
        %688 = vst [vmem:[#allocation3 + $0x35] sm:$0x1] %v687
        %s689 = sadd.s32 %s659, 6
        %s690 = sld [smem:[#allocation6 + %s689]]
        %s691 = scalar_lea.vmem [#allocation18], %s690
        %v692 = vld [vmem:[%s691] sm:$0x1]
        %693 = vst [vmem:[#allocation3 + $0x36] sm:$0x1] %v692
        %s694 = sadd.s32 %s659, 7
        %s695 = sld [smem:[#allocation6 + %s694]]
        %s696 = scalar_lea.vmem [#allocation18], %s695
        %v697 = vld [vmem:[%s696] sm:$0x1]
        %698 = vst [vmem:[#allocation3 + $0x37] sm:$0x1] %v697
        %s699 = sadd.s32 %s384, 7
        %s700 = sld [smem:[#allocation5 + %s699]]
        %s701 = scalar_lea.vmem [#allocation18], %s700
        %v702 = vld [vmem:[%s701] sm:$0x1]
        %703 = vst [vmem:[#allocation2 + $0x7] sm:$0x1] %v702
        %s704 = smul.u32 %s700, 128
        %s705 = sld [smem:[#allocation6 + %s704]]
        %s706 = scalar_lea.vmem [#allocation18], %s705
        %v707 = vld [vmem:[%s706] sm:$0x1]
        %708 = vst [vmem:[#allocation3 + $0x38] sm:$0x1] %v707
        %s709 = sadd.s32 %s704, 1
        %s710 = sld [smem:[#allocation6 + %s709]]
        %s711 = scalar_lea.vmem [#allocation18], %s710
        %v712 = vld [vmem:[%s711] sm:$0x1]
        %713 = vst [vmem:[#allocation3 + $0x39] sm:$0x1] %v712
        %s714 = sadd.s32 %s704, 2
        %s715 = sld [smem:[#allocation6 + %s714]]
        %s716 = scalar_lea.vmem [#allocation18], %s715
        %v717 = vld [vmem:[%s716] sm:$0x1]
        %718 = vst [vmem:[#allocation3 + $0x3a] sm:$0x1] %v717
        %s719 = sadd.s32 %s704, 3
        %s720 = sld [smem:[#allocation6 + %s719]]
        %s721 = scalar_lea.vmem [#allocation18], %s720
        %v722 = vld [vmem:[%s721] sm:$0x1]
        %723 = vst [vmem:[#allocation3 + $0x3b] sm:$0x1] %v722
        %s724 = sadd.s32 %s704, 4
        %s725 = sld [smem:[#allocation6 + %s724]]
        %s726 = scalar_lea.vmem [#allocation18], %s725
        %v727 = vld [vmem:[%s726] sm:$0x1]
        %728 = vst [vmem:[#allocation3 + $0x3c] sm:$0x1] %v727
        %s729 = sadd.s32 %s704, 5
        %s730 = sld [smem:[#allocation6 + %s729]]
        %s731 = scalar_lea.vmem [#allocation18], %s730
        %v732 = vld [vmem:[%s731] sm:$0x1]
        %733 = vst [vmem:[#allocation3 + $0x3d] sm:$0x1] %v732
        %s734 = sadd.s32 %s704, 6
        %s735 = sld [smem:[#allocation6 + %s734]]
        %s736 = scalar_lea.vmem [#allocation18], %s735
        %v737 = vld [vmem:[%s736] sm:$0x1]
        %738 = vst [vmem:[#allocation3 + $0x3e] sm:$0x1] %v737
        %s739 = sadd.s32 %s704, 7
        %s740 = sld [smem:[#allocation6 + %s739]]
        %s741 = scalar_lea.vmem [#allocation18], %s740
        %v742 = vld [vmem:[%s741] sm:$0x1]
        %743 = vst [vmem:[#allocation3 + $0x3f] sm:$0x1] %v742
        %v744 = vld [vmem:[#allocation2] sm:$0xff]
        %v745 = vld [vmem:[#allocation3] sm:$0xff]
        %v746 = vld [vmem:[#allocation3 + $0x8] sm:$0xff]
        %v747 = vld [vmem:[#allocation3 + $0x10] sm:$0xff]
        %v748 = vld [vmem:[#allocation3 + $0x18] sm:$0xff]
        %v749 = vld [vmem:[#allocation3 + $0x20] sm:$0xff]
        %v750 = vld [vmem:[#allocation3 + $0x28] sm:$0xff]
        %v751 = vld [vmem:[#allocation3 + $0x30] sm:$0xff]
        %v752 = vld [vmem:[#allocation3 + $0x38] sm:$0xff]
        %v753 = vld [vmem:[%s321] sm:$0xff]
        %v754 = vpack.c.bf16 %v744, %v744
        %v755 = vld [vmem:[#allocation12] sm:$0xf]
        %v756 = vld [vmem:[#allocation12 + $0x4] sm:$0xf]
        %v757 = vld [vmem:[#allocation12 + $0x8] sm:$0xf]
        %v758 = vld [vmem:[#allocation12 + $0xc] sm:$0xf]
        %v759 = vld [vmem:[#allocation12 + $0x10] sm:$0xf]
        %v760 = vld [vmem:[#allocation12 + $0x14] sm:$0xf]
        %v761 = vld [vmem:[#allocation12 + $0x18] sm:$0xf]
        %v762 = vld [vmem:[#allocation12 + $0x1c] sm:$0xf]
        %v763 = vld [vmem:[#allocation12 + $0x20] sm:$0xf]
        %v764 = vld [vmem:[#allocation12 + $0x24] sm:$0xf]
        %v765 = vld [vmem:[#allocation12 + $0x28] sm:$0xf]
        %v766 = vld [vmem:[#allocation12 + $0x2c] sm:$0xf]
        %v767 = vld [vmem:[#allocation12 + $0x30] sm:$0xf]
        %v768 = vld [vmem:[#allocation12 + $0x34] sm:$0xf]
        %v769 = vld [vmem:[#allocation12 + $0x38] sm:$0xf]
        %v770 = vld [vmem:[#allocation12 + $0x3c] sm:$0xf]
        %v787 = vunpack.c.l.b16 %v755
        %v788 = vunpack.c.l.b16 %v756
        %v789 = vunpack.c.l.b16 %v757
        %v790 = vunpack.c.l.b16 %v758
        %v791 = vunpack.c.l.b16 %v759
        %v792 = vunpack.c.l.b16 %v760
        %v793 = vunpack.c.l.b16 %v761
        %v794 = vunpack.c.l.b16 %v762
        %v795 = vunpack.c.l.b16 %v763
        %v796 = vunpack.c.l.b16 %v764
        %v797 = vunpack.c.l.b16 %v765
        %v798 = vunpack.c.l.b16 %v766
        %v799 = vunpack.c.l.b16 %v767
        %v800 = vunpack.c.l.b16 %v768
        %v801 = vunpack.c.l.b16 %v769
        %v802 = vunpack.c.l.b16 %v770
        %v803 = vpack.c.b16 %v788, %v787
        %v804 = vpack.c.b16 %v790, %v789
        %v805 = vpack.c.b16 %v792, %v791
        %v806 = vpack.c.b16 %v794, %v793
        %v807 = vpack.c.b16 %v796, %v795
        %v808 = vpack.c.b16 %v798, %v797
        %v809 = vpack.c.b16 %v800, %v799
        %v810 = vpack.c.b16 %v802, %v801
        %819 = vmatprep.subr.bf16.mxu0 0
        %820 = vmatpush1.bf16.msra.mxu0 %v810
        %821 = vmatprep.subr.bf16.mxu0 0
        %822 = vmatpush1.bf16.msra.mxu0 %v809
        %823 = vmatprep.subr.bf16.mxu0 0
        %824 = vmatpush1.bf16.msra.mxu0 %v808
        %825 = vmatprep.subr.bf16.mxu0 0
        %826 = vmatpush1.bf16.msra.mxu0 %v807
        %827 = vmatprep.subr.bf16.mxu0 0
        %828 = vmatpush1.bf16.msra.mxu0 %v806
        %829 = vmatprep.subr.bf16.mxu0 0
        %830 = vmatpush1.bf16.msra.mxu0 %v805
        %831 = vmatprep.subr.bf16.mxu0 0
        %832 = vmatpush1.bf16.msra.mxu0 %v804
        %833 = vmatprep.subr.bf16.mxu0 0
        %834 = vmatpush1.bf16.msra.mxu0 %v803
        %835 = vmatprep.subr.bf16.mxu0 0
        %836 = vmatpush2.bf16.msra.mxu0 0
        %837 = vmatprep.subr.bf16.mxu0 0
        %838 = vmatpush2.bf16.msra.mxu0 0
        %839 = vmatprep.subr.bf16.mxu0 0
        %840 = vmatpush2.bf16.msra.mxu0 0
        %841 = vmatprep.subr.bf16.mxu0 0
        %842 = vmatpush2.bf16.msra.mxu0 0
        %843 = vmatprep.subr.bf16.mxu0 0
        %844 = vmatpush2.bf16.msra.mxu0 0
        %845 = vmatprep.subr.bf16.mxu0 0
        %846 = vmatpush2.bf16.msra.mxu0 0
        %847 = vmatprep.subr.bf16.mxu0 0
        %848 = vmatpush2.bf16.msra.mxu0 0
        %849 = vmatprep.subr.bf16.mxu0 0
        %850 = vmatpush2.bf16.msra.mxu0 0
        %851 = vmatprep.mubr.bf16.mxu0 0
        %852 = vmatmul.mubr.bf16.gmra.mxu0 %v754
        %v853 = vpop.f32.mrf.mxu0
        %v854 = vadd.f32 0.0, %v853
        %v855 = vpop.f32.mrf.mxu0
        %v856 = vpop.f32.mrf.mxu0
        %v857 = vpop.f32.mrf.mxu0
        %858 = vdwg.mxu0
        %v859 = vpack.c.bf16 %v746, %v745
        %v860 = vpack.c.bf16 %v748, %v747
        %v861 = vpack.c.bf16 %v750, %v749
        %v862 = vpack.c.bf16 %v752, %v751
        %v863 = vld [vmem:[#allocation13] sm:$0xf]
        %v864 = vld [vmem:[#allocation13 + $0x4] sm:$0xf]
        %v865 = vld [vmem:[#allocation13 + $0x8] sm:$0xf]
        %v866 = vld [vmem:[#allocation13 + $0xc] sm:$0xf]
        %v867 = vld [vmem:[#allocation13 + $0x10] sm:$0xf]
        %v868 = vld [vmem:[#allocation13 + $0x14] sm:$0xf]
        %v869 = vld [vmem:[#allocation13 + $0x18] sm:$0xf]
        %v870 = vld [vmem:[#allocation13 + $0x1c] sm:$0xf]
        %v871 = vld [vmem:[#allocation13 + $0x20] sm:$0xf]
        %v872 = vld [vmem:[#allocation13 + $0x24] sm:$0xf]
        %v873 = vld [vmem:[#allocation13 + $0x28] sm:$0xf]
        %v874 = vld [vmem:[#allocation13 + $0x2c] sm:$0xf]
        %v875 = vld [vmem:[#allocation13 + $0x30] sm:$0xf]
        %v876 = vld [vmem:[#allocation13 + $0x34] sm:$0xf]
        %v877 = vld [vmem:[#allocation13 + $0x38] sm:$0xf]
        %v878 = vld [vmem:[#allocation13 + $0x3c] sm:$0xf]
        %v895 = vunpack.c.l.b16 %v863
        %v896 = vunpack.c.l.b16 %v864
        %v897 = vunpack.c.l.b16 %v865
        %v898 = vunpack.c.l.b16 %v866
        %v899 = vunpack.c.l.b16 %v867
        %v900 = vunpack.c.l.b16 %v868
        %v901 = vunpack.c.l.b16 %v869
        %v902 = vunpack.c.l.b16 %v870
        %v903 = vunpack.c.l.b16 %v871
        %v904 = vunpack.c.l.b16 %v872
        %v905 = vunpack.c.l.b16 %v873
        %v906 = vunpack.c.l.b16 %v874
        %v907 = vunpack.c.l.b16 %v875
        %v908 = vunpack.c.l.b16 %v876
        %v909 = vunpack.c.l.b16 %v877
        %v910 = vunpack.c.l.b16 %v878
        %v911 = vpack.c.b16 %v896, %v895
        %v912 = vpack.c.b16 %v898, %v897
        %v913 = vpack.c.b16 %v900, %v899
        %v914 = vpack.c.b16 %v902, %v901
        %v915 = vpack.c.b16 %v904, %v903
        %v916 = vpack.c.b16 %v906, %v905
        %v917 = vpack.c.b16 %v908, %v907
        %v918 = vpack.c.b16 %v910, %v909
        %927 = vmatprep.subr.bf16.mxu0 0
        %928 = vmatpush1.bf16.msra.mxu0 %v918
        %929 = vmatprep.subr.bf16.mxu0 0
        %930 = vmatpush1.bf16.msra.mxu0 %v917
        %931 = vmatprep.subr.bf16.mxu0 0
        %932 = vmatpush1.bf16.msra.mxu0 %v916
        %933 = vmatprep.subr.bf16.mxu0 0
        %934 = vmatpush1.bf16.msra.mxu0 %v915
        %935 = vmatprep.subr.bf16.mxu0 0
        %936 = vmatpush1.bf16.msra.mxu0 %v914
        %937 = vmatprep.subr.bf16.mxu0 0
        %938 = vmatpush1.bf16.msra.mxu0 %v913
        %939 = vmatprep.subr.bf16.mxu0 0
        %940 = vmatpush1.bf16.msra.mxu0 %v912
        %941 = vmatprep.subr.bf16.mxu0 0
        %942 = vmatpush1.bf16.msra.mxu0 %v911
        %943 = vmatprep.subr.bf16.mxu0 0
        %944 = vmatpush2.bf16.msra.mxu0 0
        %945 = vmatprep.subr.bf16.mxu0 0
        %946 = vmatpush2.bf16.msra.mxu0 0
        %947 = vmatprep.subr.bf16.mxu0 0
        %948 = vmatpush2.bf16.msra.mxu0 0
        %949 = vmatprep.subr.bf16.mxu0 0
        %950 = vmatpush2.bf16.msra.mxu0 0
        %951 = vmatprep.subr.bf16.mxu0 0
        %952 = vmatpush2.bf16.msra.mxu0 0
        %953 = vmatprep.subr.bf16.mxu0 0
        %954 = vmatpush2.bf16.msra.mxu0 0
        %955 = vmatprep.subr.bf16.mxu0 0
        %956 = vmatpush2.bf16.msra.mxu0 0
        %957 = vmatprep.subr.bf16.mxu0 0
        %958 = vmatpush2.bf16.msra.mxu0 0
        %959 = vmatprep.mubr.bf16.mxu0 0
        %960 = vmatmul.mubr.bf16.gmra.mxu0 %v859
        %v961 = vpop.f32.mrf.mxu0
        %v962 = vadd.f32 0.0, %v961
        %v963 = vpop.f32.mrf.mxu0
        %v964 = vpop.f32.mrf.mxu0
        %v965 = vadd.f32 0.0, %v964
        %v966 = vpop.f32.mrf.mxu0
        %967 = vmatprep.mubr.bf16.mxu0 0
        %968 = vmatmul.mubr.bf16.gmra.mxu0 %v860
        %v969 = vpop.f32.mrf.mxu0
        %v970 = vadd.f32 0.0, %v969
        %v971 = vpop.f32.mrf.mxu0
        %v972 = vpop.f32.mrf.mxu0
        %v973 = vadd.f32 0.0, %v972
        %v974 = vpop.f32.mrf.mxu0
        %975 = vmatprep.mubr.bf16.mxu0 0
        %976 = vmatmul.mubr.bf16.gmra.mxu0 %v861
        %v977 = vpop.f32.mrf.mxu0
        %v978 = vadd.f32 0.0, %v977
        %v979 = vpop.f32.mrf.mxu0
        %v980 = vpop.f32.mrf.mxu0
        %v981 = vadd.f32 0.0, %v980
        %v982 = vpop.f32.mrf.mxu0
        %983 = vmatprep.mubr.bf16.mxu0 0
        %984 = vmatmul.mubr.bf16.gmra.mxu0 %v862
        %v985 = vpop.f32.mrf.mxu0
        %v986 = vadd.f32 0.0, %v985
        %v987 = vpop.f32.mrf.mxu0
        %v988 = vpop.f32.mrf.mxu0
        %v989 = vadd.f32 0.0, %v988
        %v990 = vpop.f32.mrf.mxu0
        %991 = vdwg.mxu0
        %v992 = vld [vmem:[#allocation15] sm:$0xf]
        %v993 = vld [vmem:[#allocation15 + $0x4] sm:$0xf]
        %v994 = vld [vmem:[#allocation15 + $0x8] sm:$0xf]
        %v995 = vld [vmem:[#allocation15 + $0xc] sm:$0xf]
        %v996 = vld [vmem:[#allocation15 + $0x10] sm:$0xf]
        %v997 = vld [vmem:[#allocation15 + $0x14] sm:$0xf]
        %v998 = vld [vmem:[#allocation15 + $0x18] sm:$0xf]
        %v999 = vld [vmem:[#allocation15 + $0x1c] sm:$0xf]
        %v1000 = vld [vmem:[#allocation15 + $0x20] sm:$0xf]
        %v1001 = vld [vmem:[#allocation15 + $0x24] sm:$0xf]
        %v1002 = vld [vmem:[#allocation15 + $0x28] sm:$0xf]
        %v1003 = vld [vmem:[#allocation15 + $0x2c] sm:$0xf]
        %v1004 = vld [vmem:[#allocation15 + $0x30] sm:$0xf]
        %v1005 = vld [vmem:[#allocation15 + $0x34] sm:$0xf]
        %v1006 = vld [vmem:[#allocation15 + $0x38] sm:$0xf]
        %v1007 = vld [vmem:[#allocation15 + $0x3c] sm:$0xf]
        %v1024 = vunpack.c.l.b16 %v992
        %v1025 = vunpack.c.l.b16 %v993
        %v1026 = vunpack.c.l.b16 %v994
        %v1027 = vunpack.c.l.b16 %v995
        %v1028 = vunpack.c.l.b16 %v996
        %v1029 = vunpack.c.l.b16 %v997
        %v1030 = vunpack.c.l.b16 %v998
        %v1031 = vunpack.c.l.b16 %v999
        %v1032 = vunpack.c.l.b16 %v1000
        %v1033 = vunpack.c.l.b16 %v1001
        %v1034 = vunpack.c.l.b16 %v1002
        %v1035 = vunpack.c.l.b16 %v1003
        %v1036 = vunpack.c.l.b16 %v1004
        %v1037 = vunpack.c.l.b16 %v1005
        %v1038 = vunpack.c.l.b16 %v1006
        %v1039 = vunpack.c.l.b16 %v1007
        %v1040 = vpack.c.b16 %v1025, %v1024
        %v1041 = vpack.c.b16 %v1027, %v1026
        %v1042 = vpack.c.b16 %v1029, %v1028
        %v1043 = vpack.c.b16 %v1031, %v1030
        %v1044 = vpack.c.b16 %v1033, %v1032
        %v1045 = vpack.c.b16 %v1035, %v1034
        %v1046 = vpack.c.b16 %v1037, %v1036
        %v1047 = vpack.c.b16 %v1039, %v1038
        %1056 = vmatprep.subr.bf16.mxu0 0
        %1057 = vmatpush1.bf16.msra.mxu0 %v1047
        %1058 = vmatprep.subr.bf16.mxu0 0
        %1059 = vmatpush1.bf16.msra.mxu0 %v1046
        %1060 = vmatprep.subr.bf16.mxu0 0
        %1061 = vmatpush1.bf16.msra.mxu0 %v1045
        %1062 = vmatprep.subr.bf16.mxu0 0
        %1063 = vmatpush1.bf16.msra.mxu0 %v1044
        %1064 = vmatprep.subr.bf16.mxu0 0
        %1065 = vmatpush1.bf16.msra.mxu0 %v1043
        %1066 = vmatprep.subr.bf16.mxu0 0
        %1067 = vmatpush1.bf16.msra.mxu0 %v1042
        %1068 = vmatprep.subr.bf16.mxu0 0
        %1069 = vmatpush1.bf16.msra.mxu0 %v1041
        %1070 = vmatprep.subr.bf16.mxu0 0
        %1071 = vmatpush1.bf16.msra.mxu0 %v1040
        %1072 = vmatprep.subr.bf16.mxu0 0
        %1073 = vmatpush2.bf16.msra.mxu0 0
        %1074 = vmatprep.subr.bf16.mxu0 0
        %1075 = vmatpush2.bf16.msra.mxu0 0
        %1076 = vmatprep.subr.bf16.mxu0 0
        %1077 = vmatpush2.bf16.msra.mxu0 0
        %1078 = vmatprep.subr.bf16.mxu0 0
        %1079 = vmatpush2.bf16.msra.mxu0 0
        %1080 = vmatprep.subr.bf16.mxu0 0
        %1081 = vmatpush2.bf16.msra.mxu0 0
        %1082 = vmatprep.subr.bf16.mxu0 0
        %1083 = vmatpush2.bf16.msra.mxu0 0
        %1084 = vmatprep.subr.bf16.mxu0 0
        %1085 = vmatpush2.bf16.msra.mxu0 0
        %1086 = vmatprep.subr.bf16.mxu0 0
        %1087 = vmatpush2.bf16.msra.mxu0 0
        %1088 = vmatprep.mubr.bf16.mxu0 0
        %1089 = vmatmul.mubr.bf16.gmra.mxu0 %v859
        %v1090 = vpop.f32.mrf.mxu0
        %v1091 = vadd.f32 0.0, %v1090
        %v1092 = vpop.f32.mrf.mxu0
        %v1093 = vpop.f32.mrf.mxu0
        %v1094 = vadd.f32 0.0, %v1093
        %v1095 = vpop.f32.mrf.mxu0
        %1096 = vmatprep.mubr.bf16.mxu0 0
        %1097 = vmatmul.mubr.bf16.gmra.mxu0 %v860
        %v1098 = vpop.f32.mrf.mxu0
        %v1099 = vadd.f32 0.0, %v1098
        %v1100 = vpop.f32.mrf.mxu0
        %v1101 = vpop.f32.mrf.mxu0
        %v1102 = vadd.f32 0.0, %v1101
        %v1103 = vpop.f32.mrf.mxu0
        %1104 = vmatprep.mubr.bf16.mxu0 0
        %1105 = vmatmul.mubr.bf16.gmra.mxu0 %v861
        %v1106 = vpop.f32.mrf.mxu0
        %v1107 = vadd.f32 0.0, %v1106
        %v1108 = vpop.f32.mrf.mxu0
        %v1109 = vpop.f32.mrf.mxu0
        %v1110 = vadd.f32 0.0, %v1109
        %v1111 = vpop.f32.mrf.mxu0
        %1112 = vmatprep.mubr.bf16.mxu0 0
        %1113 = vmatmul.mubr.bf16.gmra.mxu0 %v862
        %v1114 = vpop.f32.mrf.mxu0
        %v1115 = vadd.f32 0.0, %v1114
        %v1116 = vpop.f32.mrf.mxu0
        %v1117 = vpop.f32.mrf.mxu0
        %v1118 = vadd.f32 0.0, %v1117
        %v1119 = vpop.f32.mrf.mxu0
        %1120 = vdwg.mxu0
        %v1122 = vcombine.high %v854, %v854
        %v1124 = vunpack.c.l.s4 1966171168
        %v1125 = vunpack.c.0.s8 %v1124
        %v1126 = vlaneseq
        %v1127 = vshrl.u32 %v1126, 7
        %v1128 = vsub.s32 %v1125, %v1127
        %v1129 = vrot.slane %v854, %v1128
        %v1131 = vunpack.c.l.s4 1966171168
        %v1132 = vunpack.c.0.s8 %v1131
        %v1133 = vlaneseq
        %v1134 = vshrl.u32 %v1133, 7
        %v1135 = vsub.s32 %v1132, %v1134
        %v1136 = vrot.slane %v1122, %v1135
        %v1137 = vcombine.high %v1129, %v1129
        %v1138 = vcombine.high %v1136, %v1136
        %v1140 = vunpack.c.l.s4 1966171168
        %v1141 = vunpack.c.0.s8 %v1140
        %v1142 = vlaneseq
        %v1143 = vshrl.u32 %v1142, 7
        %v1144 = vsub.s32 %v1141, %v1143
        %v1145 = vrot.slane %v1129, %v1144
        %v1147 = vunpack.c.l.s4 1966171168
        %v1148 = vunpack.c.0.s8 %v1147
        %v1149 = vlaneseq
        %v1150 = vshrl.u32 %v1149, 7
        %v1151 = vsub.s32 %v1148, %v1150
        %v1152 = vrot.slane %v1136, %v1151
        %v1154 = vunpack.c.l.s4 1966171168
        %v1155 = vunpack.c.0.s8 %v1154
        %v1156 = vlaneseq
        %v1157 = vshrl.u32 %v1156, 7
        %v1158 = vsub.s32 %v1155, %v1157
        %v1159 = vrot.slane %v1137, %v1158
        %v1161 = vunpack.c.l.s4 1966171168
        %v1162 = vunpack.c.0.s8 %v1161
        %v1163 = vlaneseq
        %v1164 = vshrl.u32 %v1163, 7
        %v1165 = vsub.s32 %v1162, %v1164
        %v1166 = vrot.slane %v1138, %v1165
        %v1167 = vcombine.high %v1145, %v1145
        %v1168 = vcombine.high %v1152, %v1152
        %v1169 = vcombine.high %v1159, %v1159
        %v1170 = vcombine.high %v1166, %v1166
        %v1171 = vlaneseq
        %v1172 = vshrl.u32 %v1171, 7
        %v1173 = vsub.s32 0, %v1172
        %v1174 = vrot.slane %v1145, %v1173
        %v1175 = vlaneseq
        %v1176 = vshrl.u32 %v1175, 7
        %v1177 = vsub.s32 0, %v1176
        %v1178 = vrot.slane %v1159, %v1177
        %v1179 = vlaneseq
        %v1180 = vshrl.u32 %v1179, 7
        %v1181 = vsub.s32 0, %v1180
        %v1182 = vrot.slane %v1167, %v1181
        %v1183 = vlaneseq
        %v1184 = vshrl.u32 %v1183, 7
        %v1185 = vsub.s32 0, %v1184
        %v1186 = vrot.slane %v1169, %v1185
        %v1187 = vlaneseq
        %v1188 = vshrl.u32 %v1187, 7
        %v1189 = vsub.s32 0, %v1188
        %v1190 = vrot.slane %v1152, %v1189
        %v1191 = vlaneseq
        %v1192 = vshrl.u32 %v1191, 7
        %v1193 = vsub.s32 0, %v1192
        %v1194 = vrot.slane %v1166, %v1193
        %v1195 = vlaneseq
        %v1196 = vshrl.u32 %v1195, 7
        %v1197 = vsub.s32 0, %v1196
        %v1198 = vrot.slane %v1168, %v1197
        %v1199 = vlaneseq
        %v1200 = vshrl.u32 %v1199, 7
        %v1201 = vsub.s32 0, %v1200
        %v1202 = vrot.slane %v1170, %v1201
        %v1211 = vmul.f32 %v962, %v1174
        %v1212 = vmul.f32 %v965, %v1178
        %v1213 = vmul.f32 %v970, %v1182
        %v1214 = vmul.f32 %v973, %v1186
        %v1215 = vmul.f32 %v978, %v1190
        %v1216 = vmul.f32 %v981, %v1194
        %v1217 = vmul.f32 %v986, %v1198
        %v1218 = vmul.f32 %v989, %v1202
        %1219 = vadd.xlane.f32.xlu0 %v1211
        %v1220 = vpop.xlane.xlu0 %1219
        %1221 = vadd.xlane.f32.xlu0 %v1212
        %v1222 = vpop.xlane.xlu0 %1221
        %1223 = vadd.xlane.f32.xlu0 %v1213
        %v1224 = vpop.xlane.xlu0 %1223
        %1225 = vadd.xlane.f32.xlu0 %v1214
        %v1226 = vpop.xlane.xlu0 %1225
        %1227 = vadd.xlane.f32.xlu0 %v1215
        %v1228 = vpop.xlane.xlu0 %1227
        %1229 = vadd.xlane.f32.xlu0 %v1216
        %v1230 = vpop.xlane.xlu0 %1229
        %1231 = vadd.xlane.f32.xlu0 %v1217
        %v1232 = vpop.xlane.xlu0 %1231
        %1233 = vadd.xlane.f32.xlu0 %v1218
        %v1234 = vpop.xlane.xlu0 %1233
        %v1235 = vmul.f32 %v1220, 0.088388346
        %v1236 = vmul.f32 %v1222, 0.088388346
        %v1237 = vmul.f32 %v1224, 0.088388346
        %v1238 = vmul.f32 %v1226, 0.088388346
        %v1239 = vmul.f32 %v1228, 0.088388346
        %v1240 = vmul.f32 %v1230, 0.088388346
        %v1241 = vmul.f32 %v1232, 0.088388346
        %v1242 = vmul.f32 %v1234, 0.088388346
        %vm1243 = vcmp.gt.f32.partialorder %v753, 0.0
        %v1252 = vlaneseq
        %v1253 = vand.u32 %v1252, 127
        %v1254 = vlaneseq
        %v1255 = vshrl.u32 %v1254, 7
        %v1256 = vsub.s32 %v1253, %v1255
        %v1257 = vrot.slane %v1235, %v1256
        %v1258 = vlaneseq
        %v1259 = vshrl.u32 %v1258, 7
        %v1260 = vsub.s32 %v1253, %v1259
        %v1261 = vrot.slane %v1236, %v1260
        %v1262 = vlaneseq
        %v1263 = vshrl.u32 %v1262, 7
        %v1264 = vsub.s32 %v1253, %v1263
        %v1265 = vrot.slane %v1237, %v1264
        %v1266 = vlaneseq
        %v1267 = vshrl.u32 %v1266, 7
        %v1268 = vsub.s32 %v1253, %v1267
        %v1269 = vrot.slane %v1238, %v1268
        %v1270 = vlaneseq
        %v1271 = vshrl.u32 %v1270, 7
        %v1272 = vsub.s32 %v1253, %v1271
        %v1273 = vrot.slane %v1239, %v1272
        %v1274 = vlaneseq
        %v1275 = vshrl.u32 %v1274, 7
        %v1276 = vsub.s32 %v1253, %v1275
        %v1277 = vrot.slane %v1240, %v1276
        %v1278 = vlaneseq
        %v1279 = vshrl.u32 %v1278, 7
        %v1280 = vsub.s32 %v1253, %v1279
        %v1281 = vrot.slane %v1241, %v1280
        %v1282 = vlaneseq
        %v1283 = vshrl.u32 %v1282, 7
        %v1284 = vsub.s32 %v1253, %v1283
        %v1285 = vrot.slane %v1242, %v1284
        %vm1286 = vcmask 1041409
        %v1287 = vsel %vm1286, %v1261, %v1257
        %vm1288 = vcmask 1042434
        %v1289 = vsel %vm1288, %v1265, %v1287
        %vm1290 = vcmask 1043459
        %v1291 = vsel %vm1290, %v1269, %v1289
        %vm1292 = vcmask 1044484
        %v1293 = vsel %vm1292, %v1273, %v1291
        %vm1294 = vcmask 1045509
        %v1295 = vsel %vm1294, %v1277, %v1293
        %vm1296 = vcmask 1046534
        %v1297 = vsel %vm1296, %v1281, %v1295
        %vm1298 = vcmask 1047559
        %v1299 = vsel %vm1298, %v1285, %v1297
        %v1301 = vsel %vm1243, %v1299, -1e+30
        %vm1302 = vcmask 64512
        %v1303 = vsel %vm1302, %v1301, -inf
        %1304 = vmax.xlane.f32.xlu0 %v1303
        %v1305 = vpop.xlane.xlu0 %1304
        %v1306 = vsub.f32 %v1301, %v1305
        %v1307 = vmul.f32 %v1306, 1.442695
        %v1308 = vpow.pop %v1307
        %v1309 = vmul.f32 %v1308, %v753
        %v1310 = vsel %vm1302, %v1309, 0.0
        %1311 = vadd.xlane.f32.xlu0 %v1310
        %v1312 = vpop.xlane.xlu0 %1311
        %v1313 = vmax.f32 %v1312, 1e-09
        %v1314 = vrcp.pop %v1313
        %v1315 = vmul.f32 %v1309, %v1314
        %v1316 = vlaneseq
        %v1317 = vshrl.u32 %v1316, 7
        %v1318 = vsub.s32 0, %v1317
        %v1319 = vrot.slane %v1315, %v1318
        %1321 = vbcast.lane.b32.xlu0 %v1319, 256
        %v1322 = vpop.permute.xlu0 %1321
        %v1323 = vlaneseq
        %v1324 = vshrl.u32 %v1323, 7
        %v1325 = vsub.s32 1, %v1324
        %v1326 = vrot.slane %v1315, %v1325
        %1328 = vbcast.lane.b32.xlu0 %v1326, 256
        %v1329 = vpop.permute.xlu0 %1328
        %v1330 = vlaneseq
        %v1331 = vshrl.u32 %v1330, 7
        %v1332 = vsub.s32 2, %v1331
        %v1333 = vrot.slane %v1315, %v1332
        %1335 = vbcast.lane.b32.xlu0 %v1333, 256
        %v1336 = vpop.permute.xlu0 %1335
        %v1337 = vlaneseq
        %v1338 = vshrl.u32 %v1337, 7
        %v1339 = vsub.s32 3, %v1338
        %v1340 = vrot.slane %v1315, %v1339
        %1342 = vbcast.lane.b32.xlu0 %v1340, 256
        %v1343 = vpop.permute.xlu0 %1342
        %v1344 = vlaneseq
        %v1345 = vshrl.u32 %v1344, 7
        %v1346 = vsub.s32 4, %v1345
        %v1347 = vrot.slane %v1315, %v1346
        %1349 = vbcast.lane.b32.xlu0 %v1347, 256
        %v1350 = vpop.permute.xlu0 %1349
        %v1351 = vlaneseq
        %v1352 = vshrl.u32 %v1351, 7
        %v1353 = vsub.s32 5, %v1352
        %v1354 = vrot.slane %v1315, %v1353
        %1356 = vbcast.lane.b32.xlu0 %v1354, 256
        %v1357 = vpop.permute.xlu0 %1356
        %v1358 = vlaneseq
        %v1359 = vshrl.u32 %v1358, 7
        %v1360 = vsub.s32 6, %v1359
        %v1361 = vrot.slane %v1315, %v1360
        %1363 = vbcast.lane.b32.xlu0 %v1361, 256
        %v1364 = vpop.permute.xlu0 %1363
        %v1365 = vlaneseq
        %v1366 = vshrl.u32 %v1365, 7
        %v1367 = vsub.s32 7, %v1366
        %v1368 = vrot.slane %v1315, %v1367
        %1370 = vbcast.lane.b32.xlu0 %v1368, 256
        %v1371 = vpop.permute.xlu0 %1370
        %v1372 = vmul.f32 %v1322, %v1091
        %v1373 = vmul.f32 %v1329, %v1094
        %v1374 = vmul.f32 %v1336, %v1099
        %v1375 = vmul.f32 %v1343, %v1102
        %v1376 = vmul.f32 %v1350, %v1107
        %v1377 = vmul.f32 %v1357, %v1110
        %v1378 = vmul.f32 %v1364, %v1115
        %v1379 = vmul.f32 %v1371, %v1118
        %v1380 = vrot.slane %v1372, 4
        %v1381 = vadd.f32 %v1372, %v1380
        %v1382 = vrot.slane %v1381, 2
        %v1383 = vadd.f32 %v1381, %v1382
        %v1384 = vrot.slane %v1383, 1
        %v1385 = vadd.f32 %v1383, %v1384
        %v1386 = vrot.slane %v1373, 4
        %v1387 = vadd.f32 %v1373, %v1386
        %v1388 = vrot.slane %v1387, 2
        %v1389 = vadd.f32 %v1387, %v1388
        %v1390 = vrot.slane %v1389, 1
        %v1391 = vadd.f32 %v1389, %v1390
        %v1392 = vrot.slane %v1374, 4
        %v1393 = vadd.f32 %v1374, %v1392
        %v1394 = vrot.slane %v1393, 2
        %v1395 = vadd.f32 %v1393, %v1394
        %v1396 = vrot.slane %v1395, 1
        %v1397 = vadd.f32 %v1395, %v1396
        %v1398 = vrot.slane %v1375, 4
        %v1399 = vadd.f32 %v1375, %v1398
        %v1400 = vrot.slane %v1399, 2
        %v1401 = vadd.f32 %v1399, %v1400
        %v1402 = vrot.slane %v1401, 1
        %v1403 = vadd.f32 %v1401, %v1402
        %v1404 = vrot.slane %v1376, 4
        %v1405 = vadd.f32 %v1376, %v1404
        %v1406 = vrot.slane %v1405, 2
        %v1407 = vadd.f32 %v1405, %v1406
        %v1408 = vrot.slane %v1407, 1
        %v1409 = vadd.f32 %v1407, %v1408
        %v1410 = vrot.slane %v1377, 4
        %v1411 = vadd.f32 %v1377, %v1410
        %v1412 = vrot.slane %v1411, 2
        %v1413 = vadd.f32 %v1411, %v1412
        %v1414 = vrot.slane %v1413, 1
        %v1415 = vadd.f32 %v1413, %v1414
        %v1416 = vrot.slane %v1378, 4
        %v1417 = vadd.f32 %v1378, %v1416
        %v1418 = vrot.slane %v1417, 2
        %v1419 = vadd.f32 %v1417, %v1418
        %v1420 = vrot.slane %v1419, 1
        %v1421 = vadd.f32 %v1419, %v1420
        %v1422 = vrot.slane %v1379, 4
        %v1423 = vadd.f32 %v1379, %v1422
        %v1424 = vrot.slane %v1423, 2
        %v1425 = vadd.f32 %v1423, %v1424
        %v1426 = vrot.slane %v1425, 1
        %v1427 = vadd.f32 %v1425, %v1426
        %v1429 = vrot.slane %v744, 1
        %v1430 = vrot.slane %v744, 2
        %v1431 = vrot.slane %v744, 3
        %v1432 = vrot.slane %v744, 4
        %v1433 = vrot.slane %v744, 5
        %v1434 = vrot.slane %v744, 6
        %v1435 = vrot.slane %v744, 7
        %v1444 = vadd.f32 %v1385, %v744
        %v1445 = vadd.f32 %v1391, %v1429
        %v1446 = vadd.f32 %v1397, %v1430
        %v1447 = vadd.f32 %v1403, %v1431
        %v1448 = vadd.f32 %v1409, %v1432
        %v1449 = vadd.f32 %v1415, %v1433
        %v1450 = vadd.f32 %v1421, %v1434
        %v1451 = vadd.f32 %v1427, %v1435
        %v1452 = vpack.c.bf16 %v1444, %v1444
        %v1453 = vpack.c.bf16 %v1445, %v1445
        %v1454 = vpack.c.bf16 %v1446, %v1446
        %v1455 = vpack.c.bf16 %v1447, %v1447
        %v1456 = vpack.c.bf16 %v1448, %v1448
        %v1457 = vpack.c.bf16 %v1449, %v1449
        %v1458 = vpack.c.bf16 %v1450, %v1450
        %v1459 = vpack.c.bf16 %v1451, %v1451
        %v1460 = vld [vmem:[#allocation16] sm:$0xf]
        %v1461 = vld [vmem:[#allocation16 + $0x4] sm:$0xf]
        %v1462 = vld [vmem:[#allocation16 + $0x8] sm:$0xf]
        %v1463 = vld [vmem:[#allocation16 + $0xc] sm:$0xf]
        %v1464 = vld [vmem:[#allocation16 + $0x10] sm:$0xf]
        %v1465 = vld [vmem:[#allocation16 + $0x14] sm:$0xf]
        %v1466 = vld [vmem:[#allocation16 + $0x18] sm:$0xf]
        %v1467 = vld [vmem:[#allocation16 + $0x1c] sm:$0xf]
        %v1468 = vld [vmem:[#allocation16 + $0x20] sm:$0xf]
        %v1469 = vld [vmem:[#allocation16 + $0x24] sm:$0xf]
        %v1470 = vld [vmem:[#allocation16 + $0x28] sm:$0xf]
        %v1471 = vld [vmem:[#allocation16 + $0x2c] sm:$0xf]
        %v1472 = vld [vmem:[#allocation16 + $0x30] sm:$0xf]
        %v1473 = vld [vmem:[#allocation16 + $0x34] sm:$0xf]
        %v1474 = vld [vmem:[#allocation16 + $0x38] sm:$0xf]
        %v1475 = vld [vmem:[#allocation16 + $0x3c] sm:$0xf]
        %v1476 = vld [vmem:[%s8] sm:$0x1]
        %v1478 = vlaneseq
        %v1479 = vshrl.u32 %v1478, 7
        %v1480 = vsub.s32 0, %v1479
        %v1481 = vrot.slane %v1476, %v1480
        %v1491 = vunpack.c.l.b16 %v1452
        %v1492 = vunpack.c.l.b16 %v1453
        %v1493 = vunpack.c.l.b16 %v1454
        %v1494 = vunpack.c.l.b16 %v1455
        %v1495 = vunpack.c.l.b16 %v1456
        %v1496 = vunpack.c.l.b16 %v1457
        %v1497 = vunpack.c.l.b16 %v1458
        %v1498 = vunpack.c.l.b16 %v1459
        %v1499 = vrot.slane %v1492, 7
        %v1500 = vsel %vm1286, %v1499, %v1491
        %v1501 = vrot.slane %v1493, 6
        %v1502 = vsel %vm1288, %v1501, %v1500
        %v1503 = vrot.slane %v1494, 5
        %v1504 = vsel %vm1290, %v1503, %v1502
        %v1505 = vrot.slane %v1495, 4
        %v1506 = vsel %vm1292, %v1505, %v1504
        %v1507 = vrot.slane %v1496, 3
        %v1508 = vsel %vm1294, %v1507, %v1506
        %v1509 = vrot.slane %v1497, 2
        %v1510 = vsel %vm1296, %v1509, %v1508
        %v1511 = vrot.slane %v1498, 1
        %v1512 = vsel %vm1298, %v1511, %v1510
        %v1513 = vpack.c.b16 %v1512, %v1512
        %v1531 = vunpack.c.l.b16 %v1460
        %v1532 = vunpack.c.l.b16 %v1461
        %v1533 = vunpack.c.l.b16 %v1462
        %v1534 = vunpack.c.l.b16 %v1463
        %v1535 = vunpack.c.l.b16 %v1464
        %v1536 = vunpack.c.l.b16 %v1465
        %v1537 = vunpack.c.l.b16 %v1466
        %v1538 = vunpack.c.l.b16 %v1467
        %v1539 = vunpack.c.l.b16 %v1468
        %v1540 = vunpack.c.l.b16 %v1469
        %v1541 = vunpack.c.l.b16 %v1470
        %v1542 = vunpack.c.l.b16 %v1471
        %v1543 = vunpack.c.l.b16 %v1472
        %v1544 = vunpack.c.l.b16 %v1473
        %v1545 = vunpack.c.l.b16 %v1474
        %v1546 = vunpack.c.l.b16 %v1475
        %v1547 = vpack.c.b16 %v1532, %v1531
        %v1548 = vpack.c.b16 %v1534, %v1533
        %v1549 = vpack.c.b16 %v1536, %v1535
        %v1550 = vpack.c.b16 %v1538, %v1537
        %v1551 = vpack.c.b16 %v1540, %v1539
        %v1552 = vpack.c.b16 %v1542, %v1541
        %v1553 = vpack.c.b16 %v1544, %v1543
        %v1554 = vpack.c.b16 %v1546, %v1545
        %1563 = vmatprep.subr.bf16.mxu0 0
        %1564 = vmatpush1.bf16.msra.mxu0 %v1554
        %1565 = vmatprep.subr.bf16.mxu0 0
        %1566 = vmatpush1.bf16.msra.mxu0 %v1553
        %1567 = vmatprep.subr.bf16.mxu0 0
        %1568 = vmatpush1.bf16.msra.mxu0 %v1552
        %1569 = vmatprep.subr.bf16.mxu0 0
        %1570 = vmatpush1.bf16.msra.mxu0 %v1551
        %1571 = vmatprep.subr.bf16.mxu0 0
        %1572 = vmatpush1.bf16.msra.mxu0 %v1550
        %1573 = vmatprep.subr.bf16.mxu0 0
        %1574 = vmatpush1.bf16.msra.mxu0 %v1549
        %1575 = vmatprep.subr.bf16.mxu0 0
        %1576 = vmatpush1.bf16.msra.mxu0 %v1548
        %1577 = vmatprep.subr.bf16.mxu0 0
        %1578 = vmatpush1.bf16.msra.mxu0 %v1547
        %1579 = vmatprep.subr.bf16.mxu0 0
        %1580 = vmatpush2.bf16.msra.mxu0 0
        %1581 = vmatprep.subr.bf16.mxu0 0
        %1582 = vmatpush2.bf16.msra.mxu0 0
        %1583 = vmatprep.subr.bf16.mxu0 0
        %1584 = vmatpush2.bf16.msra.mxu0 0
        %1585 = vmatprep.subr.bf16.mxu0 0
        %1586 = vmatpush2.bf16.msra.mxu0 0
        %1587 = vmatprep.subr.bf16.mxu0 0
        %1588 = vmatpush2.bf16.msra.mxu0 0
        %1589 = vmatprep.subr.bf16.mxu0 0
        %1590 = vmatpush2.bf16.msra.mxu0 0
        %1591 = vmatprep.subr.bf16.mxu0 0
        %1592 = vmatpush2.bf16.msra.mxu0 0
        %1593 = vmatprep.subr.bf16.mxu0 0
        %1594 = vmatpush2.bf16.msra.mxu0 0
        %1595 = vmatprep.mubr.bf16.mxu0 0
        %1596 = vmatmul.mubr.bf16.gmra.mxu0 %v1513
        %v1597 = vpop.f32.mrf.mxu0
        %v1598 = vadd.f32 %v1481, %v1597
        %v1599 = vpop.f32.mrf.mxu0
        %v1600 = vpop.f32.mrf.mxu0
        %v1601 = vpop.f32.mrf.mxu0
        %1602 = vdwg.mxu0
        %v1603 = vtanh.pop %v1598
        %s1604 = sld [smem:[#allocation5 + %s384]]
        %s1605 = scalar_lea.vmem [#allocation18], %s1604
        %1606 = vst [vmem:[%s1605] sm:$0x1] %v1603
        %s1607 = sld [smem:[#allocation5 + %s429]]
        %s1608 = scalar_lea.vmem [#allocation18], %s1607
        %1609 = vst [vmem:[%s1608 - $0x1] sm:$0x2] %v1603
        %s1610 = sld [smem:[#allocation5 + %s474]]
        %s1611 = scalar_lea.vmem [#allocation18], %s1610
        %1612 = vst [vmem:[%s1611 - $0x2] sm:$0x4] %v1603
        %s1613 = sld [smem:[#allocation5 + %s519]]
        %s1614 = scalar_lea.vmem [#allocation18], %s1613
        %1615 = vst [vmem:[%s1614 - $0x3] sm:$0x8] %v1603
        %s1616 = sld [smem:[#allocation5 + %s564]]
        %s1617 = scalar_lea.vmem [#allocation18], %s1616
        %1618 = vst [vmem:[%s1617 - $0x4] sm:$0x10] %v1603
        %s1619 = sld [smem:[#allocation5 + %s609]]
        %s1620 = scalar_lea.vmem [#allocation18], %s1619
        %1621 = vst [vmem:[%s1620 - $0x5] sm:$0x20] %v1603
        %s1622 = sld [smem:[#allocation5 + %s654]]
        %s1623 = scalar_lea.vmem [#allocation18], %s1622
        %1624 = vst [vmem:[%s1623 - $0x6] sm:$0x40] %v1603
        %s1625 = sld [smem:[#allocation5 + %s699]]
        %s1626 = scalar_lea.vmem [#allocation18], %s1625
        %1627 = vst [vmem:[%s1626 - $0x7] sm:$0x80] %v1603
        // Predicated region
        $region77: #{bottom_up_pass.1} parent=47 // pred_check
          %p1628 = pneg %p198
        $region78: #{bottom_up_pass.1} parent=47 // pred_check_branch
          %1630 = sbr.rel (%p1628) target = $region80
        $region79: #{bottom_up_pass.1} parent=47 // pred_region
          %s1632 = ssub.s32 128, 128
          %1633 = vsyncadd [#allocation9], %s1632
          %s1634 = sshll.u32 [#allocation18], 4
          %s1635 = int_to_ptr.vmem [resolvable:$true] %s1634
          %1640 = dma.vmem_to_hbm [thread:$0]  %s1635, 128, %s9, [#allocation9], 16, 16, 1
        $region80: #{bottom_up_pass.1} parent=47 // pred_fallthru
          _
        // Predicated region
        $region81: #{bottom_up_pass.1} parent=47 // pred_check
          %p1641 = pneg %p198
        $region82: #{bottom_up_pass.1} parent=47 // pred_check_branch
          %1643 = sbr.rel (%p1641) target = $region84
        $region83: #{bottom_up_pass.1} parent=47 // pred_region
          %1644 = dma.done [#allocation9], 128
        $region84: #{bottom_up_pass.1} parent=47 // pred_fallthru
          _
      $region48: #{bottom_up_pass.1} parent=5 // pred_fallthru
        _
      %p1645 = scmp.le.s32.totalorder 2, %s28
      // Predicated region
      $region85: #{bottom_up_pass.1} parent=5 // pred_check
        %p1646 = pneg %p1645
      $region86: #{bottom_up_pass.1} parent=5 // pred_check_branch
        %1648 = sbr.rel (%p1646) target = $region88
      $region87: #{bottom_up_pass.1} parent=5 // pred_region
        %s1649 = ssub.s32 %s28, 2
      $region88: #{bottom_up_pass.1} parent=5 // pred_fallthru
        _
    $region6: #{bottom_up_pass.1} parent=1 // loop_footer
      %s32 = sadd.s32 1, %s28
    $region7: #{bottom_up_pass.1} parent=1 // loop_footer_branch
      %27 = sbr.rel target = $region3
    $region8: #{bottom_up_pass.1} parent=1 // loop_exit
      _
    %1650 = vsyncpa [#allocation8], 1
    %s1651 = scalar_lea.sflag [#allocation8], 1
    %1652 = vsyncpa %s1651, 1
    %1653 = vsyncpa [#allocation11], 1
    %s1654 = scalar_lea.sflag [#allocation11], 1
    %1655 = vsyncpa %s1654, 1
    %1656 = vsyncpa [#allocation14], 1
    %1657 = vsyncpa [#allocation17], 1
    %1658 = vsyncpa [#allocation9], 1
    %s1659 = scalar_lea.sflag [#allocation9], 1
    %1660 = vsyncpa %s1659, 1

</llo_original>
